<compile_context>
chip_gen: v7x
topology: tpu7x:2x2x1
jax: 0.10.0
libtpu: 0.0.40
codegen_flags: <defaults>
</compile_context>

<pallas_src>
import functools

import jax
import jax.numpy as jnp
from jax.experimental import pallas as pl
from jax.experimental.pallas import tpu as pltpu


# ----------------------------------------------------------------------------
# Pallas kernel: the whole GATv2 stack, one grid step == one layer.
# ----------------------------------------------------------------------------
def gat_stack_kernel(a_ref, x_ref, w_ref, att_ref, vec_ref,   # inputs
                     o_ref,                                   # output (= carried h)
                     *, heads, n_nodes, c_pad, c_true, neg_slope, ln_eps):
    n = n_nodes
    cp = c_pad

    # Seed the carried node features from the (padded) input on the first layer.
    @pl.when(pl.program_id(0) == 0)
    def _():
        o_ref[...] = x_ref[...]

    x = o_ref[...]                        # [N, Cp]   padded lanes are exactly 0
    w = w_ref[0]                          # [Cp, 2*Cp]  = [Wl_packed | Wr_packed]
    att_m = att_ref[0]                    # [Cp, Cp]   block-replicated att matrix
    vecs = vec_ref[0]                     # [4, 2*Cp]  packed small params

    blr = vecs[0:1, :]                    # [1, 2*Cp]  packed lin_l / lin_r biases
    bias = vecs[1:2, :cp]                 # [1, Cp]
    gamma = vecs[2:3, :cp]                # [1, Cp]
    beta = vecs[3:4, :cp]                 # [1, Cp]

    # Fused projection: ONE MXU matmul yields xl (source side) and xr (target
    # side) for every head; heads packed along the 128-lane axis.
    xlr = jnp.dot(x, w, preferred_element_type=jnp.float32) + blr    # [N, 2*Cp]
    xl = xlr[:, :cp]                      # xl[:, h*Ct + c] = xl_h[:, c]
    xr = xlr[:, cp:]                      # xr[:, h*Ct + c] = xr_h[:, c]

    # GATv2 scores for all heads at once; layout [j (source), i (target), lane].
    xl_b = jax.lax.broadcast_in_dim(xl, (n, n, cp), (0, 2))   # xl_b[j, i, :] = xl[j]
    xr_b = jax.lax.broadcast_in_dim(xr, (n, n, cp), (1, 2))   # xr_b[j, i, :] = xr[i]
    s = xl_b + xr_b                                           # [N, N, Cp]
    s = jnp.where(s >= 0.0, s, neg_slope * s)                 # LeakyReLU(0.2)

    # MXU contraction with the block-replicated attention matrix: lane l of e
    # holds head (l // Ct)'s score, replicated over that head's Ct lanes.
    e = jnp.dot(jnp.reshape(s, (n * n, cp)), att_m,
                preferred_element_type=jnp.float32)
    e = jnp.reshape(e, (n, n, cp))                            # e[j, i, lane]

    # Masked, count-weighted softmax over incoming edges j of each target i.
    cnt = a_ref[...]                                          # [N, N, 1], cnt[j, i, 0]
    e = jnp.where(cnt > 0.0, e, -1e30)
    m = jnp.max(e, axis=0, keepdims=True)                     # [1, N, Cp]
    p = jnp.exp(e - m) * cnt                                  # [N, N, Cp]
    denom = jnp.sum(p, axis=0, keepdims=True)                 # [1, N, Cp]
    alpha = p * pl.reciprocal(denom, approx=True)             # [N, N, Cp]

    # Aggregation (still head-packed): op[i, h*Ct + c] = sum_j alpha_h[i,j]*xl_h[j,c]
    op = jnp.sum(alpha * xl_b, axis=0)                        # [N, Cp]

    # Mean over heads: fold the `heads` lane blocks of width Ct (direction of
    # pltpu.roll does not matter because all block-multiple shifts are summed).
    folded = op
    for h in range(1, heads):
        folded = folded + pltpu.roll(op, shift=h * c_true, axis=1)
    lane = jax.lax.broadcasted_iota(jnp.int32, (1, cp), 1)
    lmask = (lane < c_true).astype(jnp.float32)
    out = folded * (lmask * (1.0 / heads)) + bias             # padded lanes exactly 0

    # LayerNorm over the true channels (padded lanes of `out` are exactly 0).
    mean = jnp.sum(out, axis=-1, keepdims=True) * (1.0 / c_true)
    cen = (out - mean) * lmask
    var = jnp.sum(cen * cen, axis=-1, keepdims=True) * (1.0 / c_true)
    y = cen * jax.lax.rsqrt(var + ln_eps)
    y = y * gamma + beta

    # Module-level LeakyReLU(0.2); gamma/beta padding keeps padded lanes 0.
    y = jnp.where(y >= 0.0, y, neg_slope * y)

    o_ref[...] = y                        # carry to next layer; last write = result


def gat_forward(a_t3, x_pad, w_all, att_all, vec_all, *, heads, c_true,
                neg_slope=0.2, ln_eps=1e-5):
    num_layers, c_pad, two_cp = w_all.shape
    n = x_pad.shape[0]
    kernel = functools.partial(
        gat_stack_kernel, heads=heads, n_nodes=n, c_pad=c_pad, c_true=c_true,
        neg_slope=neg_slope, ln_eps=ln_eps)
    flops = num_layers * (2 * n * c_pad * two_cp          # fused projection
                          + 2 * n * n * c_pad * c_pad     # attention contraction
                          + 2 * n * n * c_pad             # aggregation
                          + 10 * n * n * c_pad)           # score/softmax elementwise
    return pl.pallas_call(
        kernel,
        out_shape=jax.ShapeDtypeStruct((n, c_pad), jnp.float32),
        grid_spec=pltpu.PrefetchScalarGridSpec(
            num_scalar_prefetch=0,
            grid=(num_layers,),
            in_specs=[
                pl.BlockSpec((n, n, 1), lambda l: (0, 0, 0)),           # A^T counts (resident)
                pl.BlockSpec((n, c_pad), lambda l: (0, 0)),             # x0 (resident)
                pl.BlockSpec((1, c_pad, two_cp), lambda l: (l, 0, 0)),  # fused W[l]
                pl.BlockSpec((1, c_pad, c_pad), lambda l: (l, 0, 0)),   # att matrix[l]
                pl.BlockSpec((1, 4, two_cp), lambda l: (l, 0, 0)),      # packed vecs[l]
            ],
            out_specs=pl.BlockSpec((n, c_pad), lambda l: (0, 0)),
        ),
        compiler_params=pltpu.CompilerParams(
            dimension_semantics=("arbitrary",),
            vmem_limit_bytes=64 * 1024 * 1024),
        cost_estimate=pl.CostEstimate(
            flops=int(flops),
            transcendentals=int(num_layers * n * n * c_pad),
            bytes_accessed=int(4 * (a_t3.size + x_pad.size + w_all.size
                                    + att_all.size + vec_all.size + n * c_pad))),
    )(a_t3, x_pad, w_all, att_all, vec_all)


# ----------------------------------------------------------------------------
# Glue: dense edge-count matrix (GATv2 default: remove then add self loops).
# ----------------------------------------------------------------------------
def edge_count_matrix(edge_index, num_nodes):
    src, dst = edge_index[0], edge_index[1]
    a = jnp.zeros((num_nodes, num_nodes), jnp.float32)
    a = a.at[dst, src].add(1.0)                     # a[i, j] = #edges j -> i
    eye = jnp.eye(num_nodes, dtype=bool)
    return jnp.where(eye, 1.0, a)                   # exactly one self loop / node


# ----------------------------------------------------------------------------
# Parameter init (GATv2Conv defaults: glorot weights/att, zero biases; LN affine)
# ----------------------------------------------------------------------------
def init_params(key, in_channels, hidden_channels, out_channels, num_layers, heads):
    params = []
    for i in range(num_layers):
        c_in = in_channels if i == 0 else hidden_channels
        c_out = out_channels if i == num_layers - 1 else hidden_channels
        key, k1, k2, k3 = jax.random.split(key, 4)
        lim_w = jnp.sqrt(6.0 / (c_in + heads * c_out))
        wl = jax.random.uniform(k1, (c_in, heads, c_out), jnp.float32, -lim_w, lim_w)
        wr = jax.random.uniform(k2, (c_in, heads, c_out), jnp.float32, -lim_w, lim_w)
        lim_a = jnp.sqrt(6.0 / (heads + c_out))
        att = jax.random.uniform(k3, (heads, c_out), jnp.float32, -lim_a, lim_a)
        params.append(dict(
            wl=wl, wr=wr, att=att,
            bl=jnp.zeros((heads, c_out), jnp.float32),
            br=jnp.zeros((heads, c_out), jnp.float32),
            bias=jnp.zeros((c_out,), jnp.float32),
            gamma=jnp.ones((c_out,), jnp.float32),
            beta=jnp.zeros((c_out,), jnp.float32)))
    return params


def pack_params(params, heads, c_true, c_pad):
    """Head-pack along lanes: W -> [L, Cp, 2*Cp], att -> block-replicated [L, Cp, Cp]."""
    num_layers = len(params)
    assert heads * c_true == c_pad
    w_all = jnp.zeros((num_layers, c_pad, 2 * c_pad), jnp.float32)
    att_all = jnp.zeros((num_layers, c_pad, c_pad), jnp.float32)
    vec_all = jnp.zeros((num_layers, 4, 2 * c_pad), jnp.float32)
    for l, p in enumerate(params):
        c_in = p["wl"].shape[0]
        w_all = w_all.at[l, :c_in, :c_pad].set(p["wl"].reshape(c_in, c_pad))
        w_all = w_all.at[l, :c_in, c_pad:].set(p["wr"].reshape(c_in, c_pad))
        for h in range(heads):
            blk = jnp.broadcast_to(p["att"][h][:, None], (c_true, c_true))
            att_all = att_all.at[l, h * c_true:(h + 1) * c_true,
                                 h * c_true:(h + 1) * c_true].set(blk)
        vec_all = vec_all.at[l, 0, :c_pad].set(p["bl"].reshape(c_pad))
        vec_all = vec_all.at[l, 0, c_pad:].set(p["br"].reshape(c_pad))
        vec_all = vec_all.at[l, 1, :c_true].set(p["bias"])
        vec_all = vec_all.at[l, 2, :c_true].set(p["gamma"])
        vec_all = vec_all.at[l, 3, :c_true].set(p["beta"])
    return w_all, att_all, vec_all


# ----------------------------------------------------------------------------
# Pure-JAX reference (same dense GATv2 math) for a correctness check.
# ----------------------------------------------------------------------------
def gat_reference(x, a_cnt, params, heads, neg_slope=0.2, ln_eps=1e-5):
    hi = jax.lax.Precision.HIGHEST
    h = x
    for p in params:
        xl = jnp.einsum("nc,chd->nhd", h, p["wl"], precision=hi) + p["bl"][None]
        xr = jnp.einsum("nc,chd->nhd", h, p["wr"], precision=hi) + p["br"][None]
        s = xr[:, None, :, :] + xl[None, :, :, :]                 # [Ni, Nj, H, C]
        s = jnp.where(s >= 0, s, neg_slope * s)
        e = jnp.einsum("ijhc,hc->ijh", s, p["att"], precision=hi)
        e = jnp.where((a_cnt > 0)[:, :, None], e, -1e30)
        e_max = jnp.max(e, axis=1, keepdims=True)
        pr = jnp.exp(e - e_max) * a_cnt[:, :, None]
        alpha = pr / jnp.sum(pr, axis=1, keepdims=True)
        out = jnp.einsum("ijh,jhc->ihc", alpha, xl, precision=hi)
        out = out.mean(axis=1) + p["bias"][None]
        mean = out.mean(-1, keepdims=True)
        var = ((out - mean) ** 2).mean(-1, keepdims=True)
        y = (out - mean) * jax.lax.rsqrt(var + ln_eps)
        y = y * p["gamma"][None] + p["beta"][None]
        h = jnp.where(y >= 0, y, neg_slope * y)
    return h


# ----------------------------------------------------------------------------
if __name__ == "__main__":
    N = 32                 # graph nodes
    E = 64                 # directed edges
    IN_C = 16
    HIDDEN_C = 32
    OUT_C = 32             # must equal HIDDEN_C (module appends LayerNorm(hidden))
    NUM_LAYERS = 3
    HEADS = 4
    C_PAD = 128            # lane-dense packing: heads * hidden == 128
    assert OUT_C == HIDDEN_C
    assert HEADS * HIDDEN_C == C_PAD

    key = jax.random.PRNGKey(0)
    k_x, k_src, k_off, k_p = jax.random.split(key, 4)

    x = jax.random.normal(k_x, (N, IN_C), jnp.float32)
    src = jax.random.randint(k_src, (E,), 0, N, jnp.int32)
    off = jax.random.randint(k_off, (E,), 1, N, jnp.int32)
    dst = (src + off) % N                           # no pre-existing self loops
    edge_index = jnp.stack([src, dst], axis=0)      # [2, E]

    params = init_params(k_p, IN_C, HIDDEN_C, OUT_C, NUM_LAYERS, HEADS)
    w_all, att_all, vec_all = pack_params(params, HEADS, HIDDEN_C, C_PAD)
    a_cnt = edge_count_matrix(edge_index, N)        # a[i, j] = #edges j -> i
    a_t3 = jnp.transpose(a_cnt)[:, :, None]         # kernel layout [j, i, 1]
    x_pad = jnp.zeros((N, C_PAD), jnp.float32).at[:, :IN_C].set(x)

    out_pad = gat_forward(a_t3, x_pad, w_all, att_all, vec_all,
                          heads=HEADS, c_true=HIDDEN_C)
    out_pad = jax.block_until_ready(out_pad)
    out = out_pad[:, :OUT_C]

    ref = gat_reference(x, a_cnt, params, HEADS)
    err = float(jnp.max(jnp.abs(out - ref)))
    assert out.shape == (N, OUT_C)
    assert bool(jnp.all(jnp.isfinite(out))), "non-finite output"
    assert err < 2e-2, f"kernel/reference mismatch, max abs err = {err}"
    print("KERNEL_OK")
</pallas_src>

<mosaic_0001>
module attributes {stable_mosaic.version = 11 : i64} {
  func.func @gat_stack_kernel(%arg0: i32, %arg1: memref<32x32x1xf32, #tpu.memory_space<vmem>>, %arg2: memref<32x128xf32, #tpu.memory_space<vmem>>, %arg3: memref<1x128x256xf32, #tpu.memory_space<vmem>>, %arg4: memref<1x128x128xf32, #tpu.memory_space<vmem>>, %arg5: memref<1x4x256xf32, #tpu.memory_space<vmem>>, %arg6: memref<32x128xf32, #tpu.memory_space<vmem>>) attributes {dimension_semantics = [#tpu.dimension_semantics<arbitrary>], iteration_bounds = array<i64: 3>, scalar_prefetch = 0 : i64, scratch_operands = 0 : i64, tpu.core_type = #tpu.core_type<tc>, window_params = [{pipeline_mode = #tpu.pipeline_mode<synchronous>, transform_indices = @transform_0, window_bounds = array<i64: 32, 32, 1>}, {pipeline_mode = #tpu.pipeline_mode<synchronous>, transform_indices = @transform_1, window_bounds = array<i64: 32, 128>}, {transform_indices = @transform_2, window_bounds = array<i64: 1, 128, 256>}, {transform_indices = @transform_3, window_bounds = array<i64: 1, 128, 128>}, {transform_indices = @transform_4, window_bounds = array<i64: 1, 4, 256>}, {pipeline_mode = #tpu.pipeline_mode<synchronous>, transform_indices = @transform_5, window_bounds = array<i64: 32, 128>}]} {
    %c0_i32 = arith.constant 0 : i32
    %0 = arith.cmpi eq, %arg0, %c0_i32 : i32
    %1 = arith.extui %0 : i1 to i32
    %c0_i32_0 = arith.constant 0 : i32
    %2 = arith.cmpi ne, %1, %c0_i32_0 : i32
    scf.if %2 {
      %c0_33 = arith.constant 0 : index
      %c0_34 = arith.constant 0 : index
      %98 = vector.load %arg2[%c0_33, %c0_34] : memref<32x128xf32, #tpu.memory_space<vmem>>, vector<32x128xf32>
      %c0_35 = arith.constant 0 : index
      %c0_36 = arith.constant 0 : index
      %99 = vector.load %arg6[%c0_35, %c0_36] : memref<32x128xf32, #tpu.memory_space<vmem>>, vector<32x128xf32>
      tpu.vector_store %arg6[%c0_35, %c0_36], %98 {strides = array<i32>} : memref<32x128xf32, #tpu.memory_space<vmem>>, vector<32x128xf32>,
    } else {
    }
    %c0 = arith.constant 0 : index
    %c0_1 = arith.constant 0 : index
    %3 = vector.load %arg6[%c0, %c0_1] : memref<32x128xf32, #tpu.memory_space<vmem>>, vector<32x128xf32>
    %c0_2 = arith.constant 0 : index
    %c0_3 = arith.constant 0 : index
    %c0_4 = arith.constant 0 : index
    %4 = vector.load %arg3[%c0_2, %c0_3, %c0_4] : memref<1x128x256xf32, #tpu.memory_space<vmem>>, vector<1x128x256xf32>
    %5 = vector.shape_cast %4 : vector<1x128x256xf32> to vector<128x256xf32>
    %c0_5 = arith.constant 0 : index
    %c0_6 = arith.constant 0 : index
    %c0_7 = arith.constant 0 : index
    %6 = vector.load %arg4[%c0_5, %c0_6, %c0_7] : memref<1x128x128xf32, #tpu.memory_space<vmem>>, vector<1x128x128xf32>
    %7 = vector.shape_cast %6 : vector<1x128x128xf32> to vector<128x128xf32>
    %c0_8 = arith.constant 0 : index
    %c0_9 = arith.constant 0 : index
    %c0_10 = arith.constant 0 : index
    %8 = vector.load %arg5[%c0_8, %c0_9, %c0_10] : memref<1x4x256xf32, #tpu.memory_space<vmem>>, vector<1x4x256xf32>
    %9 = vector.shape_cast %8 : vector<1x4x256xf32> to vector<4x256xf32>
    %10 = vector.extract_strided_slice %9 {offsets = [0, 0], sizes = [1, 256], strides = [1, 1]} : vector<4x256xf32> to vector<1x256xf32>
    %11 = vector.extract_strided_slice %9 {offsets = [1, 0], sizes = [1, 128], strides = [1, 1]} : vector<4x256xf32> to vector<1x128xf32>
    %12 = vector.extract_strided_slice %9 {offsets = [2, 0], sizes = [1, 128], strides = [1, 1]} : vector<4x256xf32> to vector<1x128xf32>
    %13 = vector.extract_strided_slice %9 {offsets = [3, 0], sizes = [1, 128], strides = [1, 1]} : vector<4x256xf32> to vector<1x128xf32>
    %cst = arith.constant dense<0.000000e+00> : vector<32x256xf32>
    %14 = tpu.matmul %3, %5, %cst {dimension_numbers = #tpu.dot_dimension_numbers<[1], [0], [0], [1], [0, 0, 1, 1], [], []>} : vector<32x128xf32>, vector<128x256xf32>, vector<32x256xf32> -> vector<32x256xf32>
    %15 = vector.broadcast %10 : vector<1x256xf32> to vector<32x256xf32>
    %16 = arith.addf %14, %15 : vector<32x256xf32>
    %17 = vector.extract_strided_slice %16 {offsets = [0, 0], sizes = [32, 128], strides = [1, 1]} : vector<32x256xf32> to vector<32x128xf32>
    %18 = vector.extract_strided_slice %16 {offsets = [0, 128], sizes = [32, 128], strides = [1, 1]} : vector<32x256xf32> to vector<32x128xf32>
    %19 = vector.shape_cast %17 : vector<32x128xf32> to vector<32x1x128xf32>
    %20 = vector.broadcast %19 : vector<32x1x128xf32> to vector<32x32x128xf32>
    %21 = vector.shape_cast %18 : vector<32x128xf32> to vector<1x32x128xf32>
    %22 = vector.broadcast %21 : vector<1x32x128xf32> to vector<32x32x128xf32>
    %23 = arith.addf %20, %22 : vector<32x32x128xf32>
    %cst_11 = arith.constant 0.000000e+00 : f32
    %24 = vector.broadcast %cst_11 : f32 to vector<32x32x128xf32>
    %25 = arith.cmpf oge, %23, %24 : vector<32x32x128xf32>
    %cst_12 = arith.constant 2.000000e-01 : f32
    %26 = vector.broadcast %cst_12 : f32 to vector<32x32x128xf32>
    %27 = arith.mulf %26, %23 : vector<32x32x128xf32>
    %28 = arith.select %25, %23, %27 : vector<32x32x128xi1>, vector<32x32x128xf32>
    %29 = vector.shape_cast %28 : vector<32x32x128xf32> to vector<1024x128xf32>
    %cst_13 = arith.constant dense<0.000000e+00> : vector<1024x128xf32>
    %30 = tpu.matmul %29, %7, %cst_13 {dimension_numbers = #tpu.dot_dimension_numbers<[1], [0], [0], [1], [0, 0, 1, 1], [], []>} : vector<1024x128xf32>, vector<128x128xf32>, vector<1024x128xf32> -> vector<1024x128xf32>
    %31 = vector.shape_cast %30 : vector<1024x128xf32> to vector<32x32x128xf32>
    %c0_14 = arith.constant 0 : index
    %c0_15 = arith.constant 0 : index
    %c0_16 = arith.constant 0 : index
    %32 = vector.load %arg1[%c0_14, %c0_15, %c0_16] : memref<32x32x1xf32, #tpu.memory_space<vmem>>, vector<32x32x1xf32>
    %cst_17 = arith.constant 0.000000e+00 : f32
    %33 = vector.broadcast %cst_17 : f32 to vector<32x32x1xf32>
    %34 = arith.cmpf ogt, %32, %33 : vector<32x32x1xf32>
    %cst_18 = arith.constant -1.000000e+30 : f32
    %35 = vector.shape_cast %34 : vector<32x32x1xi1> to vector<32x32x1xi1>
    %36 = vector.broadcast %35 : vector<32x32x1xi1> to vector<32x32x128xi1>
    %37 = vector.broadcast %cst_18 : f32 to vector<32x32x128xf32>
    %38 = arith.select %36, %31, %37 : vector<32x32x128xi1>, vector<32x32x128xf32>
    %cst_19 = arith.constant dense<0xFF800000> : vector<32x128xf32>
    %39 = vector.multi_reduction <maximumf>, %38, %cst_19 [0] : vector<32x32x128xf32> to vector<32x128xf32>
    %40 = vector.shape_cast %39 : vector<32x128xf32> to vector<1x32x128xf32>
    %41 = vector.broadcast %40 : vector<1x32x128xf32> to vector<32x32x128xf32>
    %42 = arith.subf %38, %41 : vector<32x32x128xf32>
    %43 = math.exp %42 : vector<32x32x128xf32>
    %44 = vector.broadcast %32 : vector<32x32x1xf32> to vector<32x32x128xf32>
    %45 = arith.mulf %43, %44 : vector<32x32x128xf32>
    %cst_20 = arith.constant dense<0.000000e+00> : vector<32x128xf32>
    %46 = vector.multi_reduction <add>, %45, %cst_20 [0] : vector<32x32x128xf32> to vector<32x128xf32>
    %47 = vector.shape_cast %46 : vector<32x128xf32> to vector<1x32x128xf32>
    %48 = tpu.reciprocal %47 {approx = true} : vector<1x32x128xf32> -> vector<1x32x128xf32>
    %49 = vector.broadcast %48 : vector<1x32x128xf32> to vector<32x32x128xf32>
    %50 = arith.mulf %45, %49 : vector<32x32x128xf32>
    %51 = arith.mulf %50, %20 : vector<32x32x128xf32>
    %cst_21 = arith.constant dense<0.000000e+00> : vector<32x128xf32>
    %52 = vector.multi_reduction <add>, %51, %cst_21 [0] : vector<32x32x128xf32> to vector<32x128xf32>
    %c32_i32 = arith.constant 32 : i32
    %53 = tpu.dynamic_rotate %52 by %c32_i32 dim 1 : vector<32x128xf32>, i32 -> vector<32x128xf32>
    %54 = arith.addf %52, %53 : vector<32x128xf32>
    %c64_i32 = arith.constant 64 : i32
    %55 = tpu.dynamic_rotate %52 by %c64_i32 dim 1 : vector<32x128xf32>, i32 -> vector<32x128xf32>
    %56 = arith.addf %54, %55 : vector<32x128xf32>
    %c96_i32 = arith.constant 96 : i32
    %57 = tpu.dynamic_rotate %52 by %c96_i32 dim 1 : vector<32x128xf32>, i32 -> vector<32x128xf32>
    %58 = arith.addf %56, %57 : vector<32x128xf32>
    %59 = tpu.iota {dimensions = array<i32: 1>} : vector<1x128xi32>
    %c32_i32_22 = arith.constant 32 : i32
    %60 = vector.broadcast %c32_i32_22 : i32 to vector<1x128xi32>
    %61 = arith.cmpi slt, %59, %60 : vector<1x128xi32>
    %62 = arith.extui %61 : vector<1x128xi1> to vector<1x128xi32>
    %63 = arith.sitofp %62 : vector<1x128xi32> to vector<1x128xf32>
    %cst_23 = arith.constant 2.500000e-01 : f32
    %64 = vector.broadcast %cst_23 : f32 to vector<1x128xf32>
    %65 = arith.mulf %63, %64 : vector<1x128xf32>
    %66 = vector.broadcast %65 : vector<1x128xf32> to vector<32x128xf32>
    %67 = arith.mulf %58, %66 : vector<32x128xf32>
    %68 = vector.broadcast %11 : vector<1x128xf32> to vector<32x128xf32>
    %69 = arith.addf %67, %68 : vector<32x128xf32>
    %cst_24 = arith.constant dense<0.000000e+00> : vector<32xf32>
    %70 = vector.multi_reduction <add>, %69, %cst_24 [1] : vector<32x128xf32> to vector<32xf32>
    %71 = vector.shape_cast %70 : vector<32xf32> to vector<32x1xf32>
    %cst_25 = arith.constant 3.125000e-02 : f32
    %72 = vector.broadcast %cst_25 : f32 to vector<32x1xf32>
    %73 = arith.mulf %71, %72 : vector<32x1xf32>
    %74 = vector.broadcast %73 : vector<32x1xf32> to vector<32x128xf32>
    %75 = arith.subf %69, %74 : vector<32x128xf32>
    %76 = vector.broadcast %63 : vector<1x128xf32> to vector<32x128xf32>
    %77 = arith.mulf %75, %76 : vector<32x128xf32>
    %78 = arith.mulf %77, %77 : vector<32x128xf32>
    %cst_26 = arith.constant dense<0.000000e+00> : vector<32xf32>
    %79 = vector.multi_reduction <add>, %78, %cst_26 [1] : vector<32x128xf32> to vector<32xf32>
    %80 = vector.shape_cast %79 : vector<32xf32> to vector<32x1xf32>
    %cst_27 = arith.constant 3.125000e-02 : f32
    %81 = vector.broadcast %cst_27 : f32 to vector<32x1xf32>
    %82 = arith.mulf %80, %81 : vector<32x1xf32>
    %cst_28 = arith.constant 9.99999974E-6 : f32
    %83 = vector.broadcast %cst_28 : f32 to vector<32x1xf32>
    %84 = arith.addf %82, %83 : vector<32x1xf32>
    %85 = math.rsqrt %84 : vector<32x1xf32>
    %86 = vector.broadcast %85 : vector<32x1xf32> to vector<32x128xf32>
    %87 = arith.mulf %77, %86 : vector<32x128xf32>
    %88 = vector.broadcast %12 : vector<1x128xf32> to vector<32x128xf32>
    %89 = arith.mulf %87, %88 : vector<32x128xf32>
    %90 = vector.broadcast %13 : vector<1x128xf32> to vector<32x128xf32>
    %91 = arith.addf %89, %90 : vector<32x128xf32>
    %cst_29 = arith.constant 0.000000e+00 : f32
    %92 = vector.broadcast %cst_29 : f32 to vector<32x128xf32>
    %93 = arith.cmpf oge, %91, %92 : vector<32x128xf32>
    %cst_30 = arith.constant 2.000000e-01 : f32
    %94 = vector.broadcast %cst_30 : f32 to vector<32x128xf32>
    %95 = arith.mulf %94, %91 : vector<32x128xf32>
    %96 = arith.select %93, %91, %95 : vector<32x128xi1>, vector<32x128xf32>
    %c0_31 = arith.constant 0 : index
    %c0_32 = arith.constant 0 : index
    %97 = vector.load %arg6[%c0_31, %c0_32] : memref<32x128xf32, #tpu.memory_space<vmem>>, vector<32x128xf32>
    tpu.vector_store %arg6[%c0_31, %c0_32], %96 {strides = array<i32>} : memref<32x128xf32, #tpu.memory_space<vmem>>, vector<32x128xf32>,
    return
  }
  func.func @transform_0(%arg0: i32) -> (i32, i32, i32) {
    %c0_i32 = arith.constant 0 : i32
    %c0_i32_0 = arith.constant 0 : i32
    %c0_i32_1 = arith.constant 0 : i32
    %c0_i32_2 = arith.constant 0 : i32
    return %c0_i32, %c0_i32_0, %c0_i32_1 : i32, i32, i32
  }
  func.func @transform_1(%arg0: i32) -> (i32, i32) {
    %c0_i32 = arith.constant 0 : i32
    %c0_i32_0 = arith.constant 0 : i32
    %c0_i32_1 = arith.constant 0 : i32
    return %c0_i32, %c0_i32_0 : i32, i32
  }
  func.func @transform_2(%arg0: i32) -> (i32, i32, i32) {
    %c0_i32 = arith.constant 0 : i32
    %c0_i32_0 = arith.constant 0 : i32
    %c0_i32_1 = arith.constant 0 : i32
    return %arg0, %c0_i32, %c0_i32_0 : i32, i32, i32
  }
  func.func @transform_3(%arg0: i32) -> (i32, i32, i32) {
    %c0_i32 = arith.constant 0 : i32
    %c0_i32_0 = arith.constant 0 : i32
    %c0_i32_1 = arith.constant 0 : i32
    return %arg0, %c0_i32, %c0_i32_0 : i32, i32, i32
  }
  func.func @transform_4(%arg0: i32) -> (i32, i32, i32) {
    %c0_i32 = arith.constant 0 : i32
    %c0_i32_0 = arith.constant 0 : i32
    %c0_i32_1 = arith.constant 0 : i32
    return %arg0, %c0_i32, %c0_i32_0 : i32, i32, i32
  }
  func.func @transform_5(%arg0: i32) -> (i32, i32) {
    %c0_i32 = arith.constant 0 : i32
    %c0_i32_0 = arith.constant 0 : i32
    %c0_i32_1 = arith.constant 0 : i32
    return %c0_i32, %c0_i32_0 : i32, i32
  }
}

</mosaic_0001>

<llo_original>
// kernel: tpu_custom_call.1
$region0: #{tpu_custom_call.1}
  #allocation0 [shape = 'u32[]', space=smem, size = 0x4, offset = 0x4, fixed_abs, tag = 'smem constant byte address 0x4 - core index']
  #allocation1 [shape = 'u32[144,128]{1,0:T(1,128)}', space=vmem, size = 0x12000, scoped, tag = 'internal scratch']
  %s0 = inlined_call_operand.hbm [shape: f32[32,32,1], index: 0, kind: input, shape index: {}]
  %s1 = inlined_call_operand.hbm [shape: f32[32,128], index: 1, kind: input, shape index: {}]
  %s2 = inlined_call_operand.hbm [shape: f32[3,128,256], index: 2, kind: input, shape index: {}]
  %s3 = inlined_call_operand.hbm [shape: f32[3,128,128], index: 3, kind: input, shape index: {}]
  %s4 = inlined_call_operand.hbm [shape: f32[3,4,256], index: 4, kind: input, shape index: {}]
  %s5 = inlined_call_operand.hbm [shape: f32[32,128], index: 5, kind: output, shape index: {}]
  %s6 = sld [smem:[#allocation0]]
  $region77: #{tpu_custom_call.1} parent=0
    _
  %s8 = ssub.s32 1, %s6
  %s9 = scalar_select 0, %s8, %s6
  $region1: #{tpu_custom_call.1} parent=0
    #allocation2 [shape = 'u8[524288]{0}', space=vmem, size = 0x80000, scoped, tag = 'input window, operand 0, single buffered']
    #allocation3 [shape = 's32[2]{0}', space=sflag, size = 0x8, scoped, tag = 'scoped memory for tpu_custom_call.1']
    #allocation4 [shape = 's32[2]{0}', space=sflag, size = 0x8, scoped, tag = 'scoped memory for tpu_custom_call.1']
    #allocation5 [shape = 'u8[16384]{0}', space=vmem, size = 0x4000, scoped, tag = 'input window, operand 1, single buffered']
    #allocation6 [shape = 's32[1]{0}', space=sflag, size = 0x4, scoped, tag = 'scoped memory for tpu_custom_call.1']
    #allocation7 [shape = 'u8[262144]{0}', space=vmem, size = 0x40000, scoped, tag = 'input window, operand 2']
    #allocation8 [shape = 'u8[131072]{0}', space=vmem, size = 0x20000, scoped, tag = 'input window, operand 3']
    #allocation9 [shape = 'u8[8192]{0}', space=vmem, size = 0x2000, scoped, tag = 'input window, operand 4']
    #allocation10 [shape = 'u8[16384]{0}', space=vmem, size = 0x4000, scoped, tag = 'output window, operand 0, single buffered']
    %10 = vsyncpa [#allocation3], 0
    %11 = vsyncpa [#allocation6], 0
    %12 = vsyncpa [#allocation4], 0
    loop: start=0, step=1, limit=5
    $region2: #{tpu_custom_call.1} parent=1 // loop_pre_header
      _
    $region3: #{tpu_custom_call.1} parent=1 // loop_header
      %s14 = sphi 0, %s18
      %p15 = scmp.ge.s32.totalorder %s14, 5
      %s22 = sphi 0, %s22
      %s24 = sphi 0, %s22
      %s25 = sphi 0, %s24
      %s39 = sphi 0, %s25
      %s43 = sphi 0, %s43
      %s45 = sphi 0, %s43
      %s46 = sphi 0, %s45
      %s60 = sphi 0, %s46
      %s66 = sphi 0, %s68
      %s69 = sphi 0, %s66
      %s70 = sphi 0, %s69
      %s86 = sphi 0, %s70
      %s92 = sphi 0, %s94
      %s95 = sphi 0, %s92
      %s96 = sphi 0, %s95
      %s112 = sphi 0, %s96
      %s118 = sphi 0, %s120
      %s121 = sphi 0, %s118
      %s122 = sphi 0, %s121
      %s138 = sphi 0, %s122
      %s142 = sphi 0, %s142
      %s144 = sphi 0, %s142
      %s145 = sphi 0, %s144
      %s159 = sphi 0, %s145
    $region4: #{tpu_custom_call.1} parent=1 // loop_header_branch
      %17 = sbr.rel (%p15) target = $region8
    $region5: #{tpu_custom_call.1} parent=1 // loop_body
      %s19 = ssub.s32 %s14, 1
      %s20 = ssub.s32 %s14, 2
      %s21 = sadd.s32 %s14, 1
      %s23 = sadd.s32 %s22, 1
      %p26 = scmp.eq.s32.totalorder %s14, 2
      %p27 = scmp.ne.s32.totalorder %s22, %s24
      %p28 = scmp.eq.s32.totalorder %s14, 0
      %p29 = por %p27, %p28
      %p30 = scmp.ne.s32.totalorder %s22, %s24
      %p31 = scmp.eq.s32.totalorder %s19, 2
      %p32 = por %p30, %p31
      %p33 = scmp.ne.s32.totalorder %s24, %s25
      %p34 = scmp.eq.s32.totalorder %s19, 0
      %p35 = por %p33, %p34
      %p36 = scmp.ne.s32.totalorder %s24, %s25
      %p37 = scmp.eq.s32.totalorder %s20, 2
      %p38 = por %p36, %p37
      %p40 = scmp.ne.s32.totalorder %s25, %s39
      %p41 = scmp.eq.s32.totalorder %s20, 0
      %p42 = por %p40, %p41
      %s44 = sadd.s32 %s43, 1
      %p47 = scmp.eq.s32.totalorder %s14, 2
      %p48 = scmp.ne.s32.totalorder %s43, %s45
      %p49 = scmp.eq.s32.totalorder %s14, 0
      %p50 = por %p48, %p49
      %p51 = scmp.ne.s32.totalorder %s43, %s45
      %p52 = scmp.eq.s32.totalorder %s19, 2
      %p53 = por %p51, %p52
      %p54 = scmp.ne.s32.totalorder %s45, %s46
      %p55 = scmp.eq.s32.totalorder %s19, 0
      %p56 = por %p54, %p55
      %p57 = scmp.ne.s32.totalorder %s45, %s46
      %p58 = scmp.eq.s32.totalorder %s20, 2
      %p59 = por %p57, %p58
      %p61 = scmp.ne.s32.totalorder %s46, %s60
      %p62 = scmp.eq.s32.totalorder %s20, 0
      %p63 = por %p61, %p62
      %s64 = ssub.s32 %s14, %s21
      %p65 = scmp.eq.s32.totalorder %s64, 0
      %s67 = sadd.s32 %s66, 1
      %s68 = scalar_select %p65, %s66, %s67
      %p71 = pneg %p65
      %p72 = scmp.eq.s32.totalorder %s14, 2
      %p73 = por %p71, %p72
      %p74 = scmp.ne.s32.totalorder %s66, %s69
      %p75 = scmp.eq.s32.totalorder %s14, 0
      %p76 = por %p74, %p75
      %p77 = scmp.ne.s32.totalorder %s66, %s69
      %p78 = scmp.eq.s32.totalorder %s19, 2
      %p79 = por %p77, %p78
      %p80 = scmp.ne.s32.totalorder %s69, %s70
      %p81 = scmp.eq.s32.totalorder %s19, 0
      %p82 = por %p80, %p81
      %p83 = scmp.ne.s32.totalorder %s69, %s70
      %p84 = scmp.eq.s32.totalorder %s20, 2
      %p85 = por %p83, %p84
      %p87 = scmp.ne.s32.totalorder %s70, %s86
      %p88 = scmp.eq.s32.totalorder %s20, 0
      %p89 = por %p87, %p88
      %s90 = ssub.s32 %s14, %s21
      %p91 = scmp.eq.s32.totalorder %s90, 0
      %s93 = sadd.s32 %s92, 1
      %s94 = scalar_select %p91, %s92, %s93
      %p97 = pneg %p91
      %p98 = scmp.eq.s32.totalorder %s14, 2
      %p99 = por %p97, %p98
      %p100 = scmp.ne.s32.totalorder %s92, %s95
      %p101 = scmp.eq.s32.totalorder %s14, 0
      %p102 = por %p100, %p101
      %p103 = scmp.ne.s32.totalorder %s92, %s95
      %p104 = scmp.eq.s32.totalorder %s19, 2
      %p105 = por %p103, %p104
      %p106 = scmp.ne.s32.totalorder %s95, %s96
      %p107 = scmp.eq.s32.totalorder %s19, 0
      %p108 = por %p106, %p107
      %p109 = scmp.ne.s32.totalorder %s95, %s96
      %p110 = scmp.eq.s32.totalorder %s20, 2
      %p111 = por %p109, %p110
      %p113 = scmp.ne.s32.totalorder %s96, %s112
      %p114 = scmp.eq.s32.totalorder %s20, 0
      %p115 = por %p113, %p114
      %s116 = ssub.s32 %s14, %s21
      %p117 = scmp.eq.s32.totalorder %s116, 0
      %s119 = sadd.s32 %s118, 1
      %s120 = scalar_select %p117, %s118, %s119
      %p123 = pneg %p117
      %p124 = scmp.eq.s32.totalorder %s14, 2
      %p125 = por %p123, %p124
      %p126 = scmp.ne.s32.totalorder %s118, %s121
      %p127 = scmp.eq.s32.totalorder %s14, 0
      %p128 = por %p126, %p127
      %p129 = scmp.ne.s32.totalorder %s118, %s121
      %p130 = scmp.eq.s32.totalorder %s19, 2
      %p131 = por %p129, %p130
      %p132 = scmp.ne.s32.totalorder %s121, %s122
      %p133 = scmp.eq.s32.totalorder %s19, 0
      %p134 = por %p132, %p133
      %p135 = scmp.ne.s32.totalorder %s121, %s122
      %p136 = scmp.eq.s32.totalorder %s20, 2
      %p137 = por %p135, %p136
      %p139 = scmp.ne.s32.totalorder %s122, %s138
      %p140 = scmp.eq.s32.totalorder %s20, 0
      %p141 = por %p139, %p140
      %s143 = sadd.s32 %s142, 1
      %p146 = scmp.eq.s32.totalorder %s14, 2
      %p147 = scmp.ne.s32.totalorder %s142, %s144
      %p148 = scmp.eq.s32.totalorder %s14, 0
      %p149 = por %p147, %p148
      %p150 = scmp.ne.s32.totalorder %s142, %s144
      %p151 = scmp.eq.s32.totalorder %s19, 2
      %p152 = por %p150, %p151
      %p153 = scmp.ne.s32.totalorder %s144, %s145
      %p154 = scmp.eq.s32.totalorder %s19, 0
      %p155 = por %p153, %p154
      %p156 = scmp.ne.s32.totalorder %s144, %s145
      %p157 = scmp.eq.s32.totalorder %s20, 2
      %p158 = por %p156, %p157
      %p160 = scmp.ne.s32.totalorder %s145, %s159
      %p161 = scmp.eq.s32.totalorder %s20, 0
      %p162 = por %p160, %p161
      %p163 = scmp.le.s32.totalorder 1, %s14
      %p164 = scmp.lt.s32.totalorder %s14, 4
      %p165 = pnand %p163, %p164
      %p166 = pneg %p165
      // Predicated region
      $region9: #{tpu_custom_call.1} parent=5 // pred_check
        _
      $region10: #{tpu_custom_call.1} parent=5 // pred_check_branch
        %168 = sbr.rel (%p165) target = $region12
      $region11: #{tpu_custom_call.1} parent=5 // pred_region
        %s169 = ssub.s32 %s14, 1
        // Predicated region
        $region13: #{tpu_custom_call.1} parent=11 // pred_check
          %p170 = pneg %p35
        $region14: #{tpu_custom_call.1} parent=11 // pred_check_branch
          %172 = sbr.rel (%p170) target = $region16
        $region15: #{tpu_custom_call.1} parent=11 // pred_region
          %s174 = ssub.s32 16384, 16384
          %175 = vsyncadd [#allocation3], %s174
          %s176 = sshll.u32 [#allocation2], 4
          %s177 = int_to_ptr.vmem [resolvable:$true] %s176
          %182 = dma.hbm_to_vmem [thread:$0]  %s0, 16384, %s177, [#allocation3], 128, 128, 8
        $region16: #{tpu_custom_call.1} parent=11 // pred_fallthru
          _
        // Predicated region
        $region17: #{tpu_custom_call.1} parent=11 // pred_check
          %p183 = pneg %p56
        $region18: #{tpu_custom_call.1} parent=11 // pred_check_branch
          %185 = sbr.rel (%p183) target = $region20
        $region19: #{tpu_custom_call.1} parent=11 // pred_region
          %s187 = ssub.s32 512, 512
          %188 = vsyncadd [#allocation6], %s187
          %s189 = sshll.u32 [#allocation5], 4
          %s190 = int_to_ptr.vmem [resolvable:$true] %s189
          %195 = dma.hbm_to_vmem [thread:$0]  %s1, 512, %s190, [#allocation6], 128, 128, 8
        $region20: #{tpu_custom_call.1} parent=11 // pred_fallthru
          _
      $region12: #{tpu_custom_call.1} parent=5 // pred_fallthru
        _
      %p196 = scmp.lt.s32.totalorder %s14, 3
      // Predicated region
      $region21: #{tpu_custom_call.1} parent=5 // pred_check
        %p197 = pneg %p196
      $region22: #{tpu_custom_call.1} parent=5 // pred_check_branch
        %199 = sbr.rel (%p197) target = $region24
      $region23: #{tpu_custom_call.1} parent=5 // pred_region
        // Predicated region
        $region25: #{tpu_custom_call.1} parent=23 // pred_check
          %p200 = pneg %p76
        $region26: #{tpu_custom_call.1} parent=23 // pred_check_branch
          %202 = sbr.rel (%p200) target = $region28
        $region27: #{tpu_custom_call.1} parent=23 // pred_region
          %s203 = sand.u32 %s14, 1
          %s204 = scalar_lea.sflag [#allocation3], %s203
          %s205 = sand.u32 %s66, 1
          %s206 = smul.addr %s205, 256
          %s207 = scalar_lea.vmem [#allocation7], %s206
          %s209 = ssub.s32 4096, 4096
          %210 = vsyncadd %s204, %s209
          %s211 = smul.addr %s14, 32
          %s212 = smul.addr %s211, 128
          %s213 = scalar_lea.hbm %s2, %s212
          %s214 = sshll.u32 %s207, 4
          %s215 = int_to_ptr.vmem [resolvable:$true] %s214
          %220 = dma.hbm_to_vmem [thread:$0]  %s213, 4096, %s215, %s204, 256, 256, 16
        $region28: #{tpu_custom_call.1} parent=23 // pred_fallthru
          _
        // Predicated region
        $region29: #{tpu_custom_call.1} parent=23 // pred_check
          %p221 = pneg %p102
        $region30: #{tpu_custom_call.1} parent=23 // pred_check_branch
          %223 = sbr.rel (%p221) target = $region32
        $region31: #{tpu_custom_call.1} parent=23 // pred_region
          %s224 = sand.u32 %s14, 1
          %s225 = scalar_lea.sflag [#allocation3], %s224
          %s226 = sand.u32 %s92, 1
          %s227 = smul.addr %s226, 128
          %s228 = scalar_lea.vmem [#allocation8], %s227
          %s230 = ssub.s32 2048, 2048
          %231 = vsyncadd %s225, %s230
          %s232 = smul.addr %s14, 16
          %s233 = smul.addr %s232, 128
          %s234 = scalar_lea.hbm %s3, %s233
          %s235 = sshll.u32 %s228, 4
          %s236 = int_to_ptr.vmem [resolvable:$true] %s235
          %241 = dma.hbm_to_vmem [thread:$0]  %s234, 2048, %s236, %s225, 128, 128, 8
        $region32: #{tpu_custom_call.1} parent=23 // pred_fallthru
          _
        // Predicated region
        $region33: #{tpu_custom_call.1} parent=23 // pred_check
          %p242 = pneg %p128
        $region34: #{tpu_custom_call.1} parent=23 // pred_check_branch
          %244 = sbr.rel (%p242) target = $region36
        $region35: #{tpu_custom_call.1} parent=23 // pred_region
          %s245 = sand.u32 %s14, 1
          %s246 = scalar_lea.sflag [#allocation3], %s245
          %s247 = sand.u32 %s118, 1
          %s248 = smul.addr %s247, 8
          %s249 = scalar_lea.vmem [#allocation9], %s248
          %s251 = ssub.s32 128, 128
          %252 = vsyncadd %s246, %s251
          %s253 = smul.addr %s14, 2
          %s254 = smul.addr %s253, 64
          %s255 = scalar_lea.hbm %s4, %s254
          %s257 = sshll.u32 %s249, 4
          %s258 = int_to_ptr.vmem [resolvable:$true] %s257
          %260 = dma.hbm_to_vmem [thread:$0]  %s255, 128, %s258, %s246
        $region36: #{tpu_custom_call.1} parent=23 // pred_fallthru
          _
      $region24: #{tpu_custom_call.1} parent=5 // pred_fallthru
        _
      %p261 = scmp.le.s32.totalorder 1, %s14
      %p262 = scmp.lt.s32.totalorder %s14, 4
      %p263 = pnand %p261, %p262
      %p264 = pneg %p263
      // Predicated region
      $region37: #{tpu_custom_call.1} parent=5 // pred_check
        _
      $region38: #{tpu_custom_call.1} parent=5 // pred_check_branch
        %266 = sbr.rel (%p263) target = $region40
      $region39: #{tpu_custom_call.1} parent=5 // pred_region
        %s267 = ssub.s32 %s14, 1
        // Predicated region
        $region41: #{tpu_custom_call.1} parent=39 // pred_check
          %p268 = pneg %p35
        $region42: #{tpu_custom_call.1} parent=39 // pred_check_branch
          %270 = sbr.rel (%p268) target = $region44
        $region43: #{tpu_custom_call.1} parent=39 // pred_region
          %271 = dma.done [#allocation3], 16384
        $region44: #{tpu_custom_call.1} parent=39 // pred_fallthru
          _
        // Predicated region
        $region45: #{tpu_custom_call.1} parent=39 // pred_check
          %p272 = pneg %p56
        $region46: #{tpu_custom_call.1} parent=39 // pred_check_branch
          %274 = sbr.rel (%p272) target = $region48
        $region47: #{tpu_custom_call.1} parent=39 // pred_region
          %275 = dma.done [#allocation6], 512
        $region48: #{tpu_custom_call.1} parent=39 // pred_fallthru
          _
        %s276 = sand.u32 %s19, 1
        %s277 = scalar_lea.sflag [#allocation3], %s276
        %s278 = sand.u32 %s69, 1
        %s279 = smul.addr %s278, 256
        %s280 = scalar_lea.vmem [#allocation7], %s279
        // Predicated region
        $region49: #{tpu_custom_call.1} parent=39 // pred_check
          %p281 = pneg %p82
        $region50: #{tpu_custom_call.1} parent=39 // pred_check_branch
          %283 = sbr.rel (%p281) target = $region52
        $region51: #{tpu_custom_call.1} parent=39 // pred_region
          %284 = dma.done %s277, 4096
        $region52: #{tpu_custom_call.1} parent=39 // pred_fallthru
          _
        %s285 = sand.u32 %s19, 1
        %s286 = scalar_lea.sflag [#allocation3], %s285
        %s287 = sand.u32 %s95, 1
        %s288 = smul.addr %s287, 128
        %s289 = scalar_lea.vmem [#allocation8], %s288
        // Predicated region
        $region53: #{tpu_custom_call.1} parent=39 // pred_check
          %p290 = pneg %p108
        $region54: #{tpu_custom_call.1} parent=39 // pred_check_branch
          %292 = sbr.rel (%p290) target = $region56
        $region55: #{tpu_custom_call.1} parent=39 // pred_region
          %293 = dma.done %s286, 2048
        $region56: #{tpu_custom_call.1} parent=39 // pred_fallthru
          _
        %s294 = sand.u32 %s19, 1
        %s295 = scalar_lea.sflag [#allocation3], %s294
        %s296 = sand.u32 %s121, 1
        %s297 = smul.addr %s296, 8
        %s298 = scalar_lea.vmem [#allocation9], %s297
        // Predicated region
        $region57: #{tpu_custom_call.1} parent=39 // pred_check
          %p299 = pneg %p134
        $region58: #{tpu_custom_call.1} parent=39 // pred_check_branch
          %301 = sbr.rel (%p299) target = $region60
        $region59: #{tpu_custom_call.1} parent=39 // pred_region
          %302 = dma.done %s295, 128
        $region60: #{tpu_custom_call.1} parent=39 // pred_fallthru
          _
        %p303 = pneg %p35
        %p304 = pneg %p32
        %p305 = pneg %p56
        %p306 = pneg %p53
        %s307 = sand.u32 %s19, 1
        %s308 = scalar_lea.sflag [#allocation3], %s307
        %s309 = sand.u32 %s69, 1
        %s310 = smul.addr %s309, 256
        %s311 = scalar_lea.vmem [#allocation7], %s310
        %p312 = pneg %p82
        %p313 = pneg %p79
        %s314 = sand.u32 %s19, 1
        %s315 = scalar_lea.sflag [#allocation3], %s314
        %s316 = sand.u32 %s95, 1
        %s317 = smul.addr %s316, 128
        %s318 = scalar_lea.vmem [#allocation8], %s317
        %p319 = pneg %p108
        %p320 = pneg %p105
        %s321 = sand.u32 %s19, 1
        %s322 = scalar_lea.sflag [#allocation3], %s321
        %s323 = sand.u32 %s121, 1
        %s324 = smul.addr %s323, 8
        %s325 = scalar_lea.vmem [#allocation9], %s324
        %p326 = pneg %p134
        %p327 = pneg %p131
        %p328 = pneg %p155
        %p329 = pneg %p152
        %p330 = scmp.eq.s32.totalorder %s19, 0
        // Predicated region
        $region61: #{tpu_custom_call.1} parent=39 // pred_check
          %p331 = pneg %p330
        $region62: #{tpu_custom_call.1} parent=39 // pred_check_branch
          %333 = sbr.rel (%p331) target = $region64
        $region63: #{tpu_custom_call.1} parent=39 // pred_region
          %v334 = vld [vmem:[#allocation5] sm:$0xff]
          %v335 = vld [vmem:[#allocation5 + $0x8] sm:$0xff]
          %v336 = vld [vmem:[#allocation5 + $0x10] sm:$0xff]
          %v337 = vld [vmem:[#allocation5 + $0x18] sm:$0xff]
          %338 = vst [vmem:[#allocation10] sm:$0xff] %v334
          %339 = vst [vmem:[#allocation10 + $0x8] sm:$0xff] %v335
          %340 = vst [vmem:[#allocation10 + $0x10] sm:$0xff] %v336
          %341 = vst [vmem:[#allocation10 + $0x18] sm:$0xff] %v337
        $region64: #{tpu_custom_call.1} parent=39 // pred_fallthru
          _
        %v342 = vld [vmem:[#allocation10] sm:$0xff]
        %v343 = vld [vmem:[#allocation10 + $0x8] sm:$0xff]
        %v344 = vld [vmem:[#allocation10 + $0x10] sm:$0xff]
        %v345 = vld [vmem:[#allocation10 + $0x18] sm:$0xff]
        %v346 = vld [vmem:[%s280] sm:$0xff]
        %v347 = vld [vmem:[%s280 + $0x8] sm:$0xff]
        %v348 = vld [vmem:[%s280 + $0x10] sm:$0xff]
        %v349 = vld [vmem:[%s280 + $0x18] sm:$0xff]
        %v350 = vld [vmem:[%s280 + $0x20] sm:$0xff]
        %v351 = vld [vmem:[%s280 + $0x28] sm:$0xff]
        %v352 = vld [vmem:[%s280 + $0x30] sm:$0xff]
        %v353 = vld [vmem:[%s280 + $0x38] sm:$0xff]
        %v354 = vld [vmem:[%s280 + $0x40] sm:$0xff]
        %v355 = vld [vmem:[%s280 + $0x48] sm:$0xff]
        %v356 = vld [vmem:[%s280 + $0x50] sm:$0xff]
        %v357 = vld [vmem:[%s280 + $0x58] sm:$0xff]
        %v358 = vld [vmem:[%s280 + $0x60] sm:$0xff]
        %v359 = vld [vmem:[%s280 + $0x68] sm:$0xff]
        %v360 = vld [vmem:[%s280 + $0x70] sm:$0xff]
        %v361 = vld [vmem:[%s280 + $0x78] sm:$0xff]
        %v362 = vld [vmem:[%s280 + $0x80] sm:$0xff]
        %v363 = vld [vmem:[%s280 + $0x88] sm:$0xff]
        %v364 = vld [vmem:[%s280 + $0x90] sm:$0xff]
        %v365 = vld [vmem:[%s280 + $0x98] sm:$0xff]
        %v366 = vld [vmem:[%s280 + $0xa0] sm:$0xff]
        %v367 = vld [vmem:[%s280 + $0xa8] sm:$0xff]
        %v368 = vld [vmem:[%s280 + $0xb0] sm:$0xff]
        %v369 = vld [vmem:[%s280 + $0xb8] sm:$0xff]
        %v370 = vld [vmem:[%s280 + $0xc0] sm:$0xff]
        %v371 = vld [vmem:[%s280 + $0xc8] sm:$0xff]
        %v372 = vld [vmem:[%s280 + $0xd0] sm:$0xff]
        %v373 = vld [vmem:[%s280 + $0xd8] sm:$0xff]
        %v374 = vld [vmem:[%s280 + $0xe0] sm:$0xff]
        %v375 = vld [vmem:[%s280 + $0xe8] sm:$0xff]
        %v376 = vld [vmem:[%s280 + $0xf0] sm:$0xff]
        %v377 = vld [vmem:[%s280 + $0xf8] sm:$0xff]
        %v378 = vld [vmem:[%s289] sm:$0xff]
        %v379 = vld [vmem:[%s289 + $0x8] sm:$0xff]
        %v380 = vld [vmem:[%s289 + $0x10] sm:$0xff]
        %v381 = vld [vmem:[%s289 + $0x18] sm:$0xff]
        %v382 = vld [vmem:[%s289 + $0x20] sm:$0xff]
        %v383 = vld [vmem:[%s289 + $0x28] sm:$0xff]
        %v384 = vld [vmem:[%s289 + $0x30] sm:$0xff]
        %v385 = vld [vmem:[%s289 + $0x38] sm:$0xff]
        %v386 = vld [vmem:[%s289 + $0x40] sm:$0xff]
        %v387 = vld [vmem:[%s289 + $0x48] sm:$0xff]
        %v388 = vld [vmem:[%s289 + $0x50] sm:$0xff]
        %v389 = vld [vmem:[%s289 + $0x58] sm:$0xff]
        %v390 = vld [vmem:[%s289 + $0x60] sm:$0xff]
        %v391 = vld [vmem:[%s289 + $0x68] sm:$0xff]
        %v392 = vld [vmem:[%s289 + $0x70] sm:$0xff]
        %v393 = vld [vmem:[%s289 + $0x78] sm:$0xff]
        %v394 = vld [vmem:[%s298] sm:$0xff]
        %v396 = vlaneseq
        %v397 = vshrl.u32 %v396, 7
        %v398 = vsub.s32 0, %v397
        %v399 = vrot.slane %v394, %v398
        %v400 = vlaneseq
        %v401 = vshrl.u32 %v400, 7
        %v402 = vsub.s32 4, %v401
        %v403 = vrot.slane %v394, %v402
        %v406 = vlaneseq
        %v407 = vshrl.u32 %v406, 7
        %v408 = vsub.s32 0, %v407
        %v409 = vrot.slane %v399, %v408
        %v410 = vlaneseq
        %v411 = vshrl.u32 %v410, 7
        %v412 = vsub.s32 0, %v411
        %v413 = vrot.slane %v403, %v412
        %414 = vmatprep.subr.mxu0 %v347
        %415 = vmatpush1.msra.mxu0 %v346
        %416 = vmatprep.subr.mxu0 %v349
        %417 = vmatpush1.msra.mxu0 %v348
        %418 = vmatprep.subr.mxu0 %v351
        %419 = vmatpush1.msra.mxu0 %v350
        %420 = vmatprep.subr.mxu0 %v353
        %421 = vmatpush1.msra.mxu0 %v352
        %422 = vmatprep.subr.mxu0 %v355
        %423 = vmatpush1.msra.mxu0 %v354
        %424 = vmatprep.subr.mxu0 %v357
        %425 = vmatpush1.msra.mxu0 %v356
        %426 = vmatprep.subr.mxu0 %v359
        %427 = vmatpush1.msra.mxu0 %v358
        %428 = vmatprep.subr.mxu0 %v361
        %429 = vmatpush1.msra.mxu0 %v360
        %430 = vmatprep.subr.mxu0 %v363
        %431 = vmatpush1.msra.mxu0 %v362
        %432 = vmatprep.subr.mxu0 %v365
        %433 = vmatpush1.msra.mxu0 %v364
        %434 = vmatprep.subr.mxu0 %v367
        %435 = vmatpush1.msra.mxu0 %v366
        %436 = vmatprep.subr.mxu0 %v369
        %437 = vmatpush1.msra.mxu0 %v368
        %438 = vmatprep.subr.mxu0 %v371
        %439 = vmatpush1.msra.mxu0 %v370
        %440 = vmatprep.subr.mxu0 %v373
        %441 = vmatpush1.msra.mxu0 %v372
        %442 = vmatprep.subr.mxu0 %v375
        %443 = vmatpush1.msra.mxu0 %v374
        %444 = vmatprep.subr.mxu0 %v377
        %445 = vmatpush1.msra.mxu0 %v376
        %446 = vmatprep.subr.mxu0 0.0
        %447 = vmatpush1.msra.mxu0 0.0
        %448 = vmatprep.subr.mxu0 0.0
        %449 = vmatpush1.msra.mxu0 0.0
        %450 = vmatprep.subr.mxu0 0.0
        %451 = vmatpush1.msra.mxu0 0.0
        %452 = vmatprep.subr.mxu0 0.0
        %453 = vmatpush1.msra.mxu0 0.0
        %454 = vmatprep.subr.mxu0 0.0
        %455 = vmatpush1.msra.mxu0 0.0
        %456 = vmatprep.subr.mxu0 0.0
        %457 = vmatpush1.msra.mxu0 0.0
        %458 = vmatprep.subr.mxu0 0.0
        %459 = vmatpush1.msra.mxu0 0.0
        %460 = vmatprep.subr.mxu0 0.0
        %461 = vmatpush1.msra.mxu0 0.0
        %462 = vmatprep.subr.mxu0 0.0
        %463 = vmatpush1.msra.mxu0 0.0
        %464 = vmatprep.subr.mxu0 0.0
        %465 = vmatpush1.msra.mxu0 0.0
        %466 = vmatprep.subr.mxu0 0.0
        %467 = vmatpush1.msra.mxu0 0.0
        %468 = vmatprep.subr.mxu0 0.0
        %469 = vmatpush1.msra.mxu0 0.0
        %470 = vmatprep.subr.mxu0 0.0
        %471 = vmatpush1.msra.mxu0 0.0
        %472 = vmatprep.subr.mxu0 0.0
        %473 = vmatpush1.msra.mxu0 0.0
        %474 = vmatprep.subr.mxu0 0.0
        %475 = vmatpush1.msra.mxu0 0.0
        %476 = vmatprep.subr.mxu0 0.0
        %477 = vmatpush1.msra.mxu0 0.0
        %478 = vmatprep.mubr.f32.mxu0 0.0
        %479 = vmatmul.mubr.f32.gmra.mrb[0].mxu0 %v342
        %v480 = vpop.f32.mrb[0].mxu0
        %v481 = vadd.f32 %v409, %v480
        %v482 = vpop.f32.mrb[0].mxu0
        %v483 = vadd.f32 %v413, %v482
        %484 = vmatprep.mubr.f32.mxu0 0.0
        %485 = vmatmul.mubr.f32.gmra.mrb[0].mxu0 %v343
        %v486 = vpop.f32.mrb[0].mxu0
        %v487 = vadd.f32 %v409, %v486
        %v488 = vpop.f32.mrb[0].mxu0
        %v489 = vadd.f32 %v413, %v488
        %490 = vmatprep.mubr.f32.mxu0 0.0
        %491 = vmatmul.mubr.f32.gmra.mrb[0].mxu0 %v344
        %v492 = vpop.f32.mrb[0].mxu0
        %v493 = vadd.f32 %v409, %v492
        %v494 = vpop.f32.mrb[0].mxu0
        %v495 = vadd.f32 %v413, %v494
        %496 = vmatprep.mubr.f32.mxu0 0.0
        %497 = vmatmul.mubr.f32.gmra.mrb[0].mxu0 %v345
        %v498 = vpop.f32.mrb[0].mxu0
        %v499 = vadd.f32 %v409, %v498
        %v500 = vpop.f32.mrb[0].mxu0
        %v501 = vadd.f32 %v413, %v500
        %502 = vdwg.mxu0
        %v507 = vcombine.high %v481, %v481
        %v509 = vunpack.c.l.s4 1966171168
        %v510 = vunpack.c.0.s8 %v509
        %v511 = vlaneseq
        %v512 = vshrl.u32 %v511, 7
        %v513 = vsub.s32 %v510, %v512
        %v514 = vrot.slane %v481, %v513
        %v516 = vunpack.c.l.s4 1966171168
        %v517 = vunpack.c.0.s8 %v516
        %v518 = vlaneseq
        %v519 = vshrl.u32 %v518, 7
        %v520 = vsub.s32 %v517, %v519
        %v521 = vrot.slane %v507, %v520
        %v522 = vcombine.high %v514, %v514
        %v523 = vcombine.high %v521, %v521
        %v525 = vunpack.c.l.s4 1966171168
        %v526 = vunpack.c.0.s8 %v525
        %v527 = vlaneseq
        %v528 = vshrl.u32 %v527, 7
        %v529 = vsub.s32 %v526, %v528
        %v530 = vrot.slane %v514, %v529
        %v532 = vunpack.c.l.s4 1966171168
        %v533 = vunpack.c.0.s8 %v532
        %v534 = vlaneseq
        %v535 = vshrl.u32 %v534, 7
        %v536 = vsub.s32 %v533, %v535
        %v537 = vrot.slane %v521, %v536
        %v539 = vunpack.c.l.s4 1966171168
        %v540 = vunpack.c.0.s8 %v539
        %v541 = vlaneseq
        %v542 = vshrl.u32 %v541, 7
        %v543 = vsub.s32 %v540, %v542
        %v544 = vrot.slane %v522, %v543
        %v546 = vunpack.c.l.s4 1966171168
        %v547 = vunpack.c.0.s8 %v546
        %v548 = vlaneseq
        %v549 = vshrl.u32 %v548, 7
        %v550 = vsub.s32 %v547, %v549
        %v551 = vrot.slane %v523, %v550
        %v552 = vcombine.high %v530, %v530
        %v553 = vcombine.high %v537, %v537
        %v554 = vcombine.high %v544, %v544
        %v555 = vcombine.high %v551, %v551
        %v556 = vcombine.high %v487, %v487
        %v558 = vunpack.c.l.s4 1966171168
        %v559 = vunpack.c.0.s8 %v558
        %v560 = vlaneseq
        %v561 = vshrl.u32 %v560, 7
        %v562 = vsub.s32 %v559, %v561
        %v563 = vrot.slane %v487, %v562
        %v565 = vunpack.c.l.s4 1966171168
        %v566 = vunpack.c.0.s8 %v565
        %v567 = vlaneseq
        %v568 = vshrl.u32 %v567, 7
        %v569 = vsub.s32 %v566, %v568
        %v570 = vrot.slane %v556, %v569
        %v571 = vcombine.high %v563, %v563
        %v572 = vcombine.high %v570, %v570
        %v574 = vunpack.c.l.s4 1966171168
        %v575 = vunpack.c.0.s8 %v574
        %v576 = vlaneseq
        %v577 = vshrl.u32 %v576, 7
        %v578 = vsub.s32 %v575, %v577
        %v579 = vrot.slane %v563, %v578
        %v581 = vunpack.c.l.s4 1966171168
        %v582 = vunpack.c.0.s8 %v581
        %v583 = vlaneseq
        %v584 = vshrl.u32 %v583, 7
        %v585 = vsub.s32 %v582, %v584
        %v586 = vrot.slane %v570, %v585
        %v588 = vunpack.c.l.s4 1966171168
        %v589 = vunpack.c.0.s8 %v588
        %v590 = vlaneseq
        %v591 = vshrl.u32 %v590, 7
        %v592 = vsub.s32 %v589, %v591
        %v593 = vrot.slane %v571, %v592
        %v595 = vunpack.c.l.s4 1966171168
        %v596 = vunpack.c.0.s8 %v595
        %v597 = vlaneseq
        %v598 = vshrl.u32 %v597, 7
        %v599 = vsub.s32 %v596, %v598
        %v600 = vrot.slane %v572, %v599
        %v601 = vcombine.high %v579, %v579
        %v602 = vcombine.high %v586, %v586
        %v603 = vcombine.high %v593, %v593
        %v604 = vcombine.high %v600, %v600
        %v605 = vcombine.high %v493, %v493
        %v607 = vunpack.c.l.s4 1966171168
        %v608 = vunpack.c.0.s8 %v607
        %v609 = vlaneseq
        %v610 = vshrl.u32 %v609, 7
        %v611 = vsub.s32 %v608, %v610
        %v612 = vrot.slane %v493, %v611
        %v614 = vunpack.c.l.s4 1966171168
        %v615 = vunpack.c.0.s8 %v614
        %v616 = vlaneseq
        %v617 = vshrl.u32 %v616, 7
        %v618 = vsub.s32 %v615, %v617
        %v619 = vrot.slane %v605, %v618
        %v620 = vcombine.high %v612, %v612
        %v621 = vcombine.high %v619, %v619
        %v623 = vunpack.c.l.s4 1966171168
        %v624 = vunpack.c.0.s8 %v623
        %v625 = vlaneseq
        %v626 = vshrl.u32 %v625, 7
        %v627 = vsub.s32 %v624, %v626
        %v628 = vrot.slane %v612, %v627
        %v630 = vunpack.c.l.s4 1966171168
        %v631 = vunpack.c.0.s8 %v630
        %v632 = vlaneseq
        %v633 = vshrl.u32 %v632, 7
        %v634 = vsub.s32 %v631, %v633
        %v635 = vrot.slane %v619, %v634
        %v637 = vunpack.c.l.s4 1966171168
        %v638 = vunpack.c.0.s8 %v637
        %v639 = vlaneseq
        %v640 = vshrl.u32 %v639, 7
        %v641 = vsub.s32 %v638, %v640
        %v642 = vrot.slane %v620, %v641
        %v644 = vunpack.c.l.s4 1966171168
        %v645 = vunpack.c.0.s8 %v644
        %v646 = vlaneseq
        %v647 = vshrl.u32 %v646, 7
        %v648 = vsub.s32 %v645, %v647
        %v649 = vrot.slane %v621, %v648
        %v650 = vcombine.high %v628, %v628
        %v651 = vcombine.high %v635, %v635
        %v652 = vcombine.high %v642, %v642
        %v653 = vcombine.high %v649, %v649
        %v654 = vcombine.high %v499, %v499
        %v656 = vunpack.c.l.s4 1966171168
        %v657 = vunpack.c.0.s8 %v656
        %v658 = vlaneseq
        %v659 = vshrl.u32 %v658, 7
        %v660 = vsub.s32 %v657, %v659
        %v661 = vrot.slane %v499, %v660
        %v663 = vunpack.c.l.s4 1966171168
        %v664 = vunpack.c.0.s8 %v663
        %v665 = vlaneseq
        %v666 = vshrl.u32 %v665, 7
        %v667 = vsub.s32 %v664, %v666
        %v668 = vrot.slane %v654, %v667
        %v669 = vcombine.high %v661, %v661
        %v670 = vcombine.high %v668, %v668
        %v672 = vunpack.c.l.s4 1966171168
        %v673 = vunpack.c.0.s8 %v672
        %v674 = vlaneseq
        %v675 = vshrl.u32 %v674, 7
        %v676 = vsub.s32 %v673, %v675
        %v677 = vrot.slane %v661, %v676
        %v679 = vunpack.c.l.s4 1966171168
        %v680 = vunpack.c.0.s8 %v679
        %v681 = vlaneseq
        %v682 = vshrl.u32 %v681, 7
        %v683 = vsub.s32 %v680, %v682
        %v684 = vrot.slane %v668, %v683
        %v686 = vunpack.c.l.s4 1966171168
        %v687 = vunpack.c.0.s8 %v686
        %v688 = vlaneseq
        %v689 = vshrl.u32 %v688, 7
        %v690 = vsub.s32 %v687, %v689
        %v691 = vrot.slane %v669, %v690
        %v693 = vunpack.c.l.s4 1966171168
        %v694 = vunpack.c.0.s8 %v693
        %v695 = vlaneseq
        %v696 = vshrl.u32 %v695, 7
        %v697 = vsub.s32 %v694, %v696
        %v698 = vrot.slane %v670, %v697
        %v699 = vcombine.high %v677, %v677
        %v700 = vcombine.high %v684, %v684
        %v701 = vcombine.high %v691, %v691
        %v702 = vcombine.high %v698, %v698
        %v703 = vlaneseq
        %v704 = vshrl.u32 %v703, 7
        %v705 = vsub.s32 0, %v704
        %v706 = vrot.slane %v530, %v705
        %v707 = vlaneseq
        %v708 = vshrl.u32 %v707, 7
        %v709 = vsub.s32 0, %v708
        %v710 = vrot.slane %v544, %v709
        %v711 = vlaneseq
        %v712 = vshrl.u32 %v711, 7
        %v713 = vsub.s32 0, %v712
        %v714 = vrot.slane %v552, %v713
        %v715 = vlaneseq
        %v716 = vshrl.u32 %v715, 7
        %v717 = vsub.s32 0, %v716
        %v718 = vrot.slane %v554, %v717
        %v719 = vlaneseq
        %v720 = vshrl.u32 %v719, 7
        %v721 = vsub.s32 0, %v720
        %v722 = vrot.slane %v537, %v721
        %v723 = vlaneseq
        %v724 = vshrl.u32 %v723, 7
        %v725 = vsub.s32 0, %v724
        %v726 = vrot.slane %v551, %v725
        %v727 = vlaneseq
        %v728 = vshrl.u32 %v727, 7
        %v729 = vsub.s32 0, %v728
        %v730 = vrot.slane %v553, %v729
        %v731 = vlaneseq
        %v732 = vshrl.u32 %v731, 7
        %v733 = vsub.s32 0, %v732
        %v734 = vrot.slane %v555, %v733
        %v735 = vlaneseq
        %v736 = vshrl.u32 %v735, 7
        %v737 = vsub.s32 0, %v736
        %v738 = vrot.slane %v579, %v737
        %v739 = vlaneseq
        %v740 = vshrl.u32 %v739, 7
        %v741 = vsub.s32 0, %v740
        %v742 = vrot.slane %v593, %v741
        %v743 = vlaneseq
        %v744 = vshrl.u32 %v743, 7
        %v745 = vsub.s32 0, %v744
        %v746 = vrot.slane %v601, %v745
        %v747 = vlaneseq
        %v748 = vshrl.u32 %v747, 7
        %v749 = vsub.s32 0, %v748
        %v750 = vrot.slane %v603, %v749
        %v751 = vlaneseq
        %v752 = vshrl.u32 %v751, 7
        %v753 = vsub.s32 0, %v752
        %v754 = vrot.slane %v586, %v753
        %v755 = vlaneseq
        %v756 = vshrl.u32 %v755, 7
        %v757 = vsub.s32 0, %v756
        %v758 = vrot.slane %v600, %v757
        %v759 = vlaneseq
        %v760 = vshrl.u32 %v759, 7
        %v761 = vsub.s32 0, %v760
        %v762 = vrot.slane %v602, %v761
        %v763 = vlaneseq
        %v764 = vshrl.u32 %v763, 7
        %v765 = vsub.s32 0, %v764
        %v766 = vrot.slane %v604, %v765
        %v767 = vlaneseq
        %v768 = vshrl.u32 %v767, 7
        %v769 = vsub.s32 0, %v768
        %v770 = vrot.slane %v628, %v769
        %v771 = vlaneseq
        %v772 = vshrl.u32 %v771, 7
        %v773 = vsub.s32 0, %v772
        %v774 = vrot.slane %v642, %v773
        %v775 = vlaneseq
        %v776 = vshrl.u32 %v775, 7
        %v777 = vsub.s32 0, %v776
        %v778 = vrot.slane %v650, %v777
        %v779 = vlaneseq
        %v780 = vshrl.u32 %v779, 7
        %v781 = vsub.s32 0, %v780
        %v782 = vrot.slane %v652, %v781
        %v783 = vlaneseq
        %v784 = vshrl.u32 %v783, 7
        %v785 = vsub.s32 0, %v784
        %v786 = vrot.slane %v635, %v785
        %v787 = vlaneseq
        %v788 = vshrl.u32 %v787, 7
        %v789 = vsub.s32 0, %v788
        %v790 = vrot.slane %v649, %v789
        %v791 = vlaneseq
        %v792 = vshrl.u32 %v791, 7
        %v793 = vsub.s32 0, %v792
        %v794 = vrot.slane %v651, %v793
        %v795 = vlaneseq
        %v796 = vshrl.u32 %v795, 7
        %v797 = vsub.s32 0, %v796
        %v798 = vrot.slane %v653, %v797
        %v799 = vlaneseq
        %v800 = vshrl.u32 %v799, 7
        %v801 = vsub.s32 0, %v800
        %v802 = vrot.slane %v677, %v801
        %v803 = vlaneseq
        %v804 = vshrl.u32 %v803, 7
        %v805 = vsub.s32 0, %v804
        %v806 = vrot.slane %v691, %v805
        %v807 = vlaneseq
        %v808 = vshrl.u32 %v807, 7
        %v809 = vsub.s32 0, %v808
        %v810 = vrot.slane %v699, %v809
        %v811 = vlaneseq
        %v812 = vshrl.u32 %v811, 7
        %v813 = vsub.s32 0, %v812
        %v814 = vrot.slane %v701, %v813
        %v815 = vlaneseq
        %v816 = vshrl.u32 %v815, 7
        %v817 = vsub.s32 0, %v816
        %v818 = vrot.slane %v684, %v817
        %v819 = vlaneseq
        %v820 = vshrl.u32 %v819, 7
        %v821 = vsub.s32 0, %v820
        %v822 = vrot.slane %v698, %v821
        %v823 = vlaneseq
        %v824 = vshrl.u32 %v823, 7
        %v825 = vsub.s32 0, %v824
        %v826 = vrot.slane %v700, %v825
        %v827 = vlaneseq
        %v828 = vshrl.u32 %v827, 7
        %v829 = vsub.s32 0, %v828
        %v830 = vrot.slane %v702, %v829
        %v863 = vadd.f32 %v706, %v483
        %v864 = vadd.f32 %v706, %v489
        %v865 = vadd.f32 %v706, %v495
        %v866 = vadd.f32 %v706, %v501
        %v867 = vadd.f32 %v710, %v483
        %v868 = vadd.f32 %v710, %v489
        %v869 = vadd.f32 %v710, %v495
        %v870 = vadd.f32 %v710, %v501
        %v871 = vadd.f32 %v714, %v483
        %v872 = vadd.f32 %v714, %v489
        %v873 = vadd.f32 %v714, %v495
        %v874 = vadd.f32 %v714, %v501
        %v875 = vadd.f32 %v718, %v483
        %v876 = vadd.f32 %v718, %v489
        %v877 = vadd.f32 %v718, %v495
        %v878 = vadd.f32 %v718, %v501
        %v879 = vadd.f32 %v722, %v483
        %v880 = vadd.f32 %v722, %v489
        %v881 = vadd.f32 %v722, %v495
        %v882 = vadd.f32 %v722, %v501
        %v883 = vadd.f32 %v726, %v483
        %v884 = vadd.f32 %v726, %v489
        %v885 = vadd.f32 %v726, %v495
        %v886 = vadd.f32 %v726, %v501
        %v887 = vadd.f32 %v730, %v483
        %v888 = vadd.f32 %v730, %v489
        %v889 = vadd.f32 %v730, %v495
        %v890 = vadd.f32 %v730, %v501
        %v891 = vadd.f32 %v734, %v483
        %v892 = vadd.f32 %v734, %v489
        %v893 = vadd.f32 %v734, %v495
        %v894 = vadd.f32 %v734, %v501
        %v895 = vadd.f32 %v738, %v483
        %v896 = vadd.f32 %v738, %v489
        %v897 = vadd.f32 %v738, %v495
        %v898 = vadd.f32 %v738, %v501
        %v899 = vadd.f32 %v742, %v483
        %v900 = vadd.f32 %v742, %v489
        %v901 = vadd.f32 %v742, %v495
        %v902 = vadd.f32 %v742, %v501
        %v903 = vadd.f32 %v746, %v483
        %v904 = vadd.f32 %v746, %v489
        %v905 = vadd.f32 %v746, %v495
        %v906 = vadd.f32 %v746, %v501
        %v907 = vadd.f32 %v750, %v483
        %v908 = vadd.f32 %v750, %v489
        %v909 = vadd.f32 %v750, %v495
        %v910 = vadd.f32 %v750, %v501
        %v911 = vadd.f32 %v754, %v483
        %v912 = vadd.f32 %v754, %v489
        %v913 = vadd.f32 %v754, %v495
        %v914 = vadd.f32 %v754, %v501
        %v915 = vadd.f32 %v758, %v483
        %v916 = vadd.f32 %v758, %v489
        %v917 = vadd.f32 %v758, %v495
        %v918 = vadd.f32 %v758, %v501
        %v919 = vadd.f32 %v762, %v483
        %v920 = vadd.f32 %v762, %v489
        %v921 = vadd.f32 %v762, %v495
        %v922 = vadd.f32 %v762, %v501
        %v923 = vadd.f32 %v766, %v483
        %v924 = vadd.f32 %v766, %v489
        %v925 = vadd.f32 %v766, %v495
        %v926 = vadd.f32 %v766, %v501
        %v927 = vadd.f32 %v770, %v483
        %v928 = vadd.f32 %v770, %v489
        %v929 = vadd.f32 %v770, %v495
        %v930 = vadd.f32 %v770, %v501
        %v931 = vadd.f32 %v774, %v483
        %v932 = vadd.f32 %v774, %v489
        %v933 = vadd.f32 %v774, %v495
        %v934 = vadd.f32 %v774, %v501
        %v935 = vadd.f32 %v778, %v483
        %v936 = vadd.f32 %v778, %v489
        %v937 = vadd.f32 %v778, %v495
        %v938 = vadd.f32 %v778, %v501
        %v939 = vadd.f32 %v782, %v483
        %v940 = vadd.f32 %v782, %v489
        %v941 = vadd.f32 %v782, %v495
        %v942 = vadd.f32 %v782, %v501
        %v943 = vadd.f32 %v786, %v483
        %v944 = vadd.f32 %v786, %v489
        %v945 = vadd.f32 %v786, %v495
        %v946 = vadd.f32 %v786, %v501
        %v947 = vadd.f32 %v790, %v483
        %v948 = vadd.f32 %v790, %v489
        %v949 = vadd.f32 %v790, %v495
        %v950 = vadd.f32 %v790, %v501
        %v951 = vadd.f32 %v794, %v483
        %v952 = vadd.f32 %v794, %v489
        %v953 = vadd.f32 %v794, %v495
        %v954 = vadd.f32 %v794, %v501
        %v955 = vadd.f32 %v798, %v483
        %v956 = vadd.f32 %v798, %v489
        %v957 = vadd.f32 %v798, %v495
        %v958 = vadd.f32 %v798, %v501
        %v959 = vadd.f32 %v802, %v483
        %v960 = vadd.f32 %v802, %v489
        %v961 = vadd.f32 %v802, %v495
        %v962 = vadd.f32 %v802, %v501
        %v963 = vadd.f32 %v806, %v483
        %v964 = vadd.f32 %v806, %v489
        %v965 = vadd.f32 %v806, %v495
        %v966 = vadd.f32 %v806, %v501
        %v967 = vadd.f32 %v810, %v483
        %v968 = vadd.f32 %v810, %v489
        %v969 = vadd.f32 %v810, %v495
        %v970 = vadd.f32 %v810, %v501
        %v971 = vadd.f32 %v814, %v483
        %v972 = vadd.f32 %v814, %v489
        %v973 = vadd.f32 %v814, %v495
        %v974 = vadd.f32 %v814, %v501
        %v975 = vadd.f32 %v818, %v483
        %v976 = vadd.f32 %v818, %v489
        %v977 = vadd.f32 %v818, %v495
        %v978 = vadd.f32 %v818, %v501
        %v979 = vadd.f32 %v822, %v483
        %v980 = vadd.f32 %v822, %v489
        %v981 = vadd.f32 %v822, %v495
        %v982 = vadd.f32 %v822, %v501
        %v983 = vadd.f32 %v826, %v483
        %v984 = vadd.f32 %v826, %v489
        %v985 = vadd.f32 %v826, %v495
        %v986 = vadd.f32 %v826, %v501
        %v987 = vadd.f32 %v830, %v483
        %v988 = vadd.f32 %v830, %v489
        %v989 = vadd.f32 %v830, %v495
        %v990 = vadd.f32 %v830, %v501
        %vm991 = vcmp.ge.f32.partialorder %v863, 0.0
        %vm992 = vcmp.ge.f32.partialorder %v864, 0.0
        %vm993 = vcmp.ge.f32.partialorder %v865, 0.0
        %vm994 = vcmp.ge.f32.partialorder %v866, 0.0
        %vm995 = vcmp.ge.f32.partialorder %v867, 0.0
        %vm996 = vcmp.ge.f32.partialorder %v868, 0.0
        %vm997 = vcmp.ge.f32.partialorder %v869, 0.0
        %vm998 = vcmp.ge.f32.partialorder %v870, 0.0
        %vm999 = vcmp.ge.f32.partialorder %v871, 0.0
        %vm1000 = vcmp.ge.f32.partialorder %v872, 0.0
        %vm1001 = vcmp.ge.f32.partialorder %v873, 0.0
        %vm1002 = vcmp.ge.f32.partialorder %v874, 0.0
        %vm1003 = vcmp.ge.f32.partialorder %v875, 0.0
        %vm1004 = vcmp.ge.f32.partialorder %v876, 0.0
        %vm1005 = vcmp.ge.f32.partialorder %v877, 0.0
        %vm1006 = vcmp.ge.f32.partialorder %v878, 0.0
        %vm1007 = vcmp.ge.f32.partialorder %v879, 0.0
        %vm1008 = vcmp.ge.f32.partialorder %v880, 0.0
        %vm1009 = vcmp.ge.f32.partialorder %v881, 0.0
        %vm1010 = vcmp.ge.f32.partialorder %v882, 0.0
        %vm1011 = vcmp.ge.f32.partialorder %v883, 0.0
        %vm1012 = vcmp.ge.f32.partialorder %v884, 0.0
        %vm1013 = vcmp.ge.f32.partialorder %v885, 0.0
        %vm1014 = vcmp.ge.f32.partialorder %v886, 0.0
        %vm1015 = vcmp.ge.f32.partialorder %v887, 0.0
        %vm1016 = vcmp.ge.f32.partialorder %v888, 0.0
        %vm1017 = vcmp.ge.f32.partialorder %v889, 0.0
        %vm1018 = vcmp.ge.f32.partialorder %v890, 0.0
        %vm1019 = vcmp.ge.f32.partialorder %v891, 0.0
        %vm1020 = vcmp.ge.f32.partialorder %v892, 0.0
        %vm1021 = vcmp.ge.f32.partialorder %v893, 0.0
        %vm1022 = vcmp.ge.f32.partialorder %v894, 0.0
        %vm1023 = vcmp.ge.f32.partialorder %v895, 0.0
        %vm1024 = vcmp.ge.f32.partialorder %v896, 0.0
        %vm1025 = vcmp.ge.f32.partialorder %v897, 0.0
        %vm1026 = vcmp.ge.f32.partialorder %v898, 0.0
        %vm1027 = vcmp.ge.f32.partialorder %v899, 0.0
        %vm1028 = vcmp.ge.f32.partialorder %v900, 0.0
        %vm1029 = vcmp.ge.f32.partialorder %v901, 0.0
        %vm1030 = vcmp.ge.f32.partialorder %v902, 0.0
        %vm1031 = vcmp.ge.f32.partialorder %v903, 0.0
        %vm1032 = vcmp.ge.f32.partialorder %v904, 0.0
        %vm1033 = vcmp.ge.f32.partialorder %v905, 0.0
        %vm1034 = vcmp.ge.f32.partialorder %v906, 0.0
        %vm1035 = vcmp.ge.f32.partialorder %v907, 0.0
        %vm1036 = vcmp.ge.f32.partialorder %v908, 0.0
        %vm1037 = vcmp.ge.f32.partialorder %v909, 0.0
        %vm1038 = vcmp.ge.f32.partialorder %v910, 0.0
        %vm1039 = vcmp.ge.f32.partialorder %v911, 0.0
        %vm1040 = vcmp.ge.f32.partialorder %v912, 0.0
        %vm1041 = vcmp.ge.f32.partialorder %v913, 0.0
        %vm1042 = vcmp.ge.f32.partialorder %v914, 0.0
        %vm1043 = vcmp.ge.f32.partialorder %v915, 0.0
        %vm1044 = vcmp.ge.f32.partialorder %v916, 0.0
        %vm1045 = vcmp.ge.f32.partialorder %v917, 0.0
        %vm1046 = vcmp.ge.f32.partialorder %v918, 0.0
        %vm1047 = vcmp.ge.f32.partialorder %v919, 0.0
        %vm1048 = vcmp.ge.f32.partialorder %v920, 0.0
        %vm1049 = vcmp.ge.f32.partialorder %v921, 0.0
        %vm1050 = vcmp.ge.f32.partialorder %v922, 0.0
        %vm1051 = vcmp.ge.f32.partialorder %v923, 0.0
        %vm1052 = vcmp.ge.f32.partialorder %v924, 0.0
        %vm1053 = vcmp.ge.f32.partialorder %v925, 0.0
        %vm1054 = vcmp.ge.f32.partialorder %v926, 0.0
        %vm1055 = vcmp.ge.f32.partialorder %v927, 0.0
        %vm1056 = vcmp.ge.f32.partialorder %v928, 0.0
        %vm1057 = vcmp.ge.f32.partialorder %v929, 0.0
        %vm1058 = vcmp.ge.f32.partialorder %v930, 0.0
        %vm1059 = vcmp.ge.f32.partialorder %v931, 0.0
        %vm1060 = vcmp.ge.f32.partialorder %v932, 0.0
        %vm1061 = vcmp.ge.f32.partialorder %v933, 0.0
        %vm1062 = vcmp.ge.f32.partialorder %v934, 0.0
        %vm1063 = vcmp.ge.f32.partialorder %v935, 0.0
        %vm1064 = vcmp.ge.f32.partialorder %v936, 0.0
        %vm1065 = vcmp.ge.f32.partialorder %v937, 0.0
        %vm1066 = vcmp.ge.f32.partialorder %v938, 0.0
        %vm1067 = vcmp.ge.f32.partialorder %v939, 0.0
        %vm1068 = vcmp.ge.f32.partialorder %v940, 0.0
        %vm1069 = vcmp.ge.f32.partialorder %v941, 0.0
        %vm1070 = vcmp.ge.f32.partialorder %v942, 0.0
        %vm1071 = vcmp.ge.f32.partialorder %v943, 0.0
        %vm1072 = vcmp.ge.f32.partialorder %v944, 0.0
        %vm1073 = vcmp.ge.f32.partialorder %v945, 0.0
        %vm1074 = vcmp.ge.f32.partialorder %v946, 0.0
        %vm1075 = vcmp.ge.f32.partialorder %v947, 0.0
        %vm1076 = vcmp.ge.f32.partialorder %v948, 0.0
        %vm1077 = vcmp.ge.f32.partialorder %v949, 0.0
        %vm1078 = vcmp.ge.f32.partialorder %v950, 0.0
        %vm1079 = vcmp.ge.f32.partialorder %v951, 0.0
        %vm1080 = vcmp.ge.f32.partialorder %v952, 0.0
        %vm1081 = vcmp.ge.f32.partialorder %v953, 0.0
        %vm1082 = vcmp.ge.f32.partialorder %v954, 0.0
        %vm1083 = vcmp.ge.f32.partialorder %v955, 0.0
        %vm1084 = vcmp.ge.f32.partialorder %v956, 0.0
        %vm1085 = vcmp.ge.f32.partialorder %v957, 0.0
        %vm1086 = vcmp.ge.f32.partialorder %v958, 0.0
        %vm1087 = vcmp.ge.f32.partialorder %v959, 0.0
        %vm1088 = vcmp.ge.f32.partialorder %v960, 0.0
        %vm1089 = vcmp.ge.f32.partialorder %v961, 0.0
        %vm1090 = vcmp.ge.f32.partialorder %v962, 0.0
        %vm1091 = vcmp.ge.f32.partialorder %v963, 0.0
        %vm1092 = vcmp.ge.f32.partialorder %v964, 0.0
        %vm1093 = vcmp.ge.f32.partialorder %v965, 0.0
        %vm1094 = vcmp.ge.f32.partialorder %v966, 0.0
        %vm1095 = vcmp.ge.f32.partialorder %v967, 0.0
        %vm1096 = vcmp.ge.f32.partialorder %v968, 0.0
        %vm1097 = vcmp.ge.f32.partialorder %v969, 0.0
        %vm1098 = vcmp.ge.f32.partialorder %v970, 0.0
        %vm1099 = vcmp.ge.f32.partialorder %v971, 0.0
        %vm1100 = vcmp.ge.f32.partialorder %v972, 0.0
        %vm1101 = vcmp.ge.f32.partialorder %v973, 0.0
        %vm1102 = vcmp.ge.f32.partialorder %v974, 0.0
        %vm1103 = vcmp.ge.f32.partialorder %v975, 0.0
        %vm1104 = vcmp.ge.f32.partialorder %v976, 0.0
        %vm1105 = vcmp.ge.f32.partialorder %v977, 0.0
        %vm1106 = vcmp.ge.f32.partialorder %v978, 0.0
        %vm1107 = vcmp.ge.f32.partialorder %v979, 0.0
        %vm1108 = vcmp.ge.f32.partialorder %v980, 0.0
        %vm1109 = vcmp.ge.f32.partialorder %v981, 0.0
        %vm1110 = vcmp.ge.f32.partialorder %v982, 0.0
        %vm1111 = vcmp.ge.f32.partialorder %v983, 0.0
        %vm1112 = vcmp.ge.f32.partialorder %v984, 0.0
        %vm1113 = vcmp.ge.f32.partialorder %v985, 0.0
        %vm1114 = vcmp.ge.f32.partialorder %v986, 0.0
        %vm1115 = vcmp.ge.f32.partialorder %v987, 0.0
        %vm1116 = vcmp.ge.f32.partialorder %v988, 0.0
        %vm1117 = vcmp.ge.f32.partialorder %v989, 0.0
        %vm1118 = vcmp.ge.f32.partialorder %v990, 0.0
        %v1119 = vmul.f32 %v863, 0.2
        %v1120 = vmul.f32 %v864, 0.2
        %v1121 = vmul.f32 %v865, 0.2
        %v1122 = vmul.f32 %v866, 0.2
        %v1123 = vmul.f32 %v867, 0.2
        %v1124 = vmul.f32 %v868, 0.2
        %v1125 = vmul.f32 %v869, 0.2
        %v1126 = vmul.f32 %v870, 0.2
        %v1127 = vmul.f32 %v871, 0.2
        %v1128 = vmul.f32 %v872, 0.2
        %v1129 = vmul.f32 %v873, 0.2
        %v1130 = vmul.f32 %v874, 0.2
        %v1131 = vmul.f32 %v875, 0.2
        %v1132 = vmul.f32 %v876, 0.2
        %v1133 = vmul.f32 %v877, 0.2
        %v1134 = vmul.f32 %v878, 0.2
        %v1135 = vmul.f32 %v879, 0.2
        %v1136 = vmul.f32 %v880, 0.2
        %v1137 = vmul.f32 %v881, 0.2
        %v1138 = vmul.f32 %v882, 0.2
        %v1139 = vmul.f32 %v883, 0.2
        %v1140 = vmul.f32 %v884, 0.2
        %v1141 = vmul.f32 %v885, 0.2
        %v1142 = vmul.f32 %v886, 0.2
        %v1143 = vmul.f32 %v887, 0.2
        %v1144 = vmul.f32 %v888, 0.2
        %v1145 = vmul.f32 %v889, 0.2
        %v1146 = vmul.f32 %v890, 0.2
        %v1147 = vmul.f32 %v891, 0.2
        %v1148 = vmul.f32 %v892, 0.2
        %v1149 = vmul.f32 %v893, 0.2
        %v1150 = vmul.f32 %v894, 0.2
        %v1151 = vmul.f32 %v895, 0.2
        %v1152 = vmul.f32 %v896, 0.2
        %v1153 = vmul.f32 %v897, 0.2
        %v1154 = vmul.f32 %v898, 0.2
        %v1155 = vmul.f32 %v899, 0.2
        %v1156 = vmul.f32 %v900, 0.2
        %v1157 = vmul.f32 %v901, 0.2
        %v1158 = vmul.f32 %v902, 0.2
        %v1159 = vmul.f32 %v903, 0.2
        %v1160 = vmul.f32 %v904, 0.2
        %v1161 = vmul.f32 %v905, 0.2
        %v1162 = vmul.f32 %v906, 0.2
        %v1163 = vmul.f32 %v907, 0.2
        %v1164 = vmul.f32 %v908, 0.2
        %v1165 = vmul.f32 %v909, 0.2
        %v1166 = vmul.f32 %v910, 0.2
        %v1167 = vmul.f32 %v911, 0.2
        %v1168 = vmul.f32 %v912, 0.2
        %v1169 = vmul.f32 %v913, 0.2
        %v1170 = vmul.f32 %v914, 0.2
        %v1171 = vmul.f32 %v915, 0.2
        %v1172 = vmul.f32 %v916, 0.2
        %v1173 = vmul.f32 %v917, 0.2
        %v1174 = vmul.f32 %v918, 0.2
        %v1175 = vmul.f32 %v919, 0.2
        %v1176 = vmul.f32 %v920, 0.2
        %v1177 = vmul.f32 %v921, 0.2
        %v1178 = vmul.f32 %v922, 0.2
        %v1179 = vmul.f32 %v923, 0.2
        %v1180 = vmul.f32 %v924, 0.2
        %v1181 = vmul.f32 %v925, 0.2
        %v1182 = vmul.f32 %v926, 0.2
        %v1183 = vmul.f32 %v927, 0.2
        %v1184 = vmul.f32 %v928, 0.2
        %v1185 = vmul.f32 %v929, 0.2
        %v1186 = vmul.f32 %v930, 0.2
        %v1187 = vmul.f32 %v931, 0.2
        %v1188 = vmul.f32 %v932, 0.2
        %v1189 = vmul.f32 %v933, 0.2
        %v1190 = vmul.f32 %v934, 0.2
        %v1191 = vmul.f32 %v935, 0.2
        %v1192 = vmul.f32 %v936, 0.2
        %v1193 = vmul.f32 %v937, 0.2
        %v1194 = vmul.f32 %v938, 0.2
        %v1195 = vmul.f32 %v939, 0.2
        %v1196 = vmul.f32 %v940, 0.2
        %v1197 = vmul.f32 %v941, 0.2
        %v1198 = vmul.f32 %v942, 0.2
        %v1199 = vmul.f32 %v943, 0.2
        %v1200 = vmul.f32 %v944, 0.2
        %v1201 = vmul.f32 %v945, 0.2
        %v1202 = vmul.f32 %v946, 0.2
        %v1203 = vmul.f32 %v947, 0.2
        %v1204 = vmul.f32 %v948, 0.2
        %v1205 = vmul.f32 %v949, 0.2
        %v1206 = vmul.f32 %v950, 0.2
        %v1207 = vmul.f32 %v951, 0.2
        %v1208 = vmul.f32 %v952, 0.2
        %v1209 = vmul.f32 %v953, 0.2
        %v1210 = vmul.f32 %v954, 0.2
        %v1211 = vmul.f32 %v955, 0.2
        %v1212 = vmul.f32 %v956, 0.2
        %v1213 = vmul.f32 %v957, 0.2
        %v1214 = vmul.f32 %v958, 0.2
        %v1215 = vmul.f32 %v959, 0.2
        %v1216 = vmul.f32 %v960, 0.2
        %v1217 = vmul.f32 %v961, 0.2
        %v1218 = vmul.f32 %v962, 0.2
        %v1219 = vmul.f32 %v963, 0.2
        %v1220 = vmul.f32 %v964, 0.2
        %v1221 = vmul.f32 %v965, 0.2
        %v1222 = vmul.f32 %v966, 0.2
        %v1223 = vmul.f32 %v967, 0.2
        %v1224 = vmul.f32 %v968, 0.2
        %v1225 = vmul.f32 %v969, 0.2
        %v1226 = vmul.f32 %v970, 0.2
        %v1227 = vmul.f32 %v971, 0.2
        %v1228 = vmul.f32 %v972, 0.2
        %v1229 = vmul.f32 %v973, 0.2
        %v1230 = vmul.f32 %v974, 0.2
        %v1231 = vmul.f32 %v975, 0.2
        %v1232 = vmul.f32 %v976, 0.2
        %v1233 = vmul.f32 %v977, 0.2
        %v1234 = vmul.f32 %v978, 0.2
        %v1235 = vmul.f32 %v979, 0.2
        %v1236 = vmul.f32 %v980, 0.2
        %v1237 = vmul.f32 %v981, 0.2
        %v1238 = vmul.f32 %v982, 0.2
        %v1239 = vmul.f32 %v983, 0.2
        %v1240 = vmul.f32 %v984, 0.2
        %v1241 = vmul.f32 %v985, 0.2
        %v1242 = vmul.f32 %v986, 0.2
        %v1243 = vmul.f32 %v987, 0.2
        %v1244 = vmul.f32 %v988, 0.2
        %v1245 = vmul.f32 %v989, 0.2
        %v1246 = vmul.f32 %v990, 0.2
        %v1247 = vsel %vm991, %v863, %v1119
        %v1248 = vsel %vm992, %v864, %v1120
        %v1249 = vsel %vm993, %v865, %v1121
        %v1250 = vsel %vm994, %v866, %v1122
        %v1251 = vsel %vm995, %v867, %v1123
        %v1252 = vsel %vm996, %v868, %v1124
        %v1253 = vsel %vm997, %v869, %v1125
        %v1254 = vsel %vm998, %v870, %v1126
        %v1255 = vsel %vm999, %v871, %v1127
        %v1256 = vsel %vm1000, %v872, %v1128
        %v1257 = vsel %vm1001, %v873, %v1129
        %v1258 = vsel %vm1002, %v874, %v1130
        %v1259 = vsel %vm1003, %v875, %v1131
        %v1260 = vsel %vm1004, %v876, %v1132
        %v1261 = vsel %vm1005, %v877, %v1133
        %v1262 = vsel %vm1006, %v878, %v1134
        %v1263 = vsel %vm1007, %v879, %v1135
        %v1264 = vsel %vm1008, %v880, %v1136
        %v1265 = vsel %vm1009, %v881, %v1137
        %v1266 = vsel %vm1010, %v882, %v1138
        %v1267 = vsel %vm1011, %v883, %v1139
        %v1268 = vsel %vm1012, %v884, %v1140
        %v1269 = vsel %vm1013, %v885, %v1141
        %v1270 = vsel %vm1014, %v886, %v1142
        %v1271 = vsel %vm1015, %v887, %v1143
        %v1272 = vsel %vm1016, %v888, %v1144
        %v1273 = vsel %vm1017, %v889, %v1145
        %v1274 = vsel %vm1018, %v890, %v1146
        %v1275 = vsel %vm1019, %v891, %v1147
        %v1276 = vsel %vm1020, %v892, %v1148
        %v1277 = vsel %vm1021, %v893, %v1149
        %v1278 = vsel %vm1022, %v894, %v1150
        %v1279 = vsel %vm1023, %v895, %v1151
        %v1280 = vsel %vm1024, %v896, %v1152
        %v1281 = vsel %vm1025, %v897, %v1153
        %v1282 = vsel %vm1026, %v898, %v1154
        %v1283 = vsel %vm1027, %v899, %v1155
        %v1284 = vsel %vm1028, %v900, %v1156
        %v1285 = vsel %vm1029, %v901, %v1157
        %v1286 = vsel %vm1030, %v902, %v1158
        %v1287 = vsel %vm1031, %v903, %v1159
        %v1288 = vsel %vm1032, %v904, %v1160
        %v1289 = vsel %vm1033, %v905, %v1161
        %v1290 = vsel %vm1034, %v906, %v1162
        %v1291 = vsel %vm1035, %v907, %v1163
        %v1292 = vsel %vm1036, %v908, %v1164
        %v1293 = vsel %vm1037, %v909, %v1165
        %v1294 = vsel %vm1038, %v910, %v1166
        %v1295 = vsel %vm1039, %v911, %v1167
        %v1296 = vsel %vm1040, %v912, %v1168
        %v1297 = vsel %vm1041, %v913, %v1169
        %v1298 = vsel %vm1042, %v914, %v1170
        %v1299 = vsel %vm1043, %v915, %v1171
        %v1300 = vsel %vm1044, %v916, %v1172
        %v1301 = vsel %vm1045, %v917, %v1173
        %v1302 = vsel %vm1046, %v918, %v1174
        %v1303 = vsel %vm1047, %v919, %v1175
        %v1304 = vsel %vm1048, %v920, %v1176
        %v1305 = vsel %vm1049, %v921, %v1177
        %v1306 = vsel %vm1050, %v922, %v1178
        %v1307 = vsel %vm1051, %v923, %v1179
        %v1308 = vsel %vm1052, %v924, %v1180
        %v1309 = vsel %vm1053, %v925, %v1181
        %v1310 = vsel %vm1054, %v926, %v1182
        %v1311 = vsel %vm1055, %v927, %v1183
        %v1312 = vsel %vm1056, %v928, %v1184
        %v1313 = vsel %vm1057, %v929, %v1185
        %v1314 = vsel %vm1058, %v930, %v1186
        %v1315 = vsel %vm1059, %v931, %v1187
        %v1316 = vsel %vm1060, %v932, %v1188
        %v1317 = vsel %vm1061, %v933, %v1189
        %v1318 = vsel %vm1062, %v934, %v1190
        %v1319 = vsel %vm1063, %v935, %v1191
        %v1320 = vsel %vm1064, %v936, %v1192
        %v1321 = vsel %vm1065, %v937, %v1193
        %v1322 = vsel %vm1066, %v938, %v1194
        %v1323 = vsel %vm1067, %v939, %v1195
        %v1324 = vsel %vm1068, %v940, %v1196
        %v1325 = vsel %vm1069, %v941, %v1197
        %v1326 = vsel %vm1070, %v942, %v1198
        %v1327 = vsel %vm1071, %v943, %v1199
        %v1328 = vsel %vm1072, %v944, %v1200
        %v1329 = vsel %vm1073, %v945, %v1201
        %v1330 = vsel %vm1074, %v946, %v1202
        %v1331 = vsel %vm1075, %v947, %v1203
        %v1332 = vsel %vm1076, %v948, %v1204
        %v1333 = vsel %vm1077, %v949, %v1205
        %v1334 = vsel %vm1078, %v950, %v1206
        %v1335 = vsel %vm1079, %v951, %v1207
        %v1336 = vsel %vm1080, %v952, %v1208
        %v1337 = vsel %vm1081, %v953, %v1209
        %v1338 = vsel %vm1082, %v954, %v1210
        %v1339 = vsel %vm1083, %v955, %v1211
        %v1340 = vsel %vm1084, %v956, %v1212
        %v1341 = vsel %vm1085, %v957, %v1213
        %v1342 = vsel %vm1086, %v958, %v1214
        %v1343 = vsel %vm1087, %v959, %v1215
        %v1344 = vsel %vm1088, %v960, %v1216
        %v1345 = vsel %vm1089, %v961, %v1217
        %v1346 = vsel %vm1090, %v962, %v1218
        %v1347 = vsel %vm1091, %v963, %v1219
        %v1348 = vsel %vm1092, %v964, %v1220
        %v1349 = vsel %vm1093, %v965, %v1221
        %v1350 = vsel %vm1094, %v966, %v1222
        %v1351 = vsel %vm1095, %v967, %v1223
        %v1352 = vsel %vm1096, %v968, %v1224
        %v1353 = vsel %vm1097, %v969, %v1225
        %v1354 = vsel %vm1098, %v970, %v1226
        %v1355 = vsel %vm1099, %v971, %v1227
        %v1356 = vsel %vm1100, %v972, %v1228
        %v1357 = vsel %vm1101, %v973, %v1229
        %v1358 = vsel %vm1102, %v974, %v1230
        %v1359 = vsel %vm1103, %v975, %v1231
        %v1360 = vsel %vm1104, %v976, %v1232
        %v1361 = vsel %vm1105, %v977, %v1233
        %v1362 = vsel %vm1106, %v978, %v1234
        %v1363 = vsel %vm1107, %v979, %v1235
        %v1364 = vsel %vm1108, %v980, %v1236
        %v1365 = vsel %vm1109, %v981, %v1237
        %v1366 = vsel %vm1110, %v982, %v1238
        %v1367 = vsel %vm1111, %v983, %v1239
        %v1368 = vsel %vm1112, %v984, %v1240
        %v1369 = vsel %vm1113, %v985, %v1241
        %v1370 = vsel %vm1114, %v986, %v1242
        %v1371 = vsel %vm1115, %v987, %v1243
        %v1372 = vsel %vm1116, %v988, %v1244
        %v1373 = vsel %vm1117, %v989, %v1245
        %v1374 = vsel %vm1118, %v990, %v1246
        %1375 = vmatprep.subr.mxu0 0.0
        %1376 = vmatpush1.msra.mxu0 %v378
        %1377 = vmatprep.subr.mxu0 0.0
        %1378 = vmatpush1.msra.mxu0 %v379
        %1379 = vmatprep.subr.mxu0 0.0
        %1380 = vmatpush1.msra.mxu0 %v380
        %1381 = vmatprep.subr.mxu0 0.0
        %1382 = vmatpush1.msra.mxu0 %v381
        %1383 = vmatprep.subr.mxu0 0.0
        %1384 = vmatpush1.msra.mxu0 %v382
        %1385 = vmatprep.subr.mxu0 0.0
        %1386 = vmatpush1.msra.mxu0 %v383
        %1387 = vmatprep.subr.mxu0 0.0
        %1388 = vmatpush1.msra.mxu0 %v384
        %1389 = vmatprep.subr.mxu0 0.0
        %1390 = vmatpush1.msra.mxu0 %v385
        %1391 = vmatprep.subr.mxu0 0.0
        %1392 = vmatpush1.msra.mxu0 %v386
        %1393 = vmatprep.subr.mxu0 0.0
        %1394 = vmatpush1.msra.mxu0 %v387
        %1395 = vmatprep.subr.mxu0 0.0
        %1396 = vmatpush1.msra.mxu0 %v388
        %1397 = vmatprep.subr.mxu0 0.0
        %1398 = vmatpush1.msra.mxu0 %v389
        %1399 = vmatprep.subr.mxu0 0.0
        %1400 = vmatpush1.msra.mxu0 %v390
        %1401 = vmatprep.subr.mxu0 0.0
        %1402 = vmatpush1.msra.mxu0 %v391
        %1403 = vmatprep.subr.mxu0 0.0
        %1404 = vmatpush1.msra.mxu0 %v392
        %1405 = vmatprep.subr.mxu0 0.0
        %1406 = vmatpush1.msra.mxu0 %v393
        %1407 = vmatprep.subr.mxu0 0.0
        %1408 = vmatpush1.msra.mxu0 0.0
        %1409 = vmatprep.subr.mxu0 0.0
        %1410 = vmatpush1.msra.mxu0 0.0
        %1411 = vmatprep.subr.mxu0 0.0
        %1412 = vmatpush1.msra.mxu0 0.0
        %1413 = vmatprep.subr.mxu0 0.0
        %1414 = vmatpush1.msra.mxu0 0.0
        %1415 = vmatprep.subr.mxu0 0.0
        %1416 = vmatpush1.msra.mxu0 0.0
        %1417 = vmatprep.subr.mxu0 0.0
        %1418 = vmatpush1.msra.mxu0 0.0
        %1419 = vmatprep.subr.mxu0 0.0
        %1420 = vmatpush1.msra.mxu0 0.0
        %1421 = vmatprep.subr.mxu0 0.0
        %1422 = vmatpush1.msra.mxu0 0.0
        %1423 = vmatprep.subr.mxu0 0.0
        %1424 = vmatpush1.msra.mxu0 0.0
        %1425 = vmatprep.subr.mxu0 0.0
        %1426 = vmatpush1.msra.mxu0 0.0
        %1427 = vmatprep.subr.mxu0 0.0
        %1428 = vmatpush1.msra.mxu0 0.0
        %1429 = vmatprep.subr.mxu0 0.0
        %1430 = vmatpush1.msra.mxu0 0.0
        %1431 = vmatprep.subr.mxu0 0.0
        %1432 = vmatpush1.msra.mxu0 0.0
        %1433 = vmatprep.subr.mxu0 0.0
        %1434 = vmatpush1.msra.mxu0 0.0
        %1435 = vmatprep.subr.mxu0 0.0
        %1436 = vmatpush1.msra.mxu0 0.0
        %1437 = vmatprep.subr.mxu0 0.0
        %1438 = vmatpush1.msra.mxu0 0.0
        %1439 = vmatprep.mubr.f32.mxu0 0.0
        %1440 = vmatmul.mubr.f32.gmra.mrb[0].mxu0 %v1247
        %v1441 = vpop.f32.mrb[0].mxu0
        %v1442 = vadd.f32 0.0, %v1441
        %v1443 = vpop.f32.mrb[0].mxu0
        %1444 = vmatprep.mubr.f32.mxu0 0.0
        %1445 = vmatmul.mubr.f32.gmra.mrb[0].mxu0 %v1248
        %v1446 = vpop.f32.mrb[0].mxu0
        %v1447 = vadd.f32 0.0, %v1446
        %v1448 = vpop.f32.mrb[0].mxu0
        %1449 = vmatprep.mubr.f32.mxu0 0.0
        %1450 = vmatmul.mubr.f32.gmra.mrb[0].mxu0 %v1249
        %v1451 = vpop.f32.mrb[0].mxu0
        %v1452 = vadd.f32 0.0, %v1451
        %v1453 = vpop.f32.mrb[0].mxu0
        %1454 = vmatprep.mubr.f32.mxu0 0.0
        %1455 = vmatmul.mubr.f32.gmra.mrb[0].mxu0 %v1250
        %v1456 = vpop.f32.mrb[0].mxu0
        %v1457 = vadd.f32 0.0, %v1456
        %v1458 = vpop.f32.mrb[0].mxu0
        %1459 = vmatprep.mubr.f32.mxu0 0.0
        %1460 = vmatmul.mubr.f32.gmra.mrb[0].mxu0 %v1251
        %v1461 = vpop.f32.mrb[0].mxu0
        %v1462 = vadd.f32 0.0, %v1461
        %v1463 = vpop.f32.mrb[0].mxu0
        %1464 = vmatprep.mubr.f32.mxu0 0.0
        %1465 = vmatmul.mubr.f32.gmra.mrb[0].mxu0 %v1252
        %v1466 = vpop.f32.mrb[0].mxu0
        %v1467 = vadd.f32 0.0, %v1466
        %v1468 = vpop.f32.mrb[0].mxu0
        %1469 = vmatprep.mubr.f32.mxu0 0.0
        %1470 = vmatmul.mubr.f32.gmra.mrb[0].mxu0 %v1253
        %v1471 = vpop.f32.mrb[0].mxu0
        %v1472 = vadd.f32 0.0, %v1471
        %v1473 = vpop.f32.mrb[0].mxu0
        %1474 = vmatprep.mubr.f32.mxu0 0.0
        %1475 = vmatmul.mubr.f32.gmra.mrb[0].mxu0 %v1254
        %v1476 = vpop.f32.mrb[0].mxu0
        %v1477 = vadd.f32 0.0, %v1476
        %v1478 = vpop.f32.mrb[0].mxu0
        %1479 = vmatprep.mubr.f32.mxu0 0.0
        %1480 = vmatmul.mubr.f32.gmra.mrb[0].mxu0 %v1255
        %v1481 = vpop.f32.mrb[0].mxu0
        %v1482 = vadd.f32 0.0, %v1481
        %v1483 = vpop.f32.mrb[0].mxu0
        %1484 = vmatprep.mubr.f32.mxu0 0.0
        %1485 = vmatmul.mubr.f32.gmra.mrb[0].mxu0 %v1256
        %v1486 = vpop.f32.mrb[0].mxu0
        %v1487 = vadd.f32 0.0, %v1486
        %v1488 = vpop.f32.mrb[0].mxu0
        %1489 = vmatprep.mubr.f32.mxu0 0.0
        %1490 = vmatmul.mubr.f32.gmra.mrb[0].mxu0 %v1257
        %v1491 = vpop.f32.mrb[0].mxu0
        %v1492 = vadd.f32 0.0, %v1491
        %v1493 = vpop.f32.mrb[0].mxu0
        %1494 = vmatprep.mubr.f32.mxu0 0.0
        %1495 = vmatmul.mubr.f32.gmra.mrb[0].mxu0 %v1258
        %v1496 = vpop.f32.mrb[0].mxu0
        %v1497 = vadd.f32 0.0, %v1496
        %v1498 = vpop.f32.mrb[0].mxu0
        %1499 = vmatprep.mubr.f32.mxu0 0.0
        %1500 = vmatmul.mubr.f32.gmra.mrb[0].mxu0 %v1259
        %v1501 = vpop.f32.mrb[0].mxu0
        %v1502 = vadd.f32 0.0, %v1501
        %v1503 = vpop.f32.mrb[0].mxu0
        %1504 = vmatprep.mubr.f32.mxu0 0.0
        %1505 = vmatmul.mubr.f32.gmra.mrb[0].mxu0 %v1260
        %v1506 = vpop.f32.mrb[0].mxu0
        %v1507 = vadd.f32 0.0, %v1506
        %v1508 = vpop.f32.mrb[0].mxu0
        %1509 = vmatprep.mubr.f32.mxu0 0.0
        %1510 = vmatmul.mubr.f32.gmra.mrb[0].mxu0 %v1261
        %v1511 = vpop.f32.mrb[0].mxu0
        %v1512 = vadd.f32 0.0, %v1511
        %v1513 = vpop.f32.mrb[0].mxu0
        %1514 = vmatprep.mubr.f32.mxu0 0.0
        %1515 = vmatmul.mubr.f32.gmra.mrb[0].mxu0 %v1262
        %v1516 = vpop.f32.mrb[0].mxu0
        %v1517 = vadd.f32 0.0, %v1516
        %v1518 = vpop.f32.mrb[0].mxu0
        %1519 = vmatprep.mubr.f32.mxu0 0.0
        %1520 = vmatmul.mubr.f32.gmra.mrb[0].mxu0 %v1263
        %v1521 = vpop.f32.mrb[0].mxu0
        %v1522 = vadd.f32 0.0, %v1521
        %v1523 = vpop.f32.mrb[0].mxu0
        %1524 = vmatprep.mubr.f32.mxu0 0.0
        %1525 = vmatmul.mubr.f32.gmra.mrb[0].mxu0 %v1264
        %v1526 = vpop.f32.mrb[0].mxu0
        %v1527 = vadd.f32 0.0, %v1526
        %v1528 = vpop.f32.mrb[0].mxu0
        %1529 = vmatprep.mubr.f32.mxu0 0.0
        %1530 = vmatmul.mubr.f32.gmra.mrb[0].mxu0 %v1265
        %v1531 = vpop.f32.mrb[0].mxu0
        %v1532 = vadd.f32 0.0, %v1531
        %v1533 = vpop.f32.mrb[0].mxu0
        %1534 = vmatprep.mubr.f32.mxu0 0.0
        %1535 = vmatmul.mubr.f32.gmra.mrb[0].mxu0 %v1266
        %v1536 = vpop.f32.mrb[0].mxu0
        %v1537 = vadd.f32 0.0, %v1536
        %v1538 = vpop.f32.mrb[0].mxu0
        %1539 = vmatprep.mubr.f32.mxu0 0.0
        %1540 = vmatmul.mubr.f32.gmra.mrb[0].mxu0 %v1267
        %v1541 = vpop.f32.mrb[0].mxu0
        %v1542 = vadd.f32 0.0, %v1541
        %v1543 = vpop.f32.mrb[0].mxu0
        %1544 = vmatprep.mubr.f32.mxu0 0.0
        %1545 = vmatmul.mubr.f32.gmra.mrb[0].mxu0 %v1268
        %v1546 = vpop.f32.mrb[0].mxu0
        %v1547 = vadd.f32 0.0, %v1546
        %v1548 = vpop.f32.mrb[0].mxu0
        %1549 = vmatprep.mubr.f32.mxu0 0.0
        %1550 = vmatmul.mubr.f32.gmra.mrb[0].mxu0 %v1269
        %v1551 = vpop.f32.mrb[0].mxu0
        %v1552 = vadd.f32 0.0, %v1551
        %v1553 = vpop.f32.mrb[0].mxu0
        %1554 = vmatprep.mubr.f32.mxu0 0.0
        %1555 = vmatmul.mubr.f32.gmra.mrb[0].mxu0 %v1270
        %v1556 = vpop.f32.mrb[0].mxu0
        %v1557 = vadd.f32 0.0, %v1556
        %v1558 = vpop.f32.mrb[0].mxu0
        %1559 = vmatprep.mubr.f32.mxu0 0.0
        %1560 = vmatmul.mubr.f32.gmra.mrb[0].mxu0 %v1271
        %v1561 = vpop.f32.mrb[0].mxu0
        %v1562 = vadd.f32 0.0, %v1561
        %v1563 = vpop.f32.mrb[0].mxu0
        %1564 = vmatprep.mubr.f32.mxu0 0.0
        %1565 = vmatmul.mubr.f32.gmra.mrb[0].mxu0 %v1272
        %v1566 = vpop.f32.mrb[0].mxu0
        %v1567 = vadd.f32 0.0, %v1566
        %v1568 = vpop.f32.mrb[0].mxu0
        %1569 = vmatprep.mubr.f32.mxu0 0.0
        %1570 = vmatmul.mubr.f32.gmra.mrb[0].mxu0 %v1273
        %v1571 = vpop.f32.mrb[0].mxu0
        %v1572 = vadd.f32 0.0, %v1571
        %v1573 = vpop.f32.mrb[0].mxu0
        %1574 = vmatprep.mubr.f32.mxu0 0.0
        %1575 = vmatmul.mubr.f32.gmra.mrb[0].mxu0 %v1274
        %v1576 = vpop.f32.mrb[0].mxu0
        %v1577 = vadd.f32 0.0, %v1576
        %v1578 = vpop.f32.mrb[0].mxu0
        %1579 = vmatprep.mubr.f32.mxu0 0.0
        %1580 = vmatmul.mubr.f32.gmra.mrb[0].mxu0 %v1275
        %v1581 = vpop.f32.mrb[0].mxu0
        %v1582 = vadd.f32 0.0, %v1581
        %v1583 = vpop.f32.mrb[0].mxu0
        %1584 = vmatprep.mubr.f32.mxu0 0.0
        %1585 = vmatmul.mubr.f32.gmra.mrb[0].mxu0 %v1276
        %v1586 = vpop.f32.mrb[0].mxu0
        %v1587 = vadd.f32 0.0, %v1586
        %v1588 = vpop.f32.mrb[0].mxu0
        %1589 = vmatprep.mubr.f32.mxu0 0.0
        %1590 = vmatmul.mubr.f32.gmra.mrb[0].mxu0 %v1277
        %v1591 = vpop.f32.mrb[0].mxu0
        %v1592 = vadd.f32 0.0, %v1591
        %v1593 = vpop.f32.mrb[0].mxu0
        %1594 = vmatprep.mubr.f32.mxu0 0.0
        %1595 = vmatmul.mubr.f32.gmra.mrb[0].mxu0 %v1278
        %v1596 = vpop.f32.mrb[0].mxu0
        %v1597 = vadd.f32 0.0, %v1596
        %v1598 = vpop.f32.mrb[0].mxu0
        %1599 = vmatprep.mubr.f32.mxu0 0.0
        %1600 = vmatmul.mubr.f32.gmra.mrb[0].mxu0 %v1279
        %v1601 = vpop.f32.mrb[0].mxu0
        %v1602 = vadd.f32 0.0, %v1601
        %v1603 = vpop.f32.mrb[0].mxu0
        %1604 = vmatprep.mubr.f32.mxu0 0.0
        %1605 = vmatmul.mubr.f32.gmra.mrb[0].mxu0 %v1280
        %v1606 = vpop.f32.mrb[0].mxu0
        %v1607 = vadd.f32 0.0, %v1606
        %v1608 = vpop.f32.mrb[0].mxu0
        %1609 = vmatprep.mubr.f32.mxu0 0.0
        %1610 = vmatmul.mubr.f32.gmra.mrb[0].mxu0 %v1281
        %v1611 = vpop.f32.mrb[0].mxu0
        %v1612 = vadd.f32 0.0, %v1611
        %v1613 = vpop.f32.mrb[0].mxu0
        %1614 = vmatprep.mubr.f32.mxu0 0.0
        %1615 = vmatmul.mubr.f32.gmra.mrb[0].mxu0 %v1282
        %v1616 = vpop.f32.mrb[0].mxu0
        %v1617 = vadd.f32 0.0, %v1616
        %v1618 = vpop.f32.mrb[0].mxu0
        %1619 = vmatprep.mubr.f32.mxu0 0.0
        %1620 = vmatmul.mubr.f32.gmra.mrb[0].mxu0 %v1283
        %v1621 = vpop.f32.mrb[0].mxu0
        %v1622 = vadd.f32 0.0, %v1621
        %v1623 = vpop.f32.mrb[0].mxu0
        %1624 = vmatprep.mubr.f32.mxu0 0.0
        %1625 = vmatmul.mubr.f32.gmra.mrb[0].mxu0 %v1284
        %v1626 = vpop.f32.mrb[0].mxu0
        %v1627 = vadd.f32 0.0, %v1626
        %v1628 = vpop.f32.mrb[0].mxu0
        %1629 = vmatprep.mubr.f32.mxu0 0.0
        %1630 = vmatmul.mubr.f32.gmra.mrb[0].mxu0 %v1285
        %v1631 = vpop.f32.mrb[0].mxu0
        %v1632 = vadd.f32 0.0, %v1631
        %v1633 = vpop.f32.mrb[0].mxu0
        %1634 = vmatprep.mubr.f32.mxu0 0.0
        %1635 = vmatmul.mubr.f32.gmra.mrb[0].mxu0 %v1286
        %v1636 = vpop.f32.mrb[0].mxu0
        %v1637 = vadd.f32 0.0, %v1636
        %v1638 = vpop.f32.mrb[0].mxu0
        %1639 = vmatprep.mubr.f32.mxu0 0.0
        %1640 = vmatmul.mubr.f32.gmra.mrb[0].mxu0 %v1287
        %v1641 = vpop.f32.mrb[0].mxu0
        %v1642 = vadd.f32 0.0, %v1641
        %v1643 = vpop.f32.mrb[0].mxu0
        %1644 = vmatprep.mubr.f32.mxu0 0.0
        %1645 = vmatmul.mubr.f32.gmra.mrb[0].mxu0 %v1288
        %v1646 = vpop.f32.mrb[0].mxu0
        %v1647 = vadd.f32 0.0, %v1646
        %v1648 = vpop.f32.mrb[0].mxu0
        %1649 = vmatprep.mubr.f32.mxu0 0.0
        %1650 = vmatmul.mubr.f32.gmra.mrb[0].mxu0 %v1289
        %v1651 = vpop.f32.mrb[0].mxu0
        %v1652 = vadd.f32 0.0, %v1651
        %v1653 = vpop.f32.mrb[0].mxu0
        %1654 = vmatprep.mubr.f32.mxu0 0.0
        %1655 = vmatmul.mubr.f32.gmra.mrb[0].mxu0 %v1290
        %v1656 = vpop.f32.mrb[0].mxu0
        %v1657 = vadd.f32 0.0, %v1656
        %v1658 = vpop.f32.mrb[0].mxu0
        %1659 = vmatprep.mubr.f32.mxu0 0.0
        %1660 = vmatmul.mubr.f32.gmra.mrb[0].mxu0 %v1291
        %v1661 = vpop.f32.mrb[0].mxu0
        %v1662 = vadd.f32 0.0, %v1661
        %v1663 = vpop.f32.mrb[0].mxu0
        %1664 = vmatprep.mubr.f32.mxu0 0.0
        %1665 = vmatmul.mubr.f32.gmra.mrb[0].mxu0 %v1292
        %v1666 = vpop.f32.mrb[0].mxu0
        %v1667 = vadd.f32 0.0, %v1666
        %v1668 = vpop.f32.mrb[0].mxu0
        %1669 = vmatprep.mubr.f32.mxu0 0.0
        %1670 = vmatmul.mubr.f32.gmra.mrb[0].mxu0 %v1293
        %v1671 = vpop.f32.mrb[0].mxu0
        %v1672 = vadd.f32 0.0, %v1671
        %v1673 = vpop.f32.mrb[0].mxu0
        %1674 = vmatprep.mubr.f32.mxu0 0.0
        %1675 = vmatmul.mubr.f32.gmra.mrb[0].mxu0 %v1294
        %v1676 = vpop.f32.mrb[0].mxu0
        %v1677 = vadd.f32 0.0, %v1676
        %v1678 = vpop.f32.mrb[0].mxu0
        %1679 = vmatprep.mubr.f32.mxu0 0.0
        %1680 = vmatmul.mubr.f32.gmra.mrb[0].mxu0 %v1295
        %v1681 = vpop.f32.mrb[0].mxu0
        %v1682 = vadd.f32 0.0, %v1681
        %v1683 = vpop.f32.mrb[0].mxu0
        %1684 = vmatprep.mubr.f32.mxu0 0.0
        %1685 = vmatmul.mubr.f32.gmra.mrb[0].mxu0 %v1296
        %v1686 = vpop.f32.mrb[0].mxu0
        %v1687 = vadd.f32 0.0, %v1686
        %v1688 = vpop.f32.mrb[0].mxu0
        %1689 = vmatprep.mubr.f32.mxu0 0.0
        %1690 = vmatmul.mubr.f32.gmra.mrb[0].mxu0 %v1297
        %v1691 = vpop.f32.mrb[0].mxu0
        %v1692 = vadd.f32 0.0, %v1691
        %v1693 = vpop.f32.mrb[0].mxu0
        %1694 = vmatprep.mubr.f32.mxu0 0.0
        %1695 = vmatmul.mubr.f32.gmra.mrb[0].mxu0 %v1298
        %v1696 = vpop.f32.mrb[0].mxu0
        %v1697 = vadd.f32 0.0, %v1696
        %v1698 = vpop.f32.mrb[0].mxu0
        %1699 = vmatprep.mubr.f32.mxu0 0.0
        %1700 = vmatmul.mubr.f32.gmra.mrb[0].mxu0 %v1299
        %v1701 = vpop.f32.mrb[0].mxu0
        %v1702 = vadd.f32 0.0, %v1701
        %v1703 = vpop.f32.mrb[0].mxu0
        %1704 = vmatprep.mubr.f32.mxu0 0.0
        %1705 = vmatmul.mubr.f32.gmra.mrb[0].mxu0 %v1300
        %v1706 = vpop.f32.mrb[0].mxu0
        %v1707 = vadd.f32 0.0, %v1706
        %v1708 = vpop.f32.mrb[0].mxu0
        %1709 = vmatprep.mubr.f32.mxu0 0.0
        %1710 = vmatmul.mubr.f32.gmra.mrb[0].mxu0 %v1301
        %v1711 = vpop.f32.mrb[0].mxu0
        %v1712 = vadd.f32 0.0, %v1711
        %v1713 = vpop.f32.mrb[0].mxu0
        %1714 = vmatprep.mubr.f32.mxu0 0.0
        %1715 = vmatmul.mubr.f32.gmra.mrb[0].mxu0 %v1302
        %v1716 = vpop.f32.mrb[0].mxu0
        %v1717 = vadd.f32 0.0, %v1716
        %v1718 = vpop.f32.mrb[0].mxu0
        %1719 = vmatprep.mubr.f32.mxu0 0.0
        %1720 = vmatmul.mubr.f32.gmra.mrb[0].mxu0 %v1303
        %v1721 = vpop.f32.mrb[0].mxu0
        %v1722 = vadd.f32 0.0, %v1721
        %v1723 = vpop.f32.mrb[0].mxu0
        %1724 = vmatprep.mubr.f32.mxu0 0.0
        %1725 = vmatmul.mubr.f32.gmra.mrb[0].mxu0 %v1304
        %v1726 = vpop.f32.mrb[0].mxu0
        %v1727 = vadd.f32 0.0, %v1726
        %v1728 = vpop.f32.mrb[0].mxu0
        %1729 = vmatprep.mubr.f32.mxu0 0.0
        %1730 = vmatmul.mubr.f32.gmra.mrb[0].mxu0 %v1305
        %v1731 = vpop.f32.mrb[0].mxu0
        %v1732 = vadd.f32 0.0, %v1731
        %v1733 = vpop.f32.mrb[0].mxu0
        %1734 = vmatprep.mubr.f32.mxu0 0.0
        %1735 = vmatmul.mubr.f32.gmra.mrb[0].mxu0 %v1306
        %v1736 = vpop.f32.mrb[0].mxu0
        %v1737 = vadd.f32 0.0, %v1736
        %v1738 = vpop.f32.mrb[0].mxu0
        %1739 = vmatprep.mubr.f32.mxu0 0.0
        %1740 = vmatmul.mubr.f32.gmra.mrb[0].mxu0 %v1307
        %v1741 = vpop.f32.mrb[0].mxu0
        %v1742 = vadd.f32 0.0, %v1741
        %v1743 = vpop.f32.mrb[0].mxu0
        %1744 = vmatprep.mubr.f32.mxu0 0.0
        %1745 = vmatmul.mubr.f32.gmra.mrb[0].mxu0 %v1308
        %v1746 = vpop.f32.mrb[0].mxu0
        %v1747 = vadd.f32 0.0, %v1746
        %v1748 = vpop.f32.mrb[0].mxu0
        %1749 = vmatprep.mubr.f32.mxu0 0.0
        %1750 = vmatmul.mubr.f32.gmra.mrb[0].mxu0 %v1309
        %v1751 = vpop.f32.mrb[0].mxu0
        %v1752 = vadd.f32 0.0, %v1751
        %v1753 = vpop.f32.mrb[0].mxu0
        %1754 = vmatprep.mubr.f32.mxu0 0.0
        %1755 = vmatmul.mubr.f32.gmra.mrb[0].mxu0 %v1310
        %v1756 = vpop.f32.mrb[0].mxu0
        %v1757 = vadd.f32 0.0, %v1756
        %v1758 = vpop.f32.mrb[0].mxu0
        %1759 = vmatprep.mubr.f32.mxu0 0.0
        %1760 = vmatmul.mubr.f32.gmra.mrb[0].mxu0 %v1311
        %v1761 = vpop.f32.mrb[0].mxu0
        %v1762 = vadd.f32 0.0, %v1761
        %v1763 = vpop.f32.mrb[0].mxu0
        %1764 = vmatprep.mubr.f32.mxu0 0.0
        %1765 = vmatmul.mubr.f32.gmra.mrb[0].mxu0 %v1312
        %v1766 = vpop.f32.mrb[0].mxu0
        %v1767 = vadd.f32 0.0, %v1766
        %v1768 = vpop.f32.mrb[0].mxu0
        %1769 = vmatprep.mubr.f32.mxu0 0.0
        %1770 = vmatmul.mubr.f32.gmra.mrb[0].mxu0 %v1313
        %v1771 = vpop.f32.mrb[0].mxu0
        %v1772 = vadd.f32 0.0, %v1771
        %v1773 = vpop.f32.mrb[0].mxu0
        %1774 = vmatprep.mubr.f32.mxu0 0.0
        %1775 = vmatmul.mubr.f32.gmra.mrb[0].mxu0 %v1314
        %v1776 = vpop.f32.mrb[0].mxu0
        %v1777 = vadd.f32 0.0, %v1776
        %v1778 = vpop.f32.mrb[0].mxu0
        %1779 = vmatprep.mubr.f32.mxu0 0.0
        %1780 = vmatmul.mubr.f32.gmra.mrb[0].mxu0 %v1315
        %v1781 = vpop.f32.mrb[0].mxu0
        %v1782 = vadd.f32 0.0, %v1781
        %v1783 = vpop.f32.mrb[0].mxu0
        %1784 = vmatprep.mubr.f32.mxu0 0.0
        %1785 = vmatmul.mubr.f32.gmra.mrb[0].mxu0 %v1316
        %v1786 = vpop.f32.mrb[0].mxu0
        %v1787 = vadd.f32 0.0, %v1786
        %v1788 = vpop.f32.mrb[0].mxu0
        %1789 = vmatprep.mubr.f32.mxu0 0.0
        %1790 = vmatmul.mubr.f32.gmra.mrb[0].mxu0 %v1317
        %v1791 = vpop.f32.mrb[0].mxu0
        %v1792 = vadd.f32 0.0, %v1791
        %v1793 = vpop.f32.mrb[0].mxu0
        %1794 = vmatprep.mubr.f32.mxu0 0.0
        %1795 = vmatmul.mubr.f32.gmra.mrb[0].mxu0 %v1318
        %v1796 = vpop.f32.mrb[0].mxu0
        %v1797 = vadd.f32 0.0, %v1796
        %v1798 = vpop.f32.mrb[0].mxu0
        %1799 = vmatprep.mubr.f32.mxu0 0.0
        %1800 = vmatmul.mubr.f32.gmra.mrb[0].mxu0 %v1319
        %v1801 = vpop.f32.mrb[0].mxu0
        %v1802 = vadd.f32 0.0, %v1801
        %v1803 = vpop.f32.mrb[0].mxu0
        %1804 = vmatprep.mubr.f32.mxu0 0.0
        %1805 = vmatmul.mubr.f32.gmra.mrb[0].mxu0 %v1320
        %v1806 = vpop.f32.mrb[0].mxu0
        %v1807 = vadd.f32 0.0, %v1806
        %v1808 = vpop.f32.mrb[0].mxu0
        %1809 = vmatprep.mubr.f32.mxu0 0.0
        %1810 = vmatmul.mubr.f32.gmra.mrb[0].mxu0 %v1321
        %v1811 = vpop.f32.mrb[0].mxu0
        %v1812 = vadd.f32 0.0, %v1811
        %v1813 = vpop.f32.mrb[0].mxu0
        %1814 = vmatprep.mubr.f32.mxu0 0.0
        %1815 = vmatmul.mubr.f32.gmra.mrb[0].mxu0 %v1322
        %v1816 = vpop.f32.mrb[0].mxu0
        %v1817 = vadd.f32 0.0, %v1816
        %v1818 = vpop.f32.mrb[0].mxu0
        %1819 = vmatprep.mubr.f32.mxu0 0.0
        %1820 = vmatmul.mubr.f32.gmra.mrb[0].mxu0 %v1323
        %v1821 = vpop.f32.mrb[0].mxu0
        %v1822 = vadd.f32 0.0, %v1821
        %v1823 = vpop.f32.mrb[0].mxu0
        %1824 = vmatprep.mubr.f32.mxu0 0.0
        %1825 = vmatmul.mubr.f32.gmra.mrb[0].mxu0 %v1324
        %v1826 = vpop.f32.mrb[0].mxu0
        %v1827 = vadd.f32 0.0, %v1826
        %v1828 = vpop.f32.mrb[0].mxu0
        %1829 = vmatprep.mubr.f32.mxu0 0.0
        %1830 = vmatmul.mubr.f32.gmra.mrb[0].mxu0 %v1325
        %v1831 = vpop.f32.mrb[0].mxu0
        %v1832 = vadd.f32 0.0, %v1831
        %v1833 = vpop.f32.mrb[0].mxu0
        %1834 = vmatprep.mubr.f32.mxu0 0.0
        %1835 = vmatmul.mubr.f32.gmra.mrb[0].mxu0 %v1326
        %v1836 = vpop.f32.mrb[0].mxu0
        %v1837 = vadd.f32 0.0, %v1836
        %v1838 = vpop.f32.mrb[0].mxu0
        %1839 = vmatprep.mubr.f32.mxu0 0.0
        %1840 = vmatmul.mubr.f32.gmra.mrb[0].mxu0 %v1327
        %v1841 = vpop.f32.mrb[0].mxu0
        %v1842 = vadd.f32 0.0, %v1841
        %v1843 = vpop.f32.mrb[0].mxu0
        %1844 = vmatprep.mubr.f32.mxu0 0.0
        %1845 = vmatmul.mubr.f32.gmra.mrb[0].mxu0 %v1328
        %v1846 = vpop.f32.mrb[0].mxu0
        %v1847 = vadd.f32 0.0, %v1846
        %v1848 = vpop.f32.mrb[0].mxu0
        %1849 = vmatprep.mubr.f32.mxu0 0.0
        %1850 = vmatmul.mubr.f32.gmra.mrb[0].mxu0 %v1329
        %v1851 = vpop.f32.mrb[0].mxu0
        %v1852 = vadd.f32 0.0, %v1851
        %v1853 = vpop.f32.mrb[0].mxu0
        %1854 = vmatprep.mubr.f32.mxu0 0.0
        %1855 = vmatmul.mubr.f32.gmra.mrb[0].mxu0 %v1330
        %v1856 = vpop.f32.mrb[0].mxu0
        %v1857 = vadd.f32 0.0, %v1856
        %v1858 = vpop.f32.mrb[0].mxu0
        %1859 = vmatprep.mubr.f32.mxu0 0.0
        %1860 = vmatmul.mubr.f32.gmra.mrb[0].mxu0 %v1331
        %v1861 = vpop.f32.mrb[0].mxu0
        %v1862 = vadd.f32 0.0, %v1861
        %v1863 = vpop.f32.mrb[0].mxu0
        %1864 = vmatprep.mubr.f32.mxu0 0.0
        %1865 = vmatmul.mubr.f32.gmra.mrb[0].mxu0 %v1332
        %v1866 = vpop.f32.mrb[0].mxu0
        %v1867 = vadd.f32 0.0, %v1866
        %v1868 = vpop.f32.mrb[0].mxu0
        %1869 = vmatprep.mubr.f32.mxu0 0.0
        %1870 = vmatmul.mubr.f32.gmra.mrb[0].mxu0 %v1333
        %v1871 = vpop.f32.mrb[0].mxu0
        %v1872 = vadd.f32 0.0, %v1871
        %v1873 = vpop.f32.mrb[0].mxu0
        %1874 = vmatprep.mubr.f32.mxu0 0.0
        %1875 = vmatmul.mubr.f32.gmra.mrb[0].mxu0 %v1334
        %v1876 = vpop.f32.mrb[0].mxu0
        %v1877 = vadd.f32 0.0, %v1876
        %v1878 = vpop.f32.mrb[0].mxu0
        %1879 = vmatprep.mubr.f32.mxu0 0.0
        %1880 = vmatmul.mubr.f32.gmra.mrb[0].mxu0 %v1335
        %v1881 = vpop.f32.mrb[0].mxu0
        %v1882 = vadd.f32 0.0, %v1881
        %v1883 = vpop.f32.mrb[0].mxu0
        %1884 = vmatprep.mubr.f32.mxu0 0.0
        %1885 = vmatmul.mubr.f32.gmra.mrb[0].mxu0 %v1336
        %v1886 = vpop.f32.mrb[0].mxu0
        %v1887 = vadd.f32 0.0, %v1886
        %v1888 = vpop.f32.mrb[0].mxu0
        %1889 = vmatprep.mubr.f32.mxu0 0.0
        %1890 = vmatmul.mubr.f32.gmra.mrb[0].mxu0 %v1337
        %v1891 = vpop.f32.mrb[0].mxu0
        %v1892 = vadd.f32 0.0, %v1891
        %v1893 = vpop.f32.mrb[0].mxu0
        %1894 = vmatprep.mubr.f32.mxu0 0.0
        %1895 = vmatmul.mubr.f32.gmra.mrb[0].mxu0 %v1338
        %v1896 = vpop.f32.mrb[0].mxu0
        %v1897 = vadd.f32 0.0, %v1896
        %v1898 = vpop.f32.mrb[0].mxu0
        %1899 = vmatprep.mubr.f32.mxu0 0.0
        %1900 = vmatmul.mubr.f32.gmra.mrb[0].mxu0 %v1339
        %v1901 = vpop.f32.mrb[0].mxu0
        %v1902 = vadd.f32 0.0, %v1901
        %v1903 = vpop.f32.mrb[0].mxu0
        %1904 = vmatprep.mubr.f32.mxu0 0.0
        %1905 = vmatmul.mubr.f32.gmra.mrb[0].mxu0 %v1340
        %v1906 = vpop.f32.mrb[0].mxu0
        %v1907 = vadd.f32 0.0, %v1906
        %v1908 = vpop.f32.mrb[0].mxu0
        %1909 = vmatprep.mubr.f32.mxu0 0.0
        %1910 = vmatmul.mubr.f32.gmra.mrb[0].mxu0 %v1341
        %v1911 = vpop.f32.mrb[0].mxu0
        %v1912 = vadd.f32 0.0, %v1911
        %v1913 = vpop.f32.mrb[0].mxu0
        %1914 = vmatprep.mubr.f32.mxu0 0.0
        %1915 = vmatmul.mubr.f32.gmra.mrb[0].mxu0 %v1342
        %v1916 = vpop.f32.mrb[0].mxu0
        %v1917 = vadd.f32 0.0, %v1916
        %v1918 = vpop.f32.mrb[0].mxu0
        %1919 = vmatprep.mubr.f32.mxu0 0.0
        %1920 = vmatmul.mubr.f32.gmra.mrb[0].mxu0 %v1343
        %v1921 = vpop.f32.mrb[0].mxu0
        %v1922 = vadd.f32 0.0, %v1921
        %v1923 = vpop.f32.mrb[0].mxu0
        %1924 = vmatprep.mubr.f32.mxu0 0.0
        %1925 = vmatmul.mubr.f32.gmra.mrb[0].mxu0 %v1344
        %v1926 = vpop.f32.mrb[0].mxu0
        %v1927 = vadd.f32 0.0, %v1926
        %v1928 = vpop.f32.mrb[0].mxu0
        %1929 = vmatprep.mubr.f32.mxu0 0.0
        %1930 = vmatmul.mubr.f32.gmra.mrb[0].mxu0 %v1345
        %v1931 = vpop.f32.mrb[0].mxu0
        %v1932 = vadd.f32 0.0, %v1931
        %v1933 = vpop.f32.mrb[0].mxu0
        %1934 = vmatprep.mubr.f32.mxu0 0.0
        %1935 = vmatmul.mubr.f32.gmra.mrb[0].mxu0 %v1346
        %v1936 = vpop.f32.mrb[0].mxu0
        %v1937 = vadd.f32 0.0, %v1936
        %v1938 = vpop.f32.mrb[0].mxu0
        %1939 = vmatprep.mubr.f32.mxu0 0.0
        %1940 = vmatmul.mubr.f32.gmra.mrb[0].mxu0 %v1347
        %v1941 = vpop.f32.mrb[0].mxu0
        %v1942 = vadd.f32 0.0, %v1941
        %v1943 = vpop.f32.mrb[0].mxu0
        %1944 = vmatprep.mubr.f32.mxu0 0.0
        %1945 = vmatmul.mubr.f32.gmra.mrb[0].mxu0 %v1348
        %v1946 = vpop.f32.mrb[0].mxu0
        %v1947 = vadd.f32 0.0, %v1946
        %v1948 = vpop.f32.mrb[0].mxu0
        %1949 = vmatprep.mubr.f32.mxu0 0.0
        %1950 = vmatmul.mubr.f32.gmra.mrb[0].mxu0 %v1349
        %v1951 = vpop.f32.mrb[0].mxu0
        %v1952 = vadd.f32 0.0, %v1951
        %v1953 = vpop.f32.mrb[0].mxu0
        %1954 = vmatprep.mubr.f32.mxu0 0.0
        %1955 = vmatmul.mubr.f32.gmra.mrb[0].mxu0 %v1350
        %v1956 = vpop.f32.mrb[0].mxu0
        %v1957 = vadd.f32 0.0, %v1956
        %v1958 = vpop.f32.mrb[0].mxu0
        %1959 = vmatprep.mubr.f32.mxu0 0.0
        %1960 = vmatmul.mubr.f32.gmra.mrb[0].mxu0 %v1351
        %v1961 = vpop.f32.mrb[0].mxu0
        %v1962 = vadd.f32 0.0, %v1961
        %v1963 = vpop.f32.mrb[0].mxu0
        %1964 = vmatprep.mubr.f32.mxu0 0.0
        %1965 = vmatmul.mubr.f32.gmra.mrb[0].mxu0 %v1352
        %v1966 = vpop.f32.mrb[0].mxu0
        %v1967 = vadd.f32 0.0, %v1966
        %v1968 = vpop.f32.mrb[0].mxu0
        %1969 = vmatprep.mubr.f32.mxu0 0.0
        %1970 = vmatmul.mubr.f32.gmra.mrb[0].mxu0 %v1353
        %v1971 = vpop.f32.mrb[0].mxu0
        %v1972 = vadd.f32 0.0, %v1971
        %v1973 = vpop.f32.mrb[0].mxu0
        %1974 = vmatprep.mubr.f32.mxu0 0.0
        %1975 = vmatmul.mubr.f32.gmra.mrb[0].mxu0 %v1354
        %v1976 = vpop.f32.mrb[0].mxu0
        %v1977 = vadd.f32 0.0, %v1976
        %v1978 = vpop.f32.mrb[0].mxu0
        %1979 = vmatprep.mubr.f32.mxu0 0.0
        %1980 = vmatmul.mubr.f32.gmra.mrb[0].mxu0 %v1355
        %v1981 = vpop.f32.mrb[0].mxu0
        %v1982 = vadd.f32 0.0, %v1981
        %v1983 = vpop.f32.mrb[0].mxu0
        %1984 = vmatprep.mubr.f32.mxu0 0.0
        %1985 = vmatmul.mubr.f32.gmra.mrb[0].mxu0 %v1356
        %v1986 = vpop.f32.mrb[0].mxu0
        %v1987 = vadd.f32 0.0, %v1986
        %v1988 = vpop.f32.mrb[0].mxu0
        %1989 = vmatprep.mubr.f32.mxu0 0.0
        %1990 = vmatmul.mubr.f32.gmra.mrb[0].mxu0 %v1357
        %v1991 = vpop.f32.mrb[0].mxu0
        %v1992 = vadd.f32 0.0, %v1991
        %v1993 = vpop.f32.mrb[0].mxu0
        %1994 = vmatprep.mubr.f32.mxu0 0.0
        %1995 = vmatmul.mubr.f32.gmra.mrb[0].mxu0 %v1358
        %v1996 = vpop.f32.mrb[0].mxu0
        %v1997 = vadd.f32 0.0, %v1996
        %v1998 = vpop.f32.mrb[0].mxu0
        %1999 = vmatprep.mubr.f32.mxu0 0.0
        %2000 = vmatmul.mubr.f32.gmra.mrb[0].mxu0 %v1359
        %v2001 = vpop.f32.mrb[0].mxu0
        %v2002 = vadd.f32 0.0, %v2001
        %v2003 = vpop.f32.mrb[0].mxu0
        %2004 = vmatprep.mubr.f32.mxu0 0.0
        %2005 = vmatmul.mubr.f32.gmra.mrb[0].mxu0 %v1360
        %v2006 = vpop.f32.mrb[0].mxu0
        %v2007 = vadd.f32 0.0, %v2006
        %v2008 = vpop.f32.mrb[0].mxu0
        %2009 = vmatprep.mubr.f32.mxu0 0.0
        %2010 = vmatmul.mubr.f32.gmra.mrb[0].mxu0 %v1361
        %v2011 = vpop.f32.mrb[0].mxu0
        %v2012 = vadd.f32 0.0, %v2011
        %v2013 = vpop.f32.mrb[0].mxu0
        %2014 = vmatprep.mubr.f32.mxu0 0.0
        %2015 = vmatmul.mubr.f32.gmra.mrb[0].mxu0 %v1362
        %v2016 = vpop.f32.mrb[0].mxu0
        %v2017 = vadd.f32 0.0, %v2016
        %v2018 = vpop.f32.mrb[0].mxu0
        %2019 = vmatprep.mubr.f32.mxu0 0.0
        %2020 = vmatmul.mubr.f32.gmra.mrb[0].mxu0 %v1363
        %v2021 = vpop.f32.mrb[0].mxu0
        %v2022 = vadd.f32 0.0, %v2021
        %v2023 = vpop.f32.mrb[0].mxu0
        %2024 = vmatprep.mubr.f32.mxu0 0.0
        %2025 = vmatmul.mubr.f32.gmra.mrb[0].mxu0 %v1364
        %v2026 = vpop.f32.mrb[0].mxu0
        %v2027 = vadd.f32 0.0, %v2026
        %v2028 = vpop.f32.mrb[0].mxu0
        %2029 = vmatprep.mubr.f32.mxu0 0.0
        %2030 = vmatmul.mubr.f32.gmra.mrb[0].mxu0 %v1365
        %v2031 = vpop.f32.mrb[0].mxu0
        %v2032 = vadd.f32 0.0, %v2031
        %v2033 = vpop.f32.mrb[0].mxu0
        %2034 = vmatprep.mubr.f32.mxu0 0.0
        %2035 = vmatmul.mubr.f32.gmra.mrb[0].mxu0 %v1366
        %v2036 = vpop.f32.mrb[0].mxu0
        %v2037 = vadd.f32 0.0, %v2036
        %v2038 = vpop.f32.mrb[0].mxu0
        %2039 = vmatprep.mubr.f32.mxu0 0.0
        %2040 = vmatmul.mubr.f32.gmra.mrb[0].mxu0 %v1367
        %v2041 = vpop.f32.mrb[0].mxu0
        %v2042 = vadd.f32 0.0, %v2041
        %v2043 = vpop.f32.mrb[0].mxu0
        %2044 = vmatprep.mubr.f32.mxu0 0.0
        %2045 = vmatmul.mubr.f32.gmra.mrb[0].mxu0 %v1368
        %v2046 = vpop.f32.mrb[0].mxu0
        %v2047 = vadd.f32 0.0, %v2046
        %v2048 = vpop.f32.mrb[0].mxu0
        %2049 = vmatprep.mubr.f32.mxu0 0.0
        %2050 = vmatmul.mubr.f32.gmra.mrb[0].mxu0 %v1369
        %v2051 = vpop.f32.mrb[0].mxu0
        %v2052 = vadd.f32 0.0, %v2051
        %v2053 = vpop.f32.mrb[0].mxu0
        %2054 = vmatprep.mubr.f32.mxu0 0.0
        %2055 = vmatmul.mubr.f32.gmra.mrb[0].mxu0 %v1370
        %v2056 = vpop.f32.mrb[0].mxu0
        %v2057 = vadd.f32 0.0, %v2056
        %v2058 = vpop.f32.mrb[0].mxu0
        %2059 = vmatprep.mubr.f32.mxu0 0.0
        %2060 = vmatmul.mubr.f32.gmra.mrb[0].mxu0 %v1371
        %v2061 = vpop.f32.mrb[0].mxu0
        %v2062 = vadd.f32 0.0, %v2061
        %v2063 = vpop.f32.mrb[0].mxu0
        %2064 = vmatprep.mubr.f32.mxu0 0.0
        %2065 = vmatmul.mubr.f32.gmra.mrb[0].mxu0 %v1372
        %v2066 = vpop.f32.mrb[0].mxu0
        %v2067 = vadd.f32 0.0, %v2066
        %v2068 = vpop.f32.mrb[0].mxu0
        %2069 = vmatprep.mubr.f32.mxu0 0.0
        %2070 = vmatmul.mubr.f32.gmra.mrb[0].mxu0 %v1373
        %v2071 = vpop.f32.mrb[0].mxu0
        %v2072 = vadd.f32 0.0, %v2071
        %v2073 = vpop.f32.mrb[0].mxu0
        %2074 = vmatprep.mubr.f32.mxu0 0.0
        %2075 = vmatmul.mubr.f32.gmra.mrb[0].mxu0 %v1374
        %v2076 = vpop.f32.mrb[0].mxu0
        %v2077 = vadd.f32 0.0, %v2076
        %v2078 = vpop.f32.mrb[0].mxu0
        %2079 = vdwg.mxu0
        %v2080 = vld [vmem:[#allocation2] sm:$0xff]
        %v2081 = vld [vmem:[#allocation2 + $0x8] sm:$0xff]
        %v2082 = vld [vmem:[#allocation2 + $0x10] sm:$0xff]
        %v2083 = vld [vmem:[#allocation2 + $0x18] sm:$0xff]
        %v2084 = vld [vmem:[#allocation2 + $0x20] sm:$0xff]
        %v2085 = vld [vmem:[#allocation2 + $0x28] sm:$0xff]
        %v2086 = vld [vmem:[#allocation2 + $0x30] sm:$0xff]
        %v2087 = vld [vmem:[#allocation2 + $0x38] sm:$0xff]
        %v2088 = vld [vmem:[#allocation2 + $0x40] sm:$0xff]
        %v2089 = vld [vmem:[#allocation2 + $0x48] sm:$0xff]
        %v2090 = vld [vmem:[#allocation2 + $0x50] sm:$0xff]
        %v2091 = vld [vmem:[#allocation2 + $0x58] sm:$0xff]
        %v2092 = vld [vmem:[#allocation2 + $0x60] sm:$0xff]
        %v2093 = vld [vmem:[#allocation2 + $0x68] sm:$0xff]
        %v2094 = vld [vmem:[#allocation2 + $0x70] sm:$0xff]
        %v2095 = vld [vmem:[#allocation2 + $0x78] sm:$0xff]
        %v2096 = vld [vmem:[#allocation2 + $0x80] sm:$0xff]
        %v2097 = vld [vmem:[#allocation2 + $0x88] sm:$0xff]
        %v2098 = vld [vmem:[#allocation2 + $0x90] sm:$0xff]
        %v2099 = vld [vmem:[#allocation2 + $0x98] sm:$0xff]
        %v2100 = vld [vmem:[#allocation2 + $0xa0] sm:$0xff]
        %v2101 = vld [vmem:[#allocation2 + $0xa8] sm:$0xff]
        %v2102 = vld [vmem:[#allocation2 + $0xb0] sm:$0xff]
        %v2103 = vld [vmem:[#allocation2 + $0xb8] sm:$0xff]
        %v2104 = vld [vmem:[#allocation2 + $0xc0] sm:$0xff]
        %v2105 = vld [vmem:[#allocation2 + $0xc8] sm:$0xff]
        %v2106 = vld [vmem:[#allocation2 + $0xd0] sm:$0xff]
        %v2107 = vld [vmem:[#allocation2 + $0xd8] sm:$0xff]
        %v2108 = vld [vmem:[#allocation2 + $0xe0] sm:$0xff]
        %v2109 = vld [vmem:[#allocation2 + $0xe8] sm:$0xff]
        %v2110 = vld [vmem:[#allocation2 + $0xf0] sm:$0xff]
        %v2111 = vld [vmem:[#allocation2 + $0xf8] sm:$0xff]
        %v2112 = vld [vmem:[#allocation2 + $0x100] sm:$0xff]
        %v2113 = vld [vmem:[#allocation2 + $0x108] sm:$0xff]
        %v2114 = vld [vmem:[#allocation2 + $0x110] sm:$0xff]
        %v2115 = vld [vmem:[#allocation2 + $0x118] sm:$0xff]
        %v2116 = vld [vmem:[#allocation2 + $0x120] sm:$0xff]
        %v2117 = vld [vmem:[#allocation2 + $0x128] sm:$0xff]
        %v2118 = vld [vmem:[#allocation2 + $0x130] sm:$0xff]
        %v2119 = vld [vmem:[#allocation2 + $0x138] sm:$0xff]
        %v2120 = vld [vmem:[#allocation2 + $0x140] sm:$0xff]
        %v2121 = vld [vmem:[#allocation2 + $0x148] sm:$0xff]
        %v2122 = vld [vmem:[#allocation2 + $0x150] sm:$0xff]
        %v2123 = vld [vmem:[#allocation2 + $0x158] sm:$0xff]
        %v2124 = vld [vmem:[#allocation2 + $0x160] sm:$0xff]
        %v2125 = vld [vmem:[#allocation2 + $0x168] sm:$0xff]
        %v2126 = vld [vmem:[#allocation2 + $0x170] sm:$0xff]
        %v2127 = vld [vmem:[#allocation2 + $0x178] sm:$0xff]
        %v2128 = vld [vmem:[#allocation2 + $0x180] sm:$0xff]
        %v2129 = vld [vmem:[#allocation2 + $0x188] sm:$0xff]
        %v2130 = vld [vmem:[#allocation2 + $0x190] sm:$0xff]
        %v2131 = vld [vmem:[#allocation2 + $0x198] sm:$0xff]
        %v2132 = vld [vmem:[#allocation2 + $0x1a0] sm:$0xff]
        %v2133 = vld [vmem:[#allocation2 + $0x1a8] sm:$0xff]
        %v2134 = vld [vmem:[#allocation2 + $0x1b0] sm:$0xff]
        %v2135 = vld [vmem:[#allocation2 + $0x1b8] sm:$0xff]
        %v2136 = vld [vmem:[#allocation2 + $0x1c0] sm:$0xff]
        %v2137 = vld [vmem:[#allocation2 + $0x1c8] sm:$0xff]
        %v2138 = vld [vmem:[#allocation2 + $0x1d0] sm:$0xff]
        %v2139 = vld [vmem:[#allocation2 + $0x1d8] sm:$0xff]
        %v2140 = vld [vmem:[#allocation2 + $0x1e0] sm:$0xff]
        %v2141 = vld [vmem:[#allocation2 + $0x1e8] sm:$0xff]
        %v2142 = vld [vmem:[#allocation2 + $0x1f0] sm:$0xff]
        %v2143 = vld [vmem:[#allocation2 + $0x1f8] sm:$0xff]
        %v2144 = vld [vmem:[#allocation2 + $0x200] sm:$0xff]
        %v2145 = vld [vmem:[#allocation2 + $0x208] sm:$0xff]
        %v2146 = vld [vmem:[#allocation2 + $0x210] sm:$0xff]
        %v2147 = vld [vmem:[#allocation2 + $0x218] sm:$0xff]
        %v2148 = vld [vmem:[#allocation2 + $0x220] sm:$0xff]
        %v2149 = vld [vmem:[#allocation2 + $0x228] sm:$0xff]
        %v2150 = vld [vmem:[#allocation2 + $0x230] sm:$0xff]
        %v2151 = vld [vmem:[#allocation2 + $0x238] sm:$0xff]
        %v2152 = vld [vmem:[#allocation2 + $0x240] sm:$0xff]
        %v2153 = vld [vmem:[#allocation2 + $0x248] sm:$0xff]
        %v2154 = vld [vmem:[#allocation2 + $0x250] sm:$0xff]
        %v2155 = vld [vmem:[#allocation2 + $0x258] sm:$0xff]
        %v2156 = vld [vmem:[#allocation2 + $0x260] sm:$0xff]
        %v2157 = vld [vmem:[#allocation2 + $0x268] sm:$0xff]
        %v2158 = vld [vmem:[#allocation2 + $0x270] sm:$0xff]
        %v2159 = vld [vmem:[#allocation2 + $0x278] sm:$0xff]
        %v2160 = vld [vmem:[#allocation2 + $0x280] sm:$0xff]
        %v2161 = vld [vmem:[#allocation2 + $0x288] sm:$0xff]
        %v2162 = vld [vmem:[#allocation2 + $0x290] sm:$0xff]
        %v2163 = vld [vmem:[#allocation2 + $0x298] sm:$0xff]
        %v2164 = vld [vmem:[#allocation2 + $0x2a0] sm:$0xff]
        %v2165 = vld [vmem:[#allocation2 + $0x2a8] sm:$0xff]
        %v2166 = vld [vmem:[#allocation2 + $0x2b0] sm:$0xff]
        %v2167 = vld [vmem:[#allocation2 + $0x2b8] sm:$0xff]
        %v2168 = vld [vmem:[#allocation2 + $0x2c0] sm:$0xff]
        %v2169 = vld [vmem:[#allocation2 + $0x2c8] sm:$0xff]
        %v2170 = vld [vmem:[#allocation2 + $0x2d0] sm:$0xff]
        %v2171 = vld [vmem:[#allocation2 + $0x2d8] sm:$0xff]
        %v2172 = vld [vmem:[#allocation2 + $0x2e0] sm:$0xff]
        %v2173 = vld [vmem:[#allocation2 + $0x2e8] sm:$0xff]
        %v2174 = vld [vmem:[#allocation2 + $0x2f0] sm:$0xff]
        %v2175 = vld [vmem:[#allocation2 + $0x2f8] sm:$0xff]
        %v2176 = vld [vmem:[#allocation2 + $0x300] sm:$0xff]
        %v2177 = vld [vmem:[#allocation2 + $0x308] sm:$0xff]
        %v2178 = vld [vmem:[#allocation2 + $0x310] sm:$0xff]
        %v2179 = vld [vmem:[#allocation2 + $0x318] sm:$0xff]
        %v2180 = vld [vmem:[#allocation2 + $0x320] sm:$0xff]
        %v2181 = vld [vmem:[#allocation2 + $0x328] sm:$0xff]
        %v2182 = vld [vmem:[#allocation2 + $0x330] sm:$0xff]
        %v2183 = vld [vmem:[#allocation2 + $0x338] sm:$0xff]
        %v2184 = vld [vmem:[#allocation2 + $0x340] sm:$0xff]
        %v2185 = vld [vmem:[#allocation2 + $0x348] sm:$0xff]
        %v2186 = vld [vmem:[#allocation2 + $0x350] sm:$0xff]
        %v2187 = vld [vmem:[#allocation2 + $0x358] sm:$0xff]
        %v2188 = vld [vmem:[#allocation2 + $0x360] sm:$0xff]
        %v2189 = vld [vmem:[#allocation2 + $0x368] sm:$0xff]
        %v2190 = vld [vmem:[#allocation2 + $0x370] sm:$0xff]
        %v2191 = vld [vmem:[#allocation2 + $0x378] sm:$0xff]
        %v2192 = vld [vmem:[#allocation2 + $0x380] sm:$0xff]
        %v2193 = vld [vmem:[#allocation2 + $0x388] sm:$0xff]
        %v2194 = vld [vmem:[#allocation2 + $0x390] sm:$0xff]
        %v2195 = vld [vmem:[#allocation2 + $0x398] sm:$0xff]
        %v2196 = vld [vmem:[#allocation2 + $0x3a0] sm:$0xff]
        %v2197 = vld [vmem:[#allocation2 + $0x3a8] sm:$0xff]
        %v2198 = vld [vmem:[#allocation2 + $0x3b0] sm:$0xff]
        %v2199 = vld [vmem:[#allocation2 + $0x3b8] sm:$0xff]
        %v2200 = vld [vmem:[#allocation2 + $0x3c0] sm:$0xff]
        %v2201 = vld [vmem:[#allocation2 + $0x3c8] sm:$0xff]
        %v2202 = vld [vmem:[#allocation2 + $0x3d0] sm:$0xff]
        %v2203 = vld [vmem:[#allocation2 + $0x3d8] sm:$0xff]
        %v2204 = vld [vmem:[#allocation2 + $0x3e0] sm:$0xff]
        %v2205 = vld [vmem:[#allocation2 + $0x3e8] sm:$0xff]
        %v2206 = vld [vmem:[#allocation2 + $0x3f0] sm:$0xff]
        %v2207 = vld [vmem:[#allocation2 + $0x3f8] sm:$0xff]
        %vm2208 = vcmp.gt.f32.partialorder %v2080, 0.0
        %vm2209 = vcmp.gt.f32.partialorder %v2081, 0.0
        %vm2210 = vcmp.gt.f32.partialorder %v2082, 0.0
        %vm2211 = vcmp.gt.f32.partialorder %v2083, 0.0
        %vm2212 = vcmp.gt.f32.partialorder %v2084, 0.0
        %vm2213 = vcmp.gt.f32.partialorder %v2085, 0.0
        %vm2214 = vcmp.gt.f32.partialorder %v2086, 0.0
        %vm2215 = vcmp.gt.f32.partialorder %v2087, 0.0
        %vm2216 = vcmp.gt.f32.partialorder %v2088, 0.0
        %vm2217 = vcmp.gt.f32.partialorder %v2089, 0.0
        %vm2218 = vcmp.gt.f32.partialorder %v2090, 0.0
        %vm2219 = vcmp.gt.f32.partialorder %v2091, 0.0
        %vm2220 = vcmp.gt.f32.partialorder %v2092, 0.0
        %vm2221 = vcmp.gt.f32.partialorder %v2093, 0.0
        %vm2222 = vcmp.gt.f32.partialorder %v2094, 0.0
        %vm2223 = vcmp.gt.f32.partialorder %v2095, 0.0
        %vm2224 = vcmp.gt.f32.partialorder %v2096, 0.0
        %vm2225 = vcmp.gt.f32.partialorder %v2097, 0.0
        %vm2226 = vcmp.gt.f32.partialorder %v2098, 0.0
        %vm2227 = vcmp.gt.f32.partialorder %v2099, 0.0
        %vm2228 = vcmp.gt.f32.partialorder %v2100, 0.0
        %vm2229 = vcmp.gt.f32.partialorder %v2101, 0.0
        %vm2230 = vcmp.gt.f32.partialorder %v2102, 0.0
        %vm2231 = vcmp.gt.f32.partialorder %v2103, 0.0
        %vm2232 = vcmp.gt.f32.partialorder %v2104, 0.0
        %vm2233 = vcmp.gt.f32.partialorder %v2105, 0.0
        %vm2234 = vcmp.gt.f32.partialorder %v2106, 0.0
        %vm2235 = vcmp.gt.f32.partialorder %v2107, 0.0
        %vm2236 = vcmp.gt.f32.partialorder %v2108, 0.0
        %vm2237 = vcmp.gt.f32.partialorder %v2109, 0.0
        %vm2238 = vcmp.gt.f32.partialorder %v2110, 0.0
        %vm2239 = vcmp.gt.f32.partialorder %v2111, 0.0
        %vm2240 = vcmp.gt.f32.partialorder %v2112, 0.0
        %vm2241 = vcmp.gt.f32.partialorder %v2113, 0.0
        %vm2242 = vcmp.gt.f32.partialorder %v2114, 0.0
        %vm2243 = vcmp.gt.f32.partialorder %v2115, 0.0
        %vm2244 = vcmp.gt.f32.partialorder %v2116, 0.0
        %vm2245 = vcmp.gt.f32.partialorder %v2117, 0.0
        %vm2246 = vcmp.gt.f32.partialorder %v2118, 0.0
        %vm2247 = vcmp.gt.f32.partialorder %v2119, 0.0
        %vm2248 = vcmp.gt.f32.partialorder %v2120, 0.0
        %vm2249 = vcmp.gt.f32.partialorder %v2121, 0.0
        %vm2250 = vcmp.gt.f32.partialorder %v2122, 0.0
        %vm2251 = vcmp.gt.f32.partialorder %v2123, 0.0
        %vm2252 = vcmp.gt.f32.partialorder %v2124, 0.0
        %vm2253 = vcmp.gt.f32.partialorder %v2125, 0.0
        %vm2254 = vcmp.gt.f32.partialorder %v2126, 0.0
        %vm2255 = vcmp.gt.f32.partialorder %v2127, 0.0
        %vm2256 = vcmp.gt.f32.partialorder %v2128, 0.0
        %vm2257 = vcmp.gt.f32.partialorder %v2129, 0.0
        %vm2258 = vcmp.gt.f32.partialorder %v2130, 0.0
        %vm2259 = vcmp.gt.f32.partialorder %v2131, 0.0
        %vm2260 = vcmp.gt.f32.partialorder %v2132, 0.0
        %vm2261 = vcmp.gt.f32.partialorder %v2133, 0.0
        %vm2262 = vcmp.gt.f32.partialorder %v2134, 0.0
        %vm2263 = vcmp.gt.f32.partialorder %v2135, 0.0
        %vm2264 = vcmp.gt.f32.partialorder %v2136, 0.0
        %vm2265 = vcmp.gt.f32.partialorder %v2137, 0.0
        %vm2266 = vcmp.gt.f32.partialorder %v2138, 0.0
        %vm2267 = vcmp.gt.f32.partialorder %v2139, 0.0
        %vm2268 = vcmp.gt.f32.partialorder %v2140, 0.0
        %vm2269 = vcmp.gt.f32.partialorder %v2141, 0.0
        %vm2270 = vcmp.gt.f32.partialorder %v2142, 0.0
        %vm2271 = vcmp.gt.f32.partialorder %v2143, 0.0
        %vm2272 = vcmp.gt.f32.partialorder %v2144, 0.0
        %vm2273 = vcmp.gt.f32.partialorder %v2145, 0.0
        %vm2274 = vcmp.gt.f32.partialorder %v2146, 0.0
        %vm2275 = vcmp.gt.f32.partialorder %v2147, 0.0
        %vm2276 = vcmp.gt.f32.partialorder %v2148, 0.0
        %vm2277 = vcmp.gt.f32.partialorder %v2149, 0.0
        %vm2278 = vcmp.gt.f32.partialorder %v2150, 0.0
        %vm2279 = vcmp.gt.f32.partialorder %v2151, 0.0
        %vm2280 = vcmp.gt.f32.partialorder %v2152, 0.0
        %vm2281 = vcmp.gt.f32.partialorder %v2153, 0.0
        %vm2282 = vcmp.gt.f32.partialorder %v2154, 0.0
        %vm2283 = vcmp.gt.f32.partialorder %v2155, 0.0
        %vm2284 = vcmp.gt.f32.partialorder %v2156, 0.0
        %vm2285 = vcmp.gt.f32.partialorder %v2157, 0.0
        %vm2286 = vcmp.gt.f32.partialorder %v2158, 0.0
        %vm2287 = vcmp.gt.f32.partialorder %v2159, 0.0
        %vm2288 = vcmp.gt.f32.partialorder %v2160, 0.0
        %vm2289 = vcmp.gt.f32.partialorder %v2161, 0.0
        %vm2290 = vcmp.gt.f32.partialorder %v2162, 0.0
        %vm2291 = vcmp.gt.f32.partialorder %v2163, 0.0
        %vm2292 = vcmp.gt.f32.partialorder %v2164, 0.0
        %vm2293 = vcmp.gt.f32.partialorder %v2165, 0.0
        %vm2294 = vcmp.gt.f32.partialorder %v2166, 0.0
        %vm2295 = vcmp.gt.f32.partialorder %v2167, 0.0
        %vm2296 = vcmp.gt.f32.partialorder %v2168, 0.0
        %vm2297 = vcmp.gt.f32.partialorder %v2169, 0.0
        %vm2298 = vcmp.gt.f32.partialorder %v2170, 0.0
        %vm2299 = vcmp.gt.f32.partialorder %v2171, 0.0
        %vm2300 = vcmp.gt.f32.partialorder %v2172, 0.0
        %vm2301 = vcmp.gt.f32.partialorder %v2173, 0.0
        %vm2302 = vcmp.gt.f32.partialorder %v2174, 0.0
        %vm2303 = vcmp.gt.f32.partialorder %v2175, 0.0
        %vm2304 = vcmp.gt.f32.partialorder %v2176, 0.0
        %vm2305 = vcmp.gt.f32.partialorder %v2177, 0.0
        %vm2306 = vcmp.gt.f32.partialorder %v2178, 0.0
        %vm2307 = vcmp.gt.f32.partialorder %v2179, 0.0
        %vm2308 = vcmp.gt.f32.partialorder %v2180, 0.0
        %vm2309 = vcmp.gt.f32.partialorder %v2181, 0.0
        %vm2310 = vcmp.gt.f32.partialorder %v2182, 0.0
        %vm2311 = vcmp.gt.f32.partialorder %v2183, 0.0
        %vm2312 = vcmp.gt.f32.partialorder %v2184, 0.0
        %vm2313 = vcmp.gt.f32.partialorder %v2185, 0.0
        %vm2314 = vcmp.gt.f32.partialorder %v2186, 0.0
        %vm2315 = vcmp.gt.f32.partialorder %v2187, 0.0
        %vm2316 = vcmp.gt.f32.partialorder %v2188, 0.0
        %vm2317 = vcmp.gt.f32.partialorder %v2189, 0.0
        %vm2318 = vcmp.gt.f32.partialorder %v2190, 0.0
        %vm2319 = vcmp.gt.f32.partialorder %v2191, 0.0
        %vm2320 = vcmp.gt.f32.partialorder %v2192, 0.0
        %vm2321 = vcmp.gt.f32.partialorder %v2193, 0.0
        %vm2322 = vcmp.gt.f32.partialorder %v2194, 0.0
        %vm2323 = vcmp.gt.f32.partialorder %v2195, 0.0
        %vm2324 = vcmp.gt.f32.partialorder %v2196, 0.0
        %vm2325 = vcmp.gt.f32.partialorder %v2197, 0.0
        %vm2326 = vcmp.gt.f32.partialorder %v2198, 0.0
        %vm2327 = vcmp.gt.f32.partialorder %v2199, 0.0
        %vm2328 = vcmp.gt.f32.partialorder %v2200, 0.0
        %vm2329 = vcmp.gt.f32.partialorder %v2201, 0.0
        %vm2330 = vcmp.gt.f32.partialorder %v2202, 0.0
        %vm2331 = vcmp.gt.f32.partialorder %v2203, 0.0
        %vm2332 = vcmp.gt.f32.partialorder %v2204, 0.0
        %vm2333 = vcmp.gt.f32.partialorder %v2205, 0.0
        %vm2334 = vcmp.gt.f32.partialorder %v2206, 0.0
        %vm2335 = vcmp.gt.f32.partialorder %v2207, 0.0
        %v2336 = vsel %vm2208, 1, 0
        %v2337 = vsel %vm2209, 1, 0
        %v2338 = vsel %vm2210, 1, 0
        %v2339 = vsel %vm2211, 1, 0
        %v2340 = vsel %vm2212, 1, 0
        %v2341 = vsel %vm2213, 1, 0
        %v2342 = vsel %vm2214, 1, 0
        %v2343 = vsel %vm2215, 1, 0
        %v2344 = vsel %vm2216, 1, 0
        %v2345 = vsel %vm2217, 1, 0
        %v2346 = vsel %vm2218, 1, 0
        %v2347 = vsel %vm2219, 1, 0
        %v2348 = vsel %vm2220, 1, 0
        %v2349 = vsel %vm2221, 1, 0
        %v2350 = vsel %vm2222, 1, 0
        %v2351 = vsel %vm2223, 1, 0
        %v2352 = vsel %vm2224, 1, 0
        %v2353 = vsel %vm2225, 1, 0
        %v2354 = vsel %vm2226, 1, 0
        %v2355 = vsel %vm2227, 1, 0
        %v2356 = vsel %vm2228, 1, 0
        %v2357 = vsel %vm2229, 1, 0
        %v2358 = vsel %vm2230, 1, 0
        %v2359 = vsel %vm2231, 1, 0
        %v2360 = vsel %vm2232, 1, 0
        %v2361 = vsel %vm2233, 1, 0
        %v2362 = vsel %vm2234, 1, 0
        %v2363 = vsel %vm2235, 1, 0
        %v2364 = vsel %vm2236, 1, 0
        %v2365 = vsel %vm2237, 1, 0
        %v2366 = vsel %vm2238, 1, 0
        %v2367 = vsel %vm2239, 1, 0
        %v2368 = vsel %vm2240, 1, 0
        %v2369 = vsel %vm2241, 1, 0
        %v2370 = vsel %vm2242, 1, 0
        %v2371 = vsel %vm2243, 1, 0
        %v2372 = vsel %vm2244, 1, 0
        %v2373 = vsel %vm2245, 1, 0
        %v2374 = vsel %vm2246, 1, 0
        %v2375 = vsel %vm2247, 1, 0
        %v2376 = vsel %vm2248, 1, 0
        %v2377 = vsel %vm2249, 1, 0
        %v2378 = vsel %vm2250, 1, 0
        %v2379 = vsel %vm2251, 1, 0
        %v2380 = vsel %vm2252, 1, 0
        %v2381 = vsel %vm2253, 1, 0
        %v2382 = vsel %vm2254, 1, 0
        %v2383 = vsel %vm2255, 1, 0
        %v2384 = vsel %vm2256, 1, 0
        %v2385 = vsel %vm2257, 1, 0
        %v2386 = vsel %vm2258, 1, 0
        %v2387 = vsel %vm2259, 1, 0
        %v2388 = vsel %vm2260, 1, 0
        %v2389 = vsel %vm2261, 1, 0
        %v2390 = vsel %vm2262, 1, 0
        %v2391 = vsel %vm2263, 1, 0
        %v2392 = vsel %vm2264, 1, 0
        %v2393 = vsel %vm2265, 1, 0
        %v2394 = vsel %vm2266, 1, 0
        %v2395 = vsel %vm2267, 1, 0
        %v2396 = vsel %vm2268, 1, 0
        %v2397 = vsel %vm2269, 1, 0
        %v2398 = vsel %vm2270, 1, 0
        %v2399 = vsel %vm2271, 1, 0
        %v2400 = vsel %vm2272, 1, 0
        %v2401 = vsel %vm2273, 1, 0
        %v2402 = vsel %vm2274, 1, 0
        %v2403 = vsel %vm2275, 1, 0
        %v2404 = vsel %vm2276, 1, 0
        %v2405 = vsel %vm2277, 1, 0
        %v2406 = vsel %vm2278, 1, 0
        %v2407 = vsel %vm2279, 1, 0
        %v2408 = vsel %vm2280, 1, 0
        %v2409 = vsel %vm2281, 1, 0
        %v2410 = vsel %vm2282, 1, 0
        %v2411 = vsel %vm2283, 1, 0
        %v2412 = vsel %vm2284, 1, 0
        %v2413 = vsel %vm2285, 1, 0
        %v2414 = vsel %vm2286, 1, 0
        %v2415 = vsel %vm2287, 1, 0
        %v2416 = vsel %vm2288, 1, 0
        %v2417 = vsel %vm2289, 1, 0
        %v2418 = vsel %vm2290, 1, 0
        %v2419 = vsel %vm2291, 1, 0
        %v2420 = vsel %vm2292, 1, 0
        %v2421 = vsel %vm2293, 1, 0
        %v2422 = vsel %vm2294, 1, 0
        %v2423 = vsel %vm2295, 1, 0
        %v2424 = vsel %vm2296, 1, 0
        %v2425 = vsel %vm2297, 1, 0
        %v2426 = vsel %vm2298, 1, 0
        %v2427 = vsel %vm2299, 1, 0
        %v2428 = vsel %vm2300, 1, 0
        %v2429 = vsel %vm2301, 1, 0
        %v2430 = vsel %vm2302, 1, 0
        %v2431 = vsel %vm2303, 1, 0
        %v2432 = vsel %vm2304, 1, 0
        %v2433 = vsel %vm2305, 1, 0
        %v2434 = vsel %vm2306, 1, 0
        %v2435 = vsel %vm2307, 1, 0
        %v2436 = vsel %vm2308, 1, 0
        %v2437 = vsel %vm2309, 1, 0
        %v2438 = vsel %vm2310, 1, 0
        %v2439 = vsel %vm2311, 1, 0
        %v2440 = vsel %vm2312, 1, 0
        %v2441 = vsel %vm2313, 1, 0
        %v2442 = vsel %vm2314, 1, 0
        %v2443 = vsel %vm2315, 1, 0
        %v2444 = vsel %vm2316, 1, 0
        %v2445 = vsel %vm2317, 1, 0
        %v2446 = vsel %vm2318, 1, 0
        %v2447 = vsel %vm2319, 1, 0
        %v2448 = vsel %vm2320, 1, 0
        %v2449 = vsel %vm2321, 1, 0
        %v2450 = vsel %vm2322, 1, 0
        %v2451 = vsel %vm2323, 1, 0
        %v2452 = vsel %vm2324, 1, 0
        %v2453 = vsel %vm2325, 1, 0
        %v2454 = vsel %vm2326, 1, 0
        %v2455 = vsel %vm2327, 1, 0
        %v2456 = vsel %vm2328, 1, 0
        %v2457 = vsel %vm2329, 1, 0
        %v2458 = vsel %vm2330, 1, 0
        %v2459 = vsel %vm2331, 1, 0
        %v2460 = vsel %vm2332, 1, 0
        %v2461 = vsel %vm2333, 1, 0
        %v2462 = vsel %vm2334, 1, 0
        %v2463 = vsel %vm2335, 1, 0
        %2464 = vset.pattern.permute.xlu0 0
        %2465 = vperm.xlu0 %2464, %v2336
        %v2466 = vpop.permute.xlu0 %2465
        %2467 = vset.pattern.permute.xlu0 0
        %2468 = vperm.xlu0 %2467, %v2337
        %v2469 = vpop.permute.xlu0 %2468
        %2470 = vset.pattern.permute.xlu0 0
        %2471 = vperm.xlu0 %2470, %v2338
        %v2472 = vpop.permute.xlu0 %2471
        %2473 = vset.pattern.permute.xlu0 0
        %2474 = vperm.xlu0 %2473, %v2339
        %v2475 = vpop.permute.xlu0 %2474
        %2476 = vset.pattern.permute.xlu0 0
        %2477 = vperm.xlu0 %2476, %v2340
        %v2478 = vpop.permute.xlu0 %2477
        %2479 = vset.pattern.permute.xlu0 0
        %2480 = vperm.xlu0 %2479, %v2341
        %v2481 = vpop.permute.xlu0 %2480
        %2482 = vset.pattern.permute.xlu0 0
        %2483 = vperm.xlu0 %2482, %v2342
        %v2484 = vpop.permute.xlu0 %2483
        %2485 = vset.pattern.permute.xlu0 0
        %2486 = vperm.xlu0 %2485, %v2343
        %v2487 = vpop.permute.xlu0 %2486
        %2488 = vset.pattern.permute.xlu0 0
        %2489 = vperm.xlu0 %2488, %v2344
        %v2490 = vpop.permute.xlu0 %2489
        %2491 = vset.pattern.permute.xlu0 0
        %2492 = vperm.xlu0 %2491, %v2345
        %v2493 = vpop.permute.xlu0 %2492
        %2494 = vset.pattern.permute.xlu0 0
        %2495 = vperm.xlu0 %2494, %v2346
        %v2496 = vpop.permute.xlu0 %2495
        %2497 = vset.pattern.permute.xlu0 0
        %2498 = vperm.xlu0 %2497, %v2347
        %v2499 = vpop.permute.xlu0 %2498
        %2500 = vset.pattern.permute.xlu0 0
        %2501 = vperm.xlu0 %2500, %v2348
        %v2502 = vpop.permute.xlu0 %2501
        %2503 = vset.pattern.permute.xlu0 0
        %2504 = vperm.xlu0 %2503, %v2349
        %v2505 = vpop.permute.xlu0 %2504
        %2506 = vset.pattern.permute.xlu0 0
        %2507 = vperm.xlu0 %2506, %v2350
        %v2508 = vpop.permute.xlu0 %2507
        %2509 = vset.pattern.permute.xlu0 0
        %2510 = vperm.xlu0 %2509, %v2351
        %v2511 = vpop.permute.xlu0 %2510
        %2512 = vset.pattern.permute.xlu0 0
        %2513 = vperm.xlu0 %2512, %v2352
        %v2514 = vpop.permute.xlu0 %2513
        %2515 = vset.pattern.permute.xlu0 0
        %2516 = vperm.xlu0 %2515, %v2353
        %v2517 = vpop.permute.xlu0 %2516
        %2518 = vset.pattern.permute.xlu0 0
        %2519 = vperm.xlu0 %2518, %v2354
        %v2520 = vpop.permute.xlu0 %2519
        %2521 = vset.pattern.permute.xlu0 0
        %2522 = vperm.xlu0 %2521, %v2355
        %v2523 = vpop.permute.xlu0 %2522
        %2524 = vset.pattern.permute.xlu0 0
        %2525 = vperm.xlu0 %2524, %v2356
        %v2526 = vpop.permute.xlu0 %2525
        %2527 = vset.pattern.permute.xlu0 0
        %2528 = vperm.xlu0 %2527, %v2357
        %v2529 = vpop.permute.xlu0 %2528
        %2530 = vset.pattern.permute.xlu0 0
        %2531 = vperm.xlu0 %2530, %v2358
        %v2532 = vpop.permute.xlu0 %2531
        %2533 = vset.pattern.permute.xlu0 0
        %2534 = vperm.xlu0 %2533, %v2359
        %v2535 = vpop.permute.xlu0 %2534
        %2536 = vset.pattern.permute.xlu0 0
        %2537 = vperm.xlu0 %2536, %v2360
        %v2538 = vpop.permute.xlu0 %2537
        %2539 = vset.pattern.permute.xlu0 0
        %2540 = vperm.xlu0 %2539, %v2361
        %v2541 = vpop.permute.xlu0 %2540
        %2542 = vset.pattern.permute.xlu0 0
        %2543 = vperm.xlu0 %2542, %v2362
        %v2544 = vpop.permute.xlu0 %2543
        %2545 = vset.pattern.permute.xlu0 0
        %2546 = vperm.xlu0 %2545, %v2363
        %v2547 = vpop.permute.xlu0 %2546
        %2548 = vset.pattern.permute.xlu0 0
        %2549 = vperm.xlu0 %2548, %v2364
        %v2550 = vpop.permute.xlu0 %2549
        %2551 = vset.pattern.permute.xlu0 0
        %2552 = vperm.xlu0 %2551, %v2365
        %v2553 = vpop.permute.xlu0 %2552
        %2554 = vset.pattern.permute.xlu0 0
        %2555 = vperm.xlu0 %2554, %v2366
        %v2556 = vpop.permute.xlu0 %2555
        %2557 = vset.pattern.permute.xlu0 0
        %2558 = vperm.xlu0 %2557, %v2367
        %v2559 = vpop.permute.xlu0 %2558
        %2560 = vset.pattern.permute.xlu0 0
        %2561 = vperm.xlu0 %2560, %v2368
        %v2562 = vpop.permute.xlu0 %2561
        %2563 = vset.pattern.permute.xlu0 0
        %2564 = vperm.xlu0 %2563, %v2369
        %v2565 = vpop.permute.xlu0 %2564
        %2566 = vset.pattern.permute.xlu0 0
        %2567 = vperm.xlu0 %2566, %v2370
        %v2568 = vpop.permute.xlu0 %2567
        %2569 = vset.pattern.permute.xlu0 0
        %2570 = vperm.xlu0 %2569, %v2371
        %v2571 = vpop.permute.xlu0 %2570
        %2572 = vset.pattern.permute.xlu0 0
        %2573 = vperm.xlu0 %2572, %v2372
        %v2574 = vpop.permute.xlu0 %2573
        %2575 = vset.pattern.permute.xlu0 0
        %2576 = vperm.xlu0 %2575, %v2373
        %v2577 = vpop.permute.xlu0 %2576
        %2578 = vset.pattern.permute.xlu0 0
        %2579 = vperm.xlu0 %2578, %v2374
        %v2580 = vpop.permute.xlu0 %2579
        %2581 = vset.pattern.permute.xlu0 0
        %2582 = vperm.xlu0 %2581, %v2375
        %v2583 = vpop.permute.xlu0 %2582
        %2584 = vset.pattern.permute.xlu0 0
        %2585 = vperm.xlu0 %2584, %v2376
        %v2586 = vpop.permute.xlu0 %2585
        %2587 = vset.pattern.permute.xlu0 0
        %2588 = vperm.xlu0 %2587, %v2377
        %v2589 = vpop.permute.xlu0 %2588
        %2590 = vset.pattern.permute.xlu0 0
        %2591 = vperm.xlu0 %2590, %v2378
        %v2592 = vpop.permute.xlu0 %2591
        %2593 = vset.pattern.permute.xlu0 0
        %2594 = vperm.xlu0 %2593, %v2379
        %v2595 = vpop.permute.xlu0 %2594
        %2596 = vset.pattern.permute.xlu0 0
        %2597 = vperm.xlu0 %2596, %v2380
        %v2598 = vpop.permute.xlu0 %2597
        %2599 = vset.pattern.permute.xlu0 0
        %2600 = vperm.xlu0 %2599, %v2381
        %v2601 = vpop.permute.xlu0 %2600
        %2602 = vset.pattern.permute.xlu0 0
        %2603 = vperm.xlu0 %2602, %v2382
        %v2604 = vpop.permute.xlu0 %2603
        %2605 = vset.pattern.permute.xlu0 0
        %2606 = vperm.xlu0 %2605, %v2383
        %v2607 = vpop.permute.xlu0 %2606
        %2608 = vset.pattern.permute.xlu0 0
        %2609 = vperm.xlu0 %2608, %v2384
        %v2610 = vpop.permute.xlu0 %2609
        %2611 = vset.pattern.permute.xlu0 0
        %2612 = vperm.xlu0 %2611, %v2385
        %v2613 = vpop.permute.xlu0 %2612
        %2614 = vset.pattern.permute.xlu0 0
        %2615 = vperm.xlu0 %2614, %v2386
        %v2616 = vpop.permute.xlu0 %2615
        %2617 = vset.pattern.permute.xlu0 0
        %2618 = vperm.xlu0 %2617, %v2387
        %v2619 = vpop.permute.xlu0 %2618
        %2620 = vset.pattern.permute.xlu0 0
        %2621 = vperm.xlu0 %2620, %v2388
        %v2622 = vpop.permute.xlu0 %2621
        %2623 = vset.pattern.permute.xlu0 0
        %2624 = vperm.xlu0 %2623, %v2389
        %v2625 = vpop.permute.xlu0 %2624
        %2626 = vset.pattern.permute.xlu0 0
        %2627 = vperm.xlu0 %2626, %v2390
        %v2628 = vpop.permute.xlu0 %2627
        %2629 = vset.pattern.permute.xlu0 0
        %2630 = vperm.xlu0 %2629, %v2391
        %v2631 = vpop.permute.xlu0 %2630
        %2632 = vset.pattern.permute.xlu0 0
        %2633 = vperm.xlu0 %2632, %v2392
        %v2634 = vpop.permute.xlu0 %2633
        %2635 = vset.pattern.permute.xlu0 0
        %2636 = vperm.xlu0 %2635, %v2393
        %v2637 = vpop.permute.xlu0 %2636
        %2638 = vset.pattern.permute.xlu0 0
        %2639 = vperm.xlu0 %2638, %v2394
        %v2640 = vpop.permute.xlu0 %2639
        %2641 = vset.pattern.permute.xlu0 0
        %2642 = vperm.xlu0 %2641, %v2395
        %v2643 = vpop.permute.xlu0 %2642
        %2644 = vset.pattern.permute.xlu0 0
        %2645 = vperm.xlu0 %2644, %v2396
        %v2646 = vpop.permute.xlu0 %2645
        %2647 = vset.pattern.permute.xlu0 0
        %2648 = vperm.xlu0 %2647, %v2397
        %v2649 = vpop.permute.xlu0 %2648
        %2650 = vset.pattern.permute.xlu0 0
        %2651 = vperm.xlu0 %2650, %v2398
        %v2652 = vpop.permute.xlu0 %2651
        %2653 = vset.pattern.permute.xlu0 0
        %2654 = vperm.xlu0 %2653, %v2399
        %v2655 = vpop.permute.xlu0 %2654
        %2656 = vset.pattern.permute.xlu0 0
        %2657 = vperm.xlu0 %2656, %v2400
        %v2658 = vpop.permute.xlu0 %2657
        %2659 = vset.pattern.permute.xlu0 0
        %2660 = vperm.xlu0 %2659, %v2401
        %v2661 = vpop.permute.xlu0 %2660
        %2662 = vset.pattern.permute.xlu0 0
        %2663 = vperm.xlu0 %2662, %v2402
        %v2664 = vpop.permute.xlu0 %2663
        %2665 = vset.pattern.permute.xlu0 0
        %2666 = vperm.xlu0 %2665, %v2403
        %v2667 = vpop.permute.xlu0 %2666
        %2668 = vset.pattern.permute.xlu0 0
        %2669 = vperm.xlu0 %2668, %v2404
        %v2670 = vpop.permute.xlu0 %2669
        %2671 = vset.pattern.permute.xlu0 0
        %2672 = vperm.xlu0 %2671, %v2405
        %v2673 = vpop.permute.xlu0 %2672
        %2674 = vset.pattern.permute.xlu0 0
        %2675 = vperm.xlu0 %2674, %v2406
        %v2676 = vpop.permute.xlu0 %2675
        %2677 = vset.pattern.permute.xlu0 0
        %2678 = vperm.xlu0 %2677, %v2407
        %v2679 = vpop.permute.xlu0 %2678
        %2680 = vset.pattern.permute.xlu0 0
        %2681 = vperm.xlu0 %2680, %v2408
        %v2682 = vpop.permute.xlu0 %2681
        %2683 = vset.pattern.permute.xlu0 0
        %2684 = vperm.xlu0 %2683, %v2409
        %v2685 = vpop.permute.xlu0 %2684
        %2686 = vset.pattern.permute.xlu0 0
        %2687 = vperm.xlu0 %2686, %v2410
        %v2688 = vpop.permute.xlu0 %2687
        %2689 = vset.pattern.permute.xlu0 0
        %2690 = vperm.xlu0 %2689, %v2411
        %v2691 = vpop.permute.xlu0 %2690
        %2692 = vset.pattern.permute.xlu0 0
        %2693 = vperm.xlu0 %2692, %v2412
        %v2694 = vpop.permute.xlu0 %2693
        %2695 = vset.pattern.permute.xlu0 0
        %2696 = vperm.xlu0 %2695, %v2413
        %v2697 = vpop.permute.xlu0 %2696
        %2698 = vset.pattern.permute.xlu0 0
        %2699 = vperm.xlu0 %2698, %v2414
        %v2700 = vpop.permute.xlu0 %2699
        %2701 = vset.pattern.permute.xlu0 0
        %2702 = vperm.xlu0 %2701, %v2415
        %v2703 = vpop.permute.xlu0 %2702
        %2704 = vset.pattern.permute.xlu0 0
        %2705 = vperm.xlu0 %2704, %v2416
        %v2706 = vpop.permute.xlu0 %2705
        %2707 = vset.pattern.permute.xlu0 0
        %2708 = vperm.xlu0 %2707, %v2417
        %v2709 = vpop.permute.xlu0 %2708
        %2710 = vset.pattern.permute.xlu0 0
        %2711 = vperm.xlu0 %2710, %v2418
        %v2712 = vpop.permute.xlu0 %2711
        %2713 = vset.pattern.permute.xlu0 0
        %2714 = vperm.xlu0 %2713, %v2419
        %v2715 = vpop.permute.xlu0 %2714
        %2716 = vset.pattern.permute.xlu0 0
        %2717 = vperm.xlu0 %2716, %v2420
        %v2718 = vpop.permute.xlu0 %2717
        %2719 = vset.pattern.permute.xlu0 0
        %2720 = vperm.xlu0 %2719, %v2421
        %v2721 = vpop.permute.xlu0 %2720
        %2722 = vset.pattern.permute.xlu0 0
        %2723 = vperm.xlu0 %2722, %v2422
        %v2724 = vpop.permute.xlu0 %2723
        %2725 = vset.pattern.permute.xlu0 0
        %2726 = vperm.xlu0 %2725, %v2423
        %v2727 = vpop.permute.xlu0 %2726
        %2728 = vset.pattern.permute.xlu0 0
        %2729 = vperm.xlu0 %2728, %v2424
        %v2730 = vpop.permute.xlu0 %2729
        %2731 = vset.pattern.permute.xlu0 0
        %2732 = vperm.xlu0 %2731, %v2425
        %v2733 = vpop.permute.xlu0 %2732
        %2734 = vset.pattern.permute.xlu0 0
        %2735 = vperm.xlu0 %2734, %v2426
        %v2736 = vpop.permute.xlu0 %2735
        %2737 = vset.pattern.permute.xlu0 0
        %2738 = vperm.xlu0 %2737, %v2427
        %v2739 = vpop.permute.xlu0 %2738
        %2740 = vset.pattern.permute.xlu0 0
        %2741 = vperm.xlu0 %2740, %v2428
        %v2742 = vpop.permute.xlu0 %2741
        %2743 = vset.pattern.permute.xlu0 0
        %2744 = vperm.xlu0 %2743, %v2429
        %v2745 = vpop.permute.xlu0 %2744
        %2746 = vset.pattern.permute.xlu0 0
        %2747 = vperm.xlu0 %2746, %v2430
        %v2748 = vpop.permute.xlu0 %2747
        %2749 = vset.pattern.permute.xlu0 0
        %2750 = vperm.xlu0 %2749, %v2431
        %v2751 = vpop.permute.xlu0 %2750
        %2752 = vset.pattern.permute.xlu0 0
        %2753 = vperm.xlu0 %2752, %v2432
        %v2754 = vpop.permute.xlu0 %2753
        %2755 = vset.pattern.permute.xlu0 0
        %2756 = vperm.xlu0 %2755, %v2433
        %v2757 = vpop.permute.xlu0 %2756
        %2758 = vset.pattern.permute.xlu0 0
        %2759 = vperm.xlu0 %2758, %v2434
        %v2760 = vpop.permute.xlu0 %2759
        %2761 = vset.pattern.permute.xlu0 0
        %2762 = vperm.xlu0 %2761, %v2435
        %v2763 = vpop.permute.xlu0 %2762
        %2764 = vset.pattern.permute.xlu0 0
        %2765 = vperm.xlu0 %2764, %v2436
        %v2766 = vpop.permute.xlu0 %2765
        %2767 = vset.pattern.permute.xlu0 0
        %2768 = vperm.xlu0 %2767, %v2437
        %v2769 = vpop.permute.xlu0 %2768
        %2770 = vset.pattern.permute.xlu0 0
        %2771 = vperm.xlu0 %2770, %v2438
        %v2772 = vpop.permute.xlu0 %2771
        %2773 = vset.pattern.permute.xlu0 0
        %2774 = vperm.xlu0 %2773, %v2439
        %v2775 = vpop.permute.xlu0 %2774
        %2776 = vset.pattern.permute.xlu0 0
        %2777 = vperm.xlu0 %2776, %v2440
        %v2778 = vpop.permute.xlu0 %2777
        %2779 = vset.pattern.permute.xlu0 0
        %2780 = vperm.xlu0 %2779, %v2441
        %v2781 = vpop.permute.xlu0 %2780
        %2782 = vset.pattern.permute.xlu0 0
        %2783 = vperm.xlu0 %2782, %v2442
        %v2784 = vpop.permute.xlu0 %2783
        %2785 = vset.pattern.permute.xlu0 0
        %2786 = vperm.xlu0 %2785, %v2443
        %v2787 = vpop.permute.xlu0 %2786
        %2788 = vset.pattern.permute.xlu0 0
        %2789 = vperm.xlu0 %2788, %v2444
        %v2790 = vpop.permute.xlu0 %2789
        %2791 = vset.pattern.permute.xlu0 0
        %2792 = vperm.xlu0 %2791, %v2445
        %v2793 = vpop.permute.xlu0 %2792
        %2794 = vset.pattern.permute.xlu0 0
        %2795 = vperm.xlu0 %2794, %v2446
        %v2796 = vpop.permute.xlu0 %2795
        %2797 = vset.pattern.permute.xlu0 0
        %2798 = vperm.xlu0 %2797, %v2447
        %v2799 = vpop.permute.xlu0 %2798
        %2800 = vset.pattern.permute.xlu0 0
        %2801 = vperm.xlu0 %2800, %v2448
        %v2802 = vpop.permute.xlu0 %2801
        %2803 = vset.pattern.permute.xlu0 0
        %2804 = vperm.xlu0 %2803, %v2449
        %v2805 = vpop.permute.xlu0 %2804
        %2806 = vset.pattern.permute.xlu0 0
        %2807 = vperm.xlu0 %2806, %v2450
        %v2808 = vpop.permute.xlu0 %2807
        %2809 = vset.pattern.permute.xlu0 0
        %2810 = vperm.xlu0 %2809, %v2451
        %v2811 = vpop.permute.xlu0 %2810
        %2812 = vset.pattern.permute.xlu0 0
        %2813 = vperm.xlu0 %2812, %v2452
        %v2814 = vpop.permute.xlu0 %2813
        %2815 = vset.pattern.permute.xlu0 0
        %2816 = vperm.xlu0 %2815, %v2453
        %v2817 = vpop.permute.xlu0 %2816
        %2818 = vset.pattern.permute.xlu0 0
        %2819 = vperm.xlu0 %2818, %v2454
        %v2820 = vpop.permute.xlu0 %2819
        %2821 = vset.pattern.permute.xlu0 0
        %2822 = vperm.xlu0 %2821, %v2455
        %v2823 = vpop.permute.xlu0 %2822
        %2824 = vset.pattern.permute.xlu0 0
        %2825 = vperm.xlu0 %2824, %v2456
        %v2826 = vpop.permute.xlu0 %2825
        %2827 = vset.pattern.permute.xlu0 0
        %2828 = vperm.xlu0 %2827, %v2457
        %v2829 = vpop.permute.xlu0 %2828
        %2830 = vset.pattern.permute.xlu0 0
        %2831 = vperm.xlu0 %2830, %v2458
        %v2832 = vpop.permute.xlu0 %2831
        %2833 = vset.pattern.permute.xlu0 0
        %2834 = vperm.xlu0 %2833, %v2459
        %v2835 = vpop.permute.xlu0 %2834
        %2836 = vset.pattern.permute.xlu0 0
        %2837 = vperm.xlu0 %2836, %v2460
        %v2838 = vpop.permute.xlu0 %2837
        %2839 = vset.pattern.permute.xlu0 0
        %2840 = vperm.xlu0 %2839, %v2461
        %v2841 = vpop.permute.xlu0 %2840
        %2842 = vset.pattern.permute.xlu0 0
        %2843 = vperm.xlu0 %2842, %v2462
        %v2844 = vpop.permute.xlu0 %2843
        %2845 = vset.pattern.permute.xlu0 0
        %2846 = vperm.xlu0 %2845, %v2463
        %v2847 = vpop.permute.xlu0 %2846
        %vm2848 = vcmp.eq.s32.totalorder %v2466, 1
        %vm2849 = vcmp.eq.s32.totalorder %v2469, 1
        %vm2850 = vcmp.eq.s32.totalorder %v2472, 1
        %vm2851 = vcmp.eq.s32.totalorder %v2475, 1
        %vm2852 = vcmp.eq.s32.totalorder %v2478, 1
        %vm2853 = vcmp.eq.s32.totalorder %v2481, 1
        %vm2854 = vcmp.eq.s32.totalorder %v2484, 1
        %vm2855 = vcmp.eq.s32.totalorder %v2487, 1
        %vm2856 = vcmp.eq.s32.totalorder %v2490, 1
        %vm2857 = vcmp.eq.s32.totalorder %v2493, 1
        %vm2858 = vcmp.eq.s32.totalorder %v2496, 1
        %vm2859 = vcmp.eq.s32.totalorder %v2499, 1
        %vm2860 = vcmp.eq.s32.totalorder %v2502, 1
        %vm2861 = vcmp.eq.s32.totalorder %v2505, 1
        %vm2862 = vcmp.eq.s32.totalorder %v2508, 1
        %vm2863 = vcmp.eq.s32.totalorder %v2511, 1
        %vm2864 = vcmp.eq.s32.totalorder %v2514, 1
        %vm2865 = vcmp.eq.s32.totalorder %v2517, 1
        %vm2866 = vcmp.eq.s32.totalorder %v2520, 1
        %vm2867 = vcmp.eq.s32.totalorder %v2523, 1
        %vm2868 = vcmp.eq.s32.totalorder %v2526, 1
        %vm2869 = vcmp.eq.s32.totalorder %v2529, 1
        %vm2870 = vcmp.eq.s32.totalorder %v2532, 1
        %vm2871 = vcmp.eq.s32.totalorder %v2535, 1
        %vm2872 = vcmp.eq.s32.totalorder %v2538, 1
        %vm2873 = vcmp.eq.s32.totalorder %v2541, 1
        %vm2874 = vcmp.eq.s32.totalorder %v2544, 1
        %vm2875 = vcmp.eq.s32.totalorder %v2547, 1
        %vm2876 = vcmp.eq.s32.totalorder %v2550, 1
        %vm2877 = vcmp.eq.s32.totalorder %v2553, 1
        %vm2878 = vcmp.eq.s32.totalorder %v2556, 1
        %vm2879 = vcmp.eq.s32.totalorder %v2559, 1
        %vm2880 = vcmp.eq.s32.totalorder %v2562, 1
        %vm2881 = vcmp.eq.s32.totalorder %v2565, 1
        %vm2882 = vcmp.eq.s32.totalorder %v2568, 1
        %vm2883 = vcmp.eq.s32.totalorder %v2571, 1
        %vm2884 = vcmp.eq.s32.totalorder %v2574, 1
        %vm2885 = vcmp.eq.s32.totalorder %v2577, 1
        %vm2886 = vcmp.eq.s32.totalorder %v2580, 1
        %vm2887 = vcmp.eq.s32.totalorder %v2583, 1
        %vm2888 = vcmp.eq.s32.totalorder %v2586, 1
        %vm2889 = vcmp.eq.s32.totalorder %v2589, 1
        %vm2890 = vcmp.eq.s32.totalorder %v2592, 1
        %vm2891 = vcmp.eq.s32.totalorder %v2595, 1
        %vm2892 = vcmp.eq.s32.totalorder %v2598, 1
        %vm2893 = vcmp.eq.s32.totalorder %v2601, 1
        %vm2894 = vcmp.eq.s32.totalorder %v2604, 1
        %vm2895 = vcmp.eq.s32.totalorder %v2607, 1
        %vm2896 = vcmp.eq.s32.totalorder %v2610, 1
        %vm2897 = vcmp.eq.s32.totalorder %v2613, 1
        %vm2898 = vcmp.eq.s32.totalorder %v2616, 1
        %vm2899 = vcmp.eq.s32.totalorder %v2619, 1
        %vm2900 = vcmp.eq.s32.totalorder %v2622, 1
        %vm2901 = vcmp.eq.s32.totalorder %v2625, 1
        %vm2902 = vcmp.eq.s32.totalorder %v2628, 1
        %vm2903 = vcmp.eq.s32.totalorder %v2631, 1
        %vm2904 = vcmp.eq.s32.totalorder %v2634, 1
        %vm2905 = vcmp.eq.s32.totalorder %v2637, 1
        %vm2906 = vcmp.eq.s32.totalorder %v2640, 1
        %vm2907 = vcmp.eq.s32.totalorder %v2643, 1
        %vm2908 = vcmp.eq.s32.totalorder %v2646, 1
        %vm2909 = vcmp.eq.s32.totalorder %v2649, 1
        %vm2910 = vcmp.eq.s32.totalorder %v2652, 1
        %vm2911 = vcmp.eq.s32.totalorder %v2655, 1
        %vm2912 = vcmp.eq.s32.totalorder %v2658, 1
        %vm2913 = vcmp.eq.s32.totalorder %v2661, 1
        %vm2914 = vcmp.eq.s32.totalorder %v2664, 1
        %vm2915 = vcmp.eq.s32.totalorder %v2667, 1
        %vm2916 = vcmp.eq.s32.totalorder %v2670, 1
        %vm2917 = vcmp.eq.s32.totalorder %v2673, 1
        %vm2918 = vcmp.eq.s32.totalorder %v2676, 1
        %vm2919 = vcmp.eq.s32.totalorder %v2679, 1
        %vm2920 = vcmp.eq.s32.totalorder %v2682, 1
        %vm2921 = vcmp.eq.s32.totalorder %v2685, 1
        %vm2922 = vcmp.eq.s32.totalorder %v2688, 1
        %vm2923 = vcmp.eq.s32.totalorder %v2691, 1
        %vm2924 = vcmp.eq.s32.totalorder %v2694, 1
        %vm2925 = vcmp.eq.s32.totalorder %v2697, 1
        %vm2926 = vcmp.eq.s32.totalorder %v2700, 1
        %vm2927 = vcmp.eq.s32.totalorder %v2703, 1
        %vm2928 = vcmp.eq.s32.totalorder %v2706, 1
        %vm2929 = vcmp.eq.s32.totalorder %v2709, 1
        %vm2930 = vcmp.eq.s32.totalorder %v2712, 1
        %vm2931 = vcmp.eq.s32.totalorder %v2715, 1
        %vm2932 = vcmp.eq.s32.totalorder %v2718, 1
        %vm2933 = vcmp.eq.s32.totalorder %v2721, 1
        %vm2934 = vcmp.eq.s32.totalorder %v2724, 1
        %vm2935 = vcmp.eq.s32.totalorder %v2727, 1
        %vm2936 = vcmp.eq.s32.totalorder %v2730, 1
        %vm2937 = vcmp.eq.s32.totalorder %v2733, 1
        %vm2938 = vcmp.eq.s32.totalorder %v2736, 1
        %vm2939 = vcmp.eq.s32.totalorder %v2739, 1
        %vm2940 = vcmp.eq.s32.totalorder %v2742, 1
        %vm2941 = vcmp.eq.s32.totalorder %v2745, 1
        %vm2942 = vcmp.eq.s32.totalorder %v2748, 1
        %vm2943 = vcmp.eq.s32.totalorder %v2751, 1
        %vm2944 = vcmp.eq.s32.totalorder %v2754, 1
        %vm2945 = vcmp.eq.s32.totalorder %v2757, 1
        %vm2946 = vcmp.eq.s32.totalorder %v2760, 1
        %vm2947 = vcmp.eq.s32.totalorder %v2763, 1
        %vm2948 = vcmp.eq.s32.totalorder %v2766, 1
        %vm2949 = vcmp.eq.s32.totalorder %v2769, 1
        %vm2950 = vcmp.eq.s32.totalorder %v2772, 1
        %vm2951 = vcmp.eq.s32.totalorder %v2775, 1
        %vm2952 = vcmp.eq.s32.totalorder %v2778, 1
        %vm2953 = vcmp.eq.s32.totalorder %v2781, 1
        %vm2954 = vcmp.eq.s32.totalorder %v2784, 1
        %vm2955 = vcmp.eq.s32.totalorder %v2787, 1
        %vm2956 = vcmp.eq.s32.totalorder %v2790, 1
        %vm2957 = vcmp.eq.s32.totalorder %v2793, 1
        %vm2958 = vcmp.eq.s32.totalorder %v2796, 1
        %vm2959 = vcmp.eq.s32.totalorder %v2799, 1
        %vm2960 = vcmp.eq.s32.totalorder %v2802, 1
        %vm2961 = vcmp.eq.s32.totalorder %v2805, 1
        %vm2962 = vcmp.eq.s32.totalorder %v2808, 1
        %vm2963 = vcmp.eq.s32.totalorder %v2811, 1
        %vm2964 = vcmp.eq.s32.totalorder %v2814, 1
        %vm2965 = vcmp.eq.s32.totalorder %v2817, 1
        %vm2966 = vcmp.eq.s32.totalorder %v2820, 1
        %vm2967 = vcmp.eq.s32.totalorder %v2823, 1
        %vm2968 = vcmp.eq.s32.totalorder %v2826, 1
        %vm2969 = vcmp.eq.s32.totalorder %v2829, 1
        %vm2970 = vcmp.eq.s32.totalorder %v2832, 1
        %vm2971 = vcmp.eq.s32.totalorder %v2835, 1
        %vm2972 = vcmp.eq.s32.totalorder %v2838, 1
        %vm2973 = vcmp.eq.s32.totalorder %v2841, 1
        %vm2974 = vcmp.eq.s32.totalorder %v2844, 1
        %vm2975 = vcmp.eq.s32.totalorder %v2847, 1
        %v2976 = vsel %vm2848, %v1442, -1e+30
        %v2977 = vsel %vm2849, %v1447, -1e+30
        %v2978 = vsel %vm2850, %v1452, -1e+30
        %v2979 = vsel %vm2851, %v1457, -1e+30
        %v2980 = vsel %vm2852, %v1462, -1e+30
        %v2981 = vsel %vm2853, %v1467, -1e+30
        %v2982 = vsel %vm2854, %v1472, -1e+30
        %v2983 = vsel %vm2855, %v1477, -1e+30
        %v2984 = vsel %vm2856, %v1482, -1e+30
        %v2985 = vsel %vm2857, %v1487, -1e+30
        %v2986 = vsel %vm2858, %v1492, -1e+30
        %v2987 = vsel %vm2859, %v1497, -1e+30
        %v2988 = vsel %vm2860, %v1502, -1e+30
        %v2989 = vsel %vm2861, %v1507, -1e+30
        %v2990 = vsel %vm2862, %v1512, -1e+30
        %v2991 = vsel %vm2863, %v1517, -1e+30
        %v2992 = vsel %vm2864, %v1522, -1e+30
        %v2993 = vsel %vm2865, %v1527, -1e+30
        %v2994 = vsel %vm2866, %v1532, -1e+30
        %v2995 = vsel %vm2867, %v1537, -1e+30
        %v2996 = vsel %vm2868, %v1542, -1e+30
        %v2997 = vsel %vm2869, %v1547, -1e+30
        %v2998 = vsel %vm2870, %v1552, -1e+30
        %v2999 = vsel %vm2871, %v1557, -1e+30
        %v3000 = vsel %vm2872, %v1562, -1e+30
        %v3001 = vsel %vm2873, %v1567, -1e+30
        %v3002 = vsel %vm2874, %v1572, -1e+30
        %v3003 = vsel %vm2875, %v1577, -1e+30
        %v3004 = vsel %vm2876, %v1582, -1e+30
        %v3005 = vsel %vm2877, %v1587, -1e+30
        %v3006 = vsel %vm2878, %v1592, -1e+30
        %v3007 = vsel %vm2879, %v1597, -1e+30
        %v3008 = vsel %vm2880, %v1602, -1e+30
        %v3009 = vsel %vm2881, %v1607, -1e+30
        %v3010 = vsel %vm2882, %v1612, -1e+30
        %v3011 = vsel %vm2883, %v1617, -1e+30
        %v3012 = vsel %vm2884, %v1622, -1e+30
        %v3013 = vsel %vm2885, %v1627, -1e+30
        %v3014 = vsel %vm2886, %v1632, -1e+30
        %v3015 = vsel %vm2887, %v1637, -1e+30
        %v3016 = vsel %vm2888, %v1642, -1e+30
        %v3017 = vsel %vm2889, %v1647, -1e+30
        %v3018 = vsel %vm2890, %v1652, -1e+30
        %v3019 = vsel %vm2891, %v1657, -1e+30
        %v3020 = vsel %vm2892, %v1662, -1e+30
        %v3021 = vsel %vm2893, %v1667, -1e+30
        %v3022 = vsel %vm2894, %v1672, -1e+30
        %v3023 = vsel %vm2895, %v1677, -1e+30
        %v3024 = vsel %vm2896, %v1682, -1e+30
        %v3025 = vsel %vm2897, %v1687, -1e+30
        %v3026 = vsel %vm2898, %v1692, -1e+30
        %v3027 = vsel %vm2899, %v1697, -1e+30
        %v3028 = vsel %vm2900, %v1702, -1e+30
        %v3029 = vsel %vm2901, %v1707, -1e+30
        %v3030 = vsel %vm2902, %v1712, -1e+30
        %v3031 = vsel %vm2903, %v1717, -1e+30
        %v3032 = vsel %vm2904, %v1722, -1e+30
        %v3033 = vsel %vm2905, %v1727, -1e+30
        %v3034 = vsel %vm2906, %v1732, -1e+30
        %v3035 = vsel %vm2907, %v1737, -1e+30
        %v3036 = vsel %vm2908, %v1742, -1e+30
        %v3037 = vsel %vm2909, %v1747, -1e+30
        %v3038 = vsel %vm2910, %v1752, -1e+30
        %v3039 = vsel %vm2911, %v1757, -1e+30
        %v3040 = vsel %vm2912, %v1762, -1e+30
        %v3041 = vsel %vm2913, %v1767, -1e+30
        %v3042 = vsel %vm2914, %v1772, -1e+30
        %v3043 = vsel %vm2915, %v1777, -1e+30
        %v3044 = vsel %vm2916, %v1782, -1e+30
        %v3045 = vsel %vm2917, %v1787, -1e+30
        %v3046 = vsel %vm2918, %v1792, -1e+30
        %v3047 = vsel %vm2919, %v1797, -1e+30
        %v3048 = vsel %vm2920, %v1802, -1e+30
        %v3049 = vsel %vm2921, %v1807, -1e+30
        %v3050 = vsel %vm2922, %v1812, -1e+30
        %v3051 = vsel %vm2923, %v1817, -1e+30
        %v3052 = vsel %vm2924, %v1822, -1e+30
        %v3053 = vsel %vm2925, %v1827, -1e+30
        %v3054 = vsel %vm2926, %v1832, -1e+30
        %v3055 = vsel %vm2927, %v1837, -1e+30
        %v3056 = vsel %vm2928, %v1842, -1e+30
        %v3057 = vsel %vm2929, %v1847, -1e+30
        %v3058 = vsel %vm2930, %v1852, -1e+30
        %v3059 = vsel %vm2931, %v1857, -1e+30
        %v3060 = vsel %vm2932, %v1862, -1e+30
        %v3061 = vsel %vm2933, %v1867, -1e+30
        %v3062 = vsel %vm2934, %v1872, -1e+30
        %v3063 = vsel %vm2935, %v1877, -1e+30
        %v3064 = vsel %vm2936, %v1882, -1e+30
        %v3065 = vsel %vm2937, %v1887, -1e+30
        %v3066 = vsel %vm2938, %v1892, -1e+30
        %v3067 = vsel %vm2939, %v1897, -1e+30
        %v3068 = vsel %vm2940, %v1902, -1e+30
        %v3069 = vsel %vm2941, %v1907, -1e+30
        %v3070 = vsel %vm2942, %v1912, -1e+30
        %v3071 = vsel %vm2943, %v1917, -1e+30
        %v3072 = vsel %vm2944, %v1922, -1e+30
        %v3073 = vsel %vm2945, %v1927, -1e+30
        %v3074 = vsel %vm2946, %v1932, -1e+30
        %v3075 = vsel %vm2947, %v1937, -1e+30
        %v3076 = vsel %vm2948, %v1942, -1e+30
        %v3077 = vsel %vm2949, %v1947, -1e+30
        %v3078 = vsel %vm2950, %v1952, -1e+30
        %v3079 = vsel %vm2951, %v1957, -1e+30
        %v3080 = vsel %vm2952, %v1962, -1e+30
        %v3081 = vsel %vm2953, %v1967, -1e+30
        %v3082 = vsel %vm2954, %v1972, -1e+30
        %v3083 = vsel %vm2955, %v1977, -1e+30
        %v3084 = vsel %vm2956, %v1982, -1e+30
        %v3085 = vsel %vm2957, %v1987, -1e+30
        %v3086 = vsel %vm2958, %v1992, -1e+30
        %v3087 = vsel %vm2959, %v1997, -1e+30
        %v3088 = vsel %vm2960, %v2002, -1e+30
        %v3089 = vsel %vm2961, %v2007, -1e+30
        %v3090 = vsel %vm2962, %v2012, -1e+30
        %v3091 = vsel %vm2963, %v2017, -1e+30
        %v3092 = vsel %vm2964, %v2022, -1e+30
        %v3093 = vsel %vm2965, %v2027, -1e+30
        %v3094 = vsel %vm2966, %v2032, -1e+30
        %v3095 = vsel %vm2967, %v2037, -1e+30
        %v3096 = vsel %vm2968, %v2042, -1e+30
        %v3097 = vsel %vm2969, %v2047, -1e+30
        %v3098 = vsel %vm2970, %v2052, -1e+30
        %v3099 = vsel %vm2971, %v2057, -1e+30
        %v3100 = vsel %vm2972, %v2062, -1e+30
        %v3101 = vsel %vm2973, %v2067, -1e+30
        %v3102 = vsel %vm2974, %v2072, -1e+30
        %v3103 = vsel %vm2975, %v2077, -1e+30
        %v3104 = vmax.f32 %v2976, %v2980
        %v3105 = vmax.f32 %v3104, %v2984
        %v3106 = vmax.f32 %v3105, %v2988
        %v3107 = vmax.f32 %v3106, %v2992
        %v3108 = vmax.f32 %v3107, %v2996
        %v3109 = vmax.f32 %v3108, %v3000
        %v3110 = vmax.f32 %v3109, %v3004
        %v3111 = vmax.f32 %v3110, %v3008
        %v3112 = vmax.f32 %v3111, %v3012
        %v3113 = vmax.f32 %v3112, %v3016
        %v3114 = vmax.f32 %v3113, %v3020
        %v3115 = vmax.f32 %v3114, %v3024
        %v3116 = vmax.f32 %v3115, %v3028
        %v3117 = vmax.f32 %v3116, %v3032
        %v3118 = vmax.f32 %v3117, %v3036
        %v3119 = vmax.f32 %v3118, %v3040
        %v3120 = vmax.f32 %v3119, %v3044
        %v3121 = vmax.f32 %v3120, %v3048
        %v3122 = vmax.f32 %v3121, %v3052
        %v3123 = vmax.f32 %v3122, %v3056
        %v3124 = vmax.f32 %v3123, %v3060
        %v3125 = vmax.f32 %v3124, %v3064
        %v3126 = vmax.f32 %v3125, %v3068
        %v3127 = vmax.f32 %v3126, %v3072
        %v3128 = vmax.f32 %v3127, %v3076
        %v3129 = vmax.f32 %v3128, %v3080
        %v3130 = vmax.f32 %v3129, %v3084
        %v3131 = vmax.f32 %v3130, %v3088
        %v3132 = vmax.f32 %v3131, %v3092
        %v3133 = vmax.f32 %v3132, %v3096
        %v3134 = vmax.f32 %v3133, %v3100
        %v3135 = vmax.f32 %v2977, %v2981
        %v3136 = vmax.f32 %v3135, %v2985
        %v3137 = vmax.f32 %v3136, %v2989
        %v3138 = vmax.f32 %v3137, %v2993
        %v3139 = vmax.f32 %v3138, %v2997
        %v3140 = vmax.f32 %v3139, %v3001
        %v3141 = vmax.f32 %v3140, %v3005
        %v3142 = vmax.f32 %v3141, %v3009
        %v3143 = vmax.f32 %v3142, %v3013
        %v3144 = vmax.f32 %v3143, %v3017
        %v3145 = vmax.f32 %v3144, %v3021
        %v3146 = vmax.f32 %v3145, %v3025
        %v3147 = vmax.f32 %v3146, %v3029
        %v3148 = vmax.f32 %v3147, %v3033
        %v3149 = vmax.f32 %v3148, %v3037
        %v3150 = vmax.f32 %v3149, %v3041
        %v3151 = vmax.f32 %v3150, %v3045
        %v3152 = vmax.f32 %v3151, %v3049
        %v3153 = vmax.f32 %v3152, %v3053
        %v3154 = vmax.f32 %v3153, %v3057
        %v3155 = vmax.f32 %v3154, %v3061
        %v3156 = vmax.f32 %v3155, %v3065
        %v3157 = vmax.f32 %v3156, %v3069
        %v3158 = vmax.f32 %v3157, %v3073
        %v3159 = vmax.f32 %v3158, %v3077
        %v3160 = vmax.f32 %v3159, %v3081
        %v3161 = vmax.f32 %v3160, %v3085
        %v3162 = vmax.f32 %v3161, %v3089
        %v3163 = vmax.f32 %v3162, %v3093
        %v3164 = vmax.f32 %v3163, %v3097
        %v3165 = vmax.f32 %v3164, %v3101
        %v3166 = vmax.f32 %v2978, %v2982
        %v3167 = vmax.f32 %v3166, %v2986
        %v3168 = vmax.f32 %v3167, %v2990
        %v3169 = vmax.f32 %v3168, %v2994
        %v3170 = vmax.f32 %v3169, %v2998
        %v3171 = vmax.f32 %v3170, %v3002
        %v3172 = vmax.f32 %v3171, %v3006
        %v3173 = vmax.f32 %v3172, %v3010
        %v3174 = vmax.f32 %v3173, %v3014
        %v3175 = vmax.f32 %v3174, %v3018
        %v3176 = vmax.f32 %v3175, %v3022
        %v3177 = vmax.f32 %v3176, %v3026
        %v3178 = vmax.f32 %v3177, %v3030
        %v3179 = vmax.f32 %v3178, %v3034
        %v3180 = vmax.f32 %v3179, %v3038
        %v3181 = vmax.f32 %v3180, %v3042
        %v3182 = vmax.f32 %v3181, %v3046
        %v3183 = vmax.f32 %v3182, %v3050
        %v3184 = vmax.f32 %v3183, %v3054
        %v3185 = vmax.f32 %v3184, %v3058
        %v3186 = vmax.f32 %v3185, %v3062
        %v3187 = vmax.f32 %v3186, %v3066
        %v3188 = vmax.f32 %v3187, %v3070
        %v3189 = vmax.f32 %v3188, %v3074
        %v3190 = vmax.f32 %v3189, %v3078
        %v3191 = vmax.f32 %v3190, %v3082
        %v3192 = vmax.f32 %v3191, %v3086
        %v3193 = vmax.f32 %v3192, %v3090
        %v3194 = vmax.f32 %v3193, %v3094
        %v3195 = vmax.f32 %v3194, %v3098
        %v3196 = vmax.f32 %v3195, %v3102
        %v3197 = vmax.f32 %v2979, %v2983
        %v3198 = vmax.f32 %v3197, %v2987
        %v3199 = vmax.f32 %v3198, %v2991
        %v3200 = vmax.f32 %v3199, %v2995
        %v3201 = vmax.f32 %v3200, %v2999
        %v3202 = vmax.f32 %v3201, %v3003
        %v3203 = vmax.f32 %v3202, %v3007
        %v3204 = vmax.f32 %v3203, %v3011
        %v3205 = vmax.f32 %v3204, %v3015
        %v3206 = vmax.f32 %v3205, %v3019
        %v3207 = vmax.f32 %v3206, %v3023
        %v3208 = vmax.f32 %v3207, %v3027
        %v3209 = vmax.f32 %v3208, %v3031
        %v3210 = vmax.f32 %v3209, %v3035
        %v3211 = vmax.f32 %v3210, %v3039
        %v3212 = vmax.f32 %v3211, %v3043
        %v3213 = vmax.f32 %v3212, %v3047
        %v3214 = vmax.f32 %v3213, %v3051
        %v3215 = vmax.f32 %v3214, %v3055
        %v3216 = vmax.f32 %v3215, %v3059
        %v3217 = vmax.f32 %v3216, %v3063
        %v3218 = vmax.f32 %v3217, %v3067
        %v3219 = vmax.f32 %v3218, %v3071
        %v3220 = vmax.f32 %v3219, %v3075
        %v3221 = vmax.f32 %v3220, %v3079
        %v3222 = vmax.f32 %v3221, %v3083
        %v3223 = vmax.f32 %v3222, %v3087
        %v3224 = vmax.f32 %v3223, %v3091
        %v3225 = vmax.f32 %v3224, %v3095
        %v3226 = vmax.f32 %v3225, %v3099
        %v3227 = vmax.f32 %v3226, %v3103
        %v3228 = vsub.f32 %v2976, %v3134
        %v3229 = vsub.f32 %v2977, %v3165
        %v3230 = vsub.f32 %v2978, %v3196
        %v3231 = vsub.f32 %v2979, %v3227
        %v3232 = vsub.f32 %v2980, %v3134
        %v3233 = vsub.f32 %v2981, %v3165
        %v3234 = vsub.f32 %v2982, %v3196
        %v3235 = vsub.f32 %v2983, %v3227
        %v3236 = vsub.f32 %v2984, %v3134
        %v3237 = vsub.f32 %v2985, %v3165
        %v3238 = vsub.f32 %v2986, %v3196
        %v3239 = vsub.f32 %v2987, %v3227
        %v3240 = vsub.f32 %v2988, %v3134
        %v3241 = vsub.f32 %v2989, %v3165
        %v3242 = vsub.f32 %v2990, %v3196
        %v3243 = vsub.f32 %v2991, %v3227
        %v3244 = vsub.f32 %v2992, %v3134
        %v3245 = vsub.f32 %v2993, %v3165
        %v3246 = vsub.f32 %v2994, %v3196
        %v3247 = vsub.f32 %v2995, %v3227
        %v3248 = vsub.f32 %v2996, %v3134
        %v3249 = vsub.f32 %v2997, %v3165
        %v3250 = vsub.f32 %v2998, %v3196
        %v3251 = vsub.f32 %v2999, %v3227
        %v3252 = vsub.f32 %v3000, %v3134
        %v3253 = vsub.f32 %v3001, %v3165
        %v3254 = vsub.f32 %v3002, %v3196
        %v3255 = vsub.f32 %v3003, %v3227
        %v3256 = vsub.f32 %v3004, %v3134
        %v3257 = vsub.f32 %v3005, %v3165
        %v3258 = vsub.f32 %v3006, %v3196
        %v3259 = vsub.f32 %v3007, %v3227
        %v3260 = vsub.f32 %v3008, %v3134
        %v3261 = vsub.f32 %v3009, %v3165
        %v3262 = vsub.f32 %v3010, %v3196
        %v3263 = vsub.f32 %v3011, %v3227
        %v3264 = vsub.f32 %v3012, %v3134
        %v3265 = vsub.f32 %v3013, %v3165
        %v3266 = vsub.f32 %v3014, %v3196
        %v3267 = vsub.f32 %v3015, %v3227
        %v3268 = vsub.f32 %v3016, %v3134
        %v3269 = vsub.f32 %v3017, %v3165
        %v3270 = vsub.f32 %v3018, %v3196
        %v3271 = vsub.f32 %v3019, %v3227
        %v3272 = vsub.f32 %v3020, %v3134
        %v3273 = vsub.f32 %v3021, %v3165
        %v3274 = vsub.f32 %v3022, %v3196
        %v3275 = vsub.f32 %v3023, %v3227
        %v3276 = vsub.f32 %v3024, %v3134
        %v3277 = vsub.f32 %v3025, %v3165
        %v3278 = vsub.f32 %v3026, %v3196
        %v3279 = vsub.f32 %v3027, %v3227
        %v3280 = vsub.f32 %v3028, %v3134
        %v3281 = vsub.f32 %v3029, %v3165
        %v3282 = vsub.f32 %v3030, %v3196
        %v3283 = vsub.f32 %v3031, %v3227
        %v3284 = vsub.f32 %v3032, %v3134
        %v3285 = vsub.f32 %v3033, %v3165
        %v3286 = vsub.f32 %v3034, %v3196
        %v3287 = vsub.f32 %v3035, %v3227
        %v3288 = vsub.f32 %v3036, %v3134
        %v3289 = vsub.f32 %v3037, %v3165
        %v3290 = vsub.f32 %v3038, %v3196
        %v3291 = vsub.f32 %v3039, %v3227
        %v3292 = vsub.f32 %v3040, %v3134
        %v3293 = vsub.f32 %v3041, %v3165
        %v3294 = vsub.f32 %v3042, %v3196
        %v3295 = vsub.f32 %v3043, %v3227
        %v3296 = vsub.f32 %v3044, %v3134
        %v3297 = vsub.f32 %v3045, %v3165
        %v3298 = vsub.f32 %v3046, %v3196
        %v3299 = vsub.f32 %v3047, %v3227
        %v3300 = vsub.f32 %v3048, %v3134
        %v3301 = vsub.f32 %v3049, %v3165
        %v3302 = vsub.f32 %v3050, %v3196
        %v3303 = vsub.f32 %v3051, %v3227
        %v3304 = vsub.f32 %v3052, %v3134
        %v3305 = vsub.f32 %v3053, %v3165
        %v3306 = vsub.f32 %v3054, %v3196
        %v3307 = vsub.f32 %v3055, %v3227
        %v3308 = vsub.f32 %v3056, %v3134
        %v3309 = vsub.f32 %v3057, %v3165
        %v3310 = vsub.f32 %v3058, %v3196
        %v3311 = vsub.f32 %v3059, %v3227
        %v3312 = vsub.f32 %v3060, %v3134
        %v3313 = vsub.f32 %v3061, %v3165
        %v3314 = vsub.f32 %v3062, %v3196
        %v3315 = vsub.f32 %v3063, %v3227
        %v3316 = vsub.f32 %v3064, %v3134
        %v3317 = vsub.f32 %v3065, %v3165
        %v3318 = vsub.f32 %v3066, %v3196
        %v3319 = vsub.f32 %v3067, %v3227
        %v3320 = vsub.f32 %v3068, %v3134
        %v3321 = vsub.f32 %v3069, %v3165
        %v3322 = vsub.f32 %v3070, %v3196
        %v3323 = vsub.f32 %v3071, %v3227
        %v3324 = vsub.f32 %v3072, %v3134
        %v3325 = vsub.f32 %v3073, %v3165
        %v3326 = vsub.f32 %v3074, %v3196
        %v3327 = vsub.f32 %v3075, %v3227
        %v3328 = vsub.f32 %v3076, %v3134
        %v3329 = vsub.f32 %v3077, %v3165
        %v3330 = vsub.f32 %v3078, %v3196
        %v3331 = vsub.f32 %v3079, %v3227
        %v3332 = vsub.f32 %v3080, %v3134
        %v3333 = vsub.f32 %v3081, %v3165
        %v3334 = vsub.f32 %v3082, %v3196
        %v3335 = vsub.f32 %v3083, %v3227
        %v3336 = vsub.f32 %v3084, %v3134
        %v3337 = vsub.f32 %v3085, %v3165
        %v3338 = vsub.f32 %v3086, %v3196
        %v3339 = vsub.f32 %v3087, %v3227
        %v3340 = vsub.f32 %v3088, %v3134
        %v3341 = vsub.f32 %v3089, %v3165
        %v3342 = vsub.f32 %v3090, %v3196
        %v3343 = vsub.f32 %v3091, %v3227
        %v3344 = vsub.f32 %v3092, %v3134
        %v3345 = vsub.f32 %v3093, %v3165
        %v3346 = vsub.f32 %v3094, %v3196
        %v3347 = vsub.f32 %v3095, %v3227
        %v3348 = vsub.f32 %v3096, %v3134
        %v3349 = vsub.f32 %v3097, %v3165
        %v3350 = vsub.f32 %v3098, %v3196
        %v3351 = vsub.f32 %v3099, %v3227
        %v3352 = vsub.f32 %v3100, %v3134
        %v3353 = vsub.f32 %v3101, %v3165
        %v3354 = vsub.f32 %v3102, %v3196
        %v3355 = vsub.f32 %v3103, %v3227
        %v3356 = vmul.f32 %v3228, 1.442695
        %v3357 = vpow.pop %v3356
        %v3358 = vmul.f32 %v3229, 1.442695
        %v3359 = vpow.pop %v3358
        %v3360 = vmul.f32 %v3230, 1.442695
        %v3361 = vpow.pop %v3360
        %v3362 = vmul.f32 %v3231, 1.442695
        %v3363 = vpow.pop %v3362
        %v3364 = vmul.f32 %v3232, 1.442695
        %v3365 = vpow.pop %v3364
        %v3366 = vmul.f32 %v3233, 1.442695
        %v3367 = vpow.pop %v3366
        %v3368 = vmul.f32 %v3234, 1.442695
        %v3369 = vpow.pop %v3368
        %v3370 = vmul.f32 %v3235, 1.442695
        %v3371 = vpow.pop %v3370
        %v3372 = vmul.f32 %v3236, 1.442695
        %v3373 = vpow.pop %v3372
        %v3374 = vmul.f32 %v3237, 1.442695
        %v3375 = vpow.pop %v3374
        %v3376 = vmul.f32 %v3238, 1.442695
        %v3377 = vpow.pop %v3376
        %v3378 = vmul.f32 %v3239, 1.442695
        %v3379 = vpow.pop %v3378
        %v3380 = vmul.f32 %v3240, 1.442695
        %v3381 = vpow.pop %v3380
        %v3382 = vmul.f32 %v3241, 1.442695
        %v3383 = vpow.pop %v3382
        %v3384 = vmul.f32 %v3242, 1.442695
        %v3385 = vpow.pop %v3384
        %v3386 = vmul.f32 %v3243, 1.442695
        %v3387 = vpow.pop %v3386
        %v3388 = vmul.f32 %v3244, 1.442695
        %v3389 = vpow.pop %v3388
        %v3390 = vmul.f32 %v3245, 1.442695
        %v3391 = vpow.pop %v3390
        %v3392 = vmul.f32 %v3246, 1.442695
        %v3393 = vpow.pop %v3392
        %v3394 = vmul.f32 %v3247, 1.442695
        %v3395 = vpow.pop %v3394
        %v3396 = vmul.f32 %v3248, 1.442695
        %v3397 = vpow.pop %v3396
        %v3398 = vmul.f32 %v3249, 1.442695
        %v3399 = vpow.pop %v3398
        %v3400 = vmul.f32 %v3250, 1.442695
        %v3401 = vpow.pop %v3400
        %v3402 = vmul.f32 %v3251, 1.442695
        %v3403 = vpow.pop %v3402
        %v3404 = vmul.f32 %v3252, 1.442695
        %v3405 = vpow.pop %v3404
        %v3406 = vmul.f32 %v3253, 1.442695
        %v3407 = vpow.pop %v3406
        %v3408 = vmul.f32 %v3254, 1.442695
        %v3409 = vpow.pop %v3408
        %v3410 = vmul.f32 %v3255, 1.442695
        %v3411 = vpow.pop %v3410
        %v3412 = vmul.f32 %v3256, 1.442695
        %v3413 = vpow.pop %v3412
        %v3414 = vmul.f32 %v3257, 1.442695
        %v3415 = vpow.pop %v3414
        %v3416 = vmul.f32 %v3258, 1.442695
        %v3417 = vpow.pop %v3416
        %v3418 = vmul.f32 %v3259, 1.442695
        %v3419 = vpow.pop %v3418
        %v3420 = vmul.f32 %v3260, 1.442695
        %v3421 = vpow.pop %v3420
        %v3422 = vmul.f32 %v3261, 1.442695
        %v3423 = vpow.pop %v3422
        %v3424 = vmul.f32 %v3262, 1.442695
        %v3425 = vpow.pop %v3424
        %v3426 = vmul.f32 %v3263, 1.442695
        %v3427 = vpow.pop %v3426
        %v3428 = vmul.f32 %v3264, 1.442695
        %v3429 = vpow.pop %v3428
        %v3430 = vmul.f32 %v3265, 1.442695
        %v3431 = vpow.pop %v3430
        %v3432 = vmul.f32 %v3266, 1.442695
        %v3433 = vpow.pop %v3432
        %v3434 = vmul.f32 %v3267, 1.442695
        %v3435 = vpow.pop %v3434
        %v3436 = vmul.f32 %v3268, 1.442695
        %v3437 = vpow.pop %v3436
        %v3438 = vmul.f32 %v3269, 1.442695
        %v3439 = vpow.pop %v3438
        %v3440 = vmul.f32 %v3270, 1.442695
        %v3441 = vpow.pop %v3440
        %v3442 = vmul.f32 %v3271, 1.442695
        %v3443 = vpow.pop %v3442
        %v3444 = vmul.f32 %v3272, 1.442695
        %v3445 = vpow.pop %v3444
        %v3446 = vmul.f32 %v3273, 1.442695
        %v3447 = vpow.pop %v3446
        %v3448 = vmul.f32 %v3274, 1.442695
        %v3449 = vpow.pop %v3448
        %v3450 = vmul.f32 %v3275, 1.442695
        %v3451 = vpow.pop %v3450
        %v3452 = vmul.f32 %v3276, 1.442695
        %v3453 = vpow.pop %v3452
        %v3454 = vmul.f32 %v3277, 1.442695
        %v3455 = vpow.pop %v3454
        %v3456 = vmul.f32 %v3278, 1.442695
        %v3457 = vpow.pop %v3456
        %v3458 = vmul.f32 %v3279, 1.442695
        %v3459 = vpow.pop %v3458
        %v3460 = vmul.f32 %v3280, 1.442695
        %v3461 = vpow.pop %v3460
        %v3462 = vmul.f32 %v3281, 1.442695
        %v3463 = vpow.pop %v3462
        %v3464 = vmul.f32 %v3282, 1.442695
        %v3465 = vpow.pop %v3464
        %v3466 = vmul.f32 %v3283, 1.442695
        %v3467 = vpow.pop %v3466
        %v3468 = vmul.f32 %v3284, 1.442695
        %v3469 = vpow.pop %v3468
        %v3470 = vmul.f32 %v3285, 1.442695
        %v3471 = vpow.pop %v3470
        %v3472 = vmul.f32 %v3286, 1.442695
        %v3473 = vpow.pop %v3472
        %v3474 = vmul.f32 %v3287, 1.442695
        %v3475 = vpow.pop %v3474
        %v3476 = vmul.f32 %v3288, 1.442695
        %v3477 = vpow.pop %v3476
        %v3478 = vmul.f32 %v3289, 1.442695
        %v3479 = vpow.pop %v3478
        %v3480 = vmul.f32 %v3290, 1.442695
        %v3481 = vpow.pop %v3480
        %v3482 = vmul.f32 %v3291, 1.442695
        %v3483 = vpow.pop %v3482
        %v3484 = vmul.f32 %v3292, 1.442695
        %v3485 = vpow.pop %v3484
        %v3486 = vmul.f32 %v3293, 1.442695
        %v3487 = vpow.pop %v3486
        %v3488 = vmul.f32 %v3294, 1.442695
        %v3489 = vpow.pop %v3488
        %v3490 = vmul.f32 %v3295, 1.442695
        %v3491 = vpow.pop %v3490
        %v3492 = vmul.f32 %v3296, 1.442695
        %v3493 = vpow.pop %v3492
        %v3494 = vmul.f32 %v3297, 1.442695
        %v3495 = vpow.pop %v3494
        %v3496 = vmul.f32 %v3298, 1.442695
        %v3497 = vpow.pop %v3496
        %v3498 = vmul.f32 %v3299, 1.442695
        %v3499 = vpow.pop %v3498
        %v3500 = vmul.f32 %v3300, 1.442695
        %v3501 = vpow.pop %v3500
        %v3502 = vmul.f32 %v3301, 1.442695
        %v3503 = vpow.pop %v3502
        %v3504 = vmul.f32 %v3302, 1.442695
        %v3505 = vpow.pop %v3504
        %v3506 = vmul.f32 %v3303, 1.442695
        %v3507 = vpow.pop %v3506
        %v3508 = vmul.f32 %v3304, 1.442695
        %v3509 = vpow.pop %v3508
        %v3510 = vmul.f32 %v3305, 1.442695
        %v3511 = vpow.pop %v3510
        %v3512 = vmul.f32 %v3306, 1.442695
        %v3513 = vpow.pop %v3512
        %v3514 = vmul.f32 %v3307, 1.442695
        %v3515 = vpow.pop %v3514
        %v3516 = vmul.f32 %v3308, 1.442695
        %v3517 = vpow.pop %v3516
        %v3518 = vmul.f32 %v3309, 1.442695
        %v3519 = vpow.pop %v3518
        %v3520 = vmul.f32 %v3310, 1.442695
        %v3521 = vpow.pop %v3520
        %v3522 = vmul.f32 %v3311, 1.442695
        %v3523 = vpow.pop %v3522
        %v3524 = vmul.f32 %v3312, 1.442695
        %v3525 = vpow.pop %v3524
        %v3526 = vmul.f32 %v3313, 1.442695
        %v3527 = vpow.pop %v3526
        %v3528 = vmul.f32 %v3314, 1.442695
        %v3529 = vpow.pop %v3528
        %v3530 = vmul.f32 %v3315, 1.442695
        %v3531 = vpow.pop %v3530
        %v3532 = vmul.f32 %v3316, 1.442695
        %v3533 = vpow.pop %v3532
        %v3534 = vmul.f32 %v3317, 1.442695
        %v3535 = vpow.pop %v3534
        %v3536 = vmul.f32 %v3318, 1.442695
        %v3537 = vpow.pop %v3536
        %v3538 = vmul.f32 %v3319, 1.442695
        %v3539 = vpow.pop %v3538
        %v3540 = vmul.f32 %v3320, 1.442695
        %v3541 = vpow.pop %v3540
        %v3542 = vmul.f32 %v3321, 1.442695
        %v3543 = vpow.pop %v3542
        %v3544 = vmul.f32 %v3322, 1.442695
        %v3545 = vpow.pop %v3544
        %v3546 = vmul.f32 %v3323, 1.442695
        %v3547 = vpow.pop %v3546
        %v3548 = vmul.f32 %v3324, 1.442695
        %v3549 = vpow.pop %v3548
        %v3550 = vmul.f32 %v3325, 1.442695
        %v3551 = vpow.pop %v3550
        %v3552 = vmul.f32 %v3326, 1.442695
        %v3553 = vpow.pop %v3552
        %v3554 = vmul.f32 %v3327, 1.442695
        %v3555 = vpow.pop %v3554
        %v3556 = vmul.f32 %v3328, 1.442695
        %v3557 = vpow.pop %v3556
        %v3558 = vmul.f32 %v3329, 1.442695
        %v3559 = vpow.pop %v3558
        %v3560 = vmul.f32 %v3330, 1.442695
        %v3561 = vpow.pop %v3560
        %v3562 = vmul.f32 %v3331, 1.442695
        %v3563 = vpow.pop %v3562
        %v3564 = vmul.f32 %v3332, 1.442695
        %v3565 = vpow.pop %v3564
        %v3566 = vmul.f32 %v3333, 1.442695
        %v3567 = vpow.pop %v3566
        %v3568 = vmul.f32 %v3334, 1.442695
        %v3569 = vpow.pop %v3568
        %v3570 = vmul.f32 %v3335, 1.442695
        %v3571 = vpow.pop %v3570
        %v3572 = vmul.f32 %v3336, 1.442695
        %v3573 = vpow.pop %v3572
        %v3574 = vmul.f32 %v3337, 1.442695
        %v3575 = vpow.pop %v3574
        %v3576 = vmul.f32 %v3338, 1.442695
        %v3577 = vpow.pop %v3576
        %v3578 = vmul.f32 %v3339, 1.442695
        %v3579 = vpow.pop %v3578
        %v3580 = vmul.f32 %v3340, 1.442695
        %v3581 = vpow.pop %v3580
        %v3582 = vmul.f32 %v3341, 1.442695
        %v3583 = vpow.pop %v3582
        %v3584 = vmul.f32 %v3342, 1.442695
        %v3585 = vpow.pop %v3584
        %v3586 = vmul.f32 %v3343, 1.442695
        %v3587 = vpow.pop %v3586
        %v3588 = vmul.f32 %v3344, 1.442695
        %v3589 = vpow.pop %v3588
        %v3590 = vmul.f32 %v3345, 1.442695
        %v3591 = vpow.pop %v3590
        %v3592 = vmul.f32 %v3346, 1.442695
        %v3593 = vpow.pop %v3592
        %v3594 = vmul.f32 %v3347, 1.442695
        %v3595 = vpow.pop %v3594
        %v3596 = vmul.f32 %v3348, 1.442695
        %v3597 = vpow.pop %v3596
        %v3598 = vmul.f32 %v3349, 1.442695
        %v3599 = vpow.pop %v3598
        %v3600 = vmul.f32 %v3350, 1.442695
        %v3601 = vpow.pop %v3600
        %v3602 = vmul.f32 %v3351, 1.442695
        %v3603 = vpow.pop %v3602
        %v3604 = vmul.f32 %v3352, 1.442695
        %v3605 = vpow.pop %v3604
        %v3606 = vmul.f32 %v3353, 1.442695
        %v3607 = vpow.pop %v3606
        %v3608 = vmul.f32 %v3354, 1.442695
        %v3609 = vpow.pop %v3608
        %v3610 = vmul.f32 %v3355, 1.442695
        %v3611 = vpow.pop %v3610
        %3613 = vset.pattern.permute.xlu0 0
        %3614 = vperm.xlu0 %3613, %v2080
        %v3615 = vpop.permute.xlu0 %3614
        %3618 = vset.pattern.permute.xlu0 0
        %3619 = vperm.xlu0 %3618, %v2081
        %v3620 = vpop.permute.xlu0 %3619
        %3623 = vset.pattern.permute.xlu0 0
        %3624 = vperm.xlu0 %3623, %v2082
        %v3625 = vpop.permute.xlu0 %3624
        %3628 = vset.pattern.permute.xlu0 0
        %3629 = vperm.xlu0 %3628, %v2083
        %v3630 = vpop.permute.xlu0 %3629
        %3633 = vset.pattern.permute.xlu0 0
        %3634 = vperm.xlu0 %3633, %v2084
        %v3635 = vpop.permute.xlu0 %3634
        %3638 = vset.pattern.permute.xlu0 0
        %3639 = vperm.xlu0 %3638, %v2085
        %v3640 = vpop.permute.xlu0 %3639
        %3643 = vset.pattern.permute.xlu0 0
        %3644 = vperm.xlu0 %3643, %v2086
        %v3645 = vpop.permute.xlu0 %3644
        %3648 = vset.pattern.permute.xlu0 0
        %3649 = vperm.xlu0 %3648, %v2087
        %v3650 = vpop.permute.xlu0 %3649
        %3653 = vset.pattern.permute.xlu0 0
        %3654 = vperm.xlu0 %3653, %v2088
        %v3655 = vpop.permute.xlu0 %3654
        %3658 = vset.pattern.permute.xlu0 0
        %3659 = vperm.xlu0 %3658, %v2089
        %v3660 = vpop.permute.xlu0 %3659
        %3663 = vset.pattern.permute.xlu0 0
        %3664 = vperm.xlu0 %3663, %v2090
        %v3665 = vpop.permute.xlu0 %3664
        %3668 = vset.pattern.permute.xlu0 0
        %3669 = vperm.xlu0 %3668, %v2091
        %v3670 = vpop.permute.xlu0 %3669
        %3673 = vset.pattern.permute.xlu0 0
        %3674 = vperm.xlu0 %3673, %v2092
        %v3675 = vpop.permute.xlu0 %3674
        %3678 = vset.pattern.permute.xlu0 0
        %3679 = vperm.xlu0 %3678, %v2093
        %v3680 = vpop.permute.xlu0 %3679
        %3683 = vset.pattern.permute.xlu0 0
        %3684 = vperm.xlu0 %3683, %v2094
        %v3685 = vpop.permute.xlu0 %3684
        %3688 = vset.pattern.permute.xlu0 0
        %3689 = vperm.xlu0 %3688, %v2095
        %v3690 = vpop.permute.xlu0 %3689
        %3693 = vset.pattern.permute.xlu0 0
        %3694 = vperm.xlu0 %3693, %v2096
        %v3695 = vpop.permute.xlu0 %3694
        %3698 = vset.pattern.permute.xlu0 0
        %3699 = vperm.xlu0 %3698, %v2097
        %v3700 = vpop.permute.xlu0 %3699
        %3703 = vset.pattern.permute.xlu0 0
        %3704 = vperm.xlu0 %3703, %v2098
        %v3705 = vpop.permute.xlu0 %3704
        %3708 = vset.pattern.permute.xlu0 0
        %3709 = vperm.xlu0 %3708, %v2099
        %v3710 = vpop.permute.xlu0 %3709
        %3713 = vset.pattern.permute.xlu0 0
        %3714 = vperm.xlu0 %3713, %v2100
        %v3715 = vpop.permute.xlu0 %3714
        %3718 = vset.pattern.permute.xlu0 0
        %3719 = vperm.xlu0 %3718, %v2101
        %v3720 = vpop.permute.xlu0 %3719
        %3723 = vset.pattern.permute.xlu0 0
        %3724 = vperm.xlu0 %3723, %v2102
        %v3725 = vpop.permute.xlu0 %3724
        %3728 = vset.pattern.permute.xlu0 0
        %3729 = vperm.xlu0 %3728, %v2103
        %v3730 = vpop.permute.xlu0 %3729
        %3733 = vset.pattern.permute.xlu0 0
        %3734 = vperm.xlu0 %3733, %v2104
        %v3735 = vpop.permute.xlu0 %3734
        %3738 = vset.pattern.permute.xlu0 0
        %3739 = vperm.xlu0 %3738, %v2105
        %v3740 = vpop.permute.xlu0 %3739
        %3743 = vset.pattern.permute.xlu0 0
        %3744 = vperm.xlu0 %3743, %v2106
        %v3745 = vpop.permute.xlu0 %3744
        %3748 = vset.pattern.permute.xlu0 0
        %3749 = vperm.xlu0 %3748, %v2107
        %v3750 = vpop.permute.xlu0 %3749
        %3753 = vset.pattern.permute.xlu0 0
        %3754 = vperm.xlu0 %3753, %v2108
        %v3755 = vpop.permute.xlu0 %3754
        %3758 = vset.pattern.permute.xlu0 0
        %3759 = vperm.xlu0 %3758, %v2109
        %v3760 = vpop.permute.xlu0 %3759
        %3763 = vset.pattern.permute.xlu0 0
        %3764 = vperm.xlu0 %3763, %v2110
        %v3765 = vpop.permute.xlu0 %3764
        %3768 = vset.pattern.permute.xlu0 0
        %3769 = vperm.xlu0 %3768, %v2111
        %v3770 = vpop.permute.xlu0 %3769
        %3773 = vset.pattern.permute.xlu0 0
        %3774 = vperm.xlu0 %3773, %v2112
        %v3775 = vpop.permute.xlu0 %3774
        %3778 = vset.pattern.permute.xlu0 0
        %3779 = vperm.xlu0 %3778, %v2113
        %v3780 = vpop.permute.xlu0 %3779
        %3783 = vset.pattern.permute.xlu0 0
        %3784 = vperm.xlu0 %3783, %v2114
        %v3785 = vpop.permute.xlu0 %3784
        %3788 = vset.pattern.permute.xlu0 0
        %3789 = vperm.xlu0 %3788, %v2115
        %v3790 = vpop.permute.xlu0 %3789
        %3793 = vset.pattern.permute.xlu0 0
        %3794 = vperm.xlu0 %3793, %v2116
        %v3795 = vpop.permute.xlu0 %3794
        %3798 = vset.pattern.permute.xlu0 0
        %3799 = vperm.xlu0 %3798, %v2117
        %v3800 = vpop.permute.xlu0 %3799
        %3803 = vset.pattern.permute.xlu0 0
        %3804 = vperm.xlu0 %3803, %v2118
        %v3805 = vpop.permute.xlu0 %3804
        %3808 = vset.pattern.permute.xlu0 0
        %3809 = vperm.xlu0 %3808, %v2119
        %v3810 = vpop.permute.xlu0 %3809
        %3813 = vset.pattern.permute.xlu0 0
        %3814 = vperm.xlu0 %3813, %v2120
        %v3815 = vpop.permute.xlu0 %3814
        %3818 = vset.pattern.permute.xlu0 0
        %3819 = vperm.xlu0 %3818, %v2121
        %v3820 = vpop.permute.xlu0 %3819
        %3823 = vset.pattern.permute.xlu0 0
        %3824 = vperm.xlu0 %3823, %v2122
        %v3825 = vpop.permute.xlu0 %3824
        %3828 = vset.pattern.permute.xlu0 0
        %3829 = vperm.xlu0 %3828, %v2123
        %v3830 = vpop.permute.xlu0 %3829
        %3833 = vset.pattern.permute.xlu0 0
        %3834 = vperm.xlu0 %3833, %v2124
        %v3835 = vpop.permute.xlu0 %3834
        %3838 = vset.pattern.permute.xlu0 0
        %3839 = vperm.xlu0 %3838, %v2125
        %v3840 = vpop.permute.xlu0 %3839
        %3843 = vset.pattern.permute.xlu0 0
        %3844 = vperm.xlu0 %3843, %v2126
        %v3845 = vpop.permute.xlu0 %3844
        %3848 = vset.pattern.permute.xlu0 0
        %3849 = vperm.xlu0 %3848, %v2127
        %v3850 = vpop.permute.xlu0 %3849
        %3853 = vset.pattern.permute.xlu0 0
        %3854 = vperm.xlu0 %3853, %v2128
        %v3855 = vpop.permute.xlu0 %3854
        %3858 = vset.pattern.permute.xlu0 0
        %3859 = vperm.xlu0 %3858, %v2129
        %v3860 = vpop.permute.xlu0 %3859
        %3863 = vset.pattern.permute.xlu0 0
        %3864 = vperm.xlu0 %3863, %v2130
        %v3865 = vpop.permute.xlu0 %3864
        %3868 = vset.pattern.permute.xlu0 0
        %3869 = vperm.xlu0 %3868, %v2131
        %v3870 = vpop.permute.xlu0 %3869
        %3873 = vset.pattern.permute.xlu0 0
        %3874 = vperm.xlu0 %3873, %v2132
        %v3875 = vpop.permute.xlu0 %3874
        %3878 = vset.pattern.permute.xlu0 0
        %3879 = vperm.xlu0 %3878, %v2133
        %v3880 = vpop.permute.xlu0 %3879
        %3883 = vset.pattern.permute.xlu0 0
        %3884 = vperm.xlu0 %3883, %v2134
        %v3885 = vpop.permute.xlu0 %3884
        %3888 = vset.pattern.permute.xlu0 0
        %3889 = vperm.xlu0 %3888, %v2135
        %v3890 = vpop.permute.xlu0 %3889
        %3893 = vset.pattern.permute.xlu0 0
        %3894 = vperm.xlu0 %3893, %v2136
        %v3895 = vpop.permute.xlu0 %3894
        %3898 = vset.pattern.permute.xlu0 0
        %3899 = vperm.xlu0 %3898, %v2137
        %v3900 = vpop.permute.xlu0 %3899
        %3903 = vset.pattern.permute.xlu0 0
        %3904 = vperm.xlu0 %3903, %v2138
        %v3905 = vpop.permute.xlu0 %3904
        %3908 = vset.pattern.permute.xlu0 0
        %3909 = vperm.xlu0 %3908, %v2139
        %v3910 = vpop.permute.xlu0 %3909
        %3913 = vset.pattern.permute.xlu0 0
        %3914 = vperm.xlu0 %3913, %v2140
        %v3915 = vpop.permute.xlu0 %3914
        %3918 = vset.pattern.permute.xlu0 0
        %3919 = vperm.xlu0 %3918, %v2141
        %v3920 = vpop.permute.xlu0 %3919
        %3923 = vset.pattern.permute.xlu0 0
        %3924 = vperm.xlu0 %3923, %v2142
        %v3925 = vpop.permute.xlu0 %3924
        %3928 = vset.pattern.permute.xlu0 0
        %3929 = vperm.xlu0 %3928, %v2143
        %v3930 = vpop.permute.xlu0 %3929
        %3933 = vset.pattern.permute.xlu0 0
        %3934 = vperm.xlu0 %3933, %v2144
        %v3935 = vpop.permute.xlu0 %3934
        %3938 = vset.pattern.permute.xlu0 0
        %3939 = vperm.xlu0 %3938, %v2145
        %v3940 = vpop.permute.xlu0 %3939
        %3943 = vset.pattern.permute.xlu0 0
        %3944 = vperm.xlu0 %3943, %v2146
        %v3945 = vpop.permute.xlu0 %3944
        %3948 = vset.pattern.permute.xlu0 0
        %3949 = vperm.xlu0 %3948, %v2147
        %v3950 = vpop.permute.xlu0 %3949
        %3953 = vset.pattern.permute.xlu0 0
        %3954 = vperm.xlu0 %3953, %v2148
        %v3955 = vpop.permute.xlu0 %3954
        %3958 = vset.pattern.permute.xlu0 0
        %3959 = vperm.xlu0 %3958, %v2149
        %v3960 = vpop.permute.xlu0 %3959
        %3963 = vset.pattern.permute.xlu0 0
        %3964 = vperm.xlu0 %3963, %v2150
        %v3965 = vpop.permute.xlu0 %3964
        %3968 = vset.pattern.permute.xlu0 0
        %3969 = vperm.xlu0 %3968, %v2151
        %v3970 = vpop.permute.xlu0 %3969
        %3973 = vset.pattern.permute.xlu0 0
        %3974 = vperm.xlu0 %3973, %v2152
        %v3975 = vpop.permute.xlu0 %3974
        %3978 = vset.pattern.permute.xlu0 0
        %3979 = vperm.xlu0 %3978, %v2153
        %v3980 = vpop.permute.xlu0 %3979
        %3983 = vset.pattern.permute.xlu0 0
        %3984 = vperm.xlu0 %3983, %v2154
        %v3985 = vpop.permute.xlu0 %3984
        %3988 = vset.pattern.permute.xlu0 0
        %3989 = vperm.xlu0 %3988, %v2155
        %v3990 = vpop.permute.xlu0 %3989
        %3993 = vset.pattern.permute.xlu0 0
        %3994 = vperm.xlu0 %3993, %v2156
        %v3995 = vpop.permute.xlu0 %3994
        %3998 = vset.pattern.permute.xlu0 0
        %3999 = vperm.xlu0 %3998, %v2157
        %v4000 = vpop.permute.xlu0 %3999
        %4003 = vset.pattern.permute.xlu0 0
        %4004 = vperm.xlu0 %4003, %v2158
        %v4005 = vpop.permute.xlu0 %4004
        %4008 = vset.pattern.permute.xlu0 0
        %4009 = vperm.xlu0 %4008, %v2159
        %v4010 = vpop.permute.xlu0 %4009
        %4013 = vset.pattern.permute.xlu0 0
        %4014 = vperm.xlu0 %4013, %v2160
        %v4015 = vpop.permute.xlu0 %4014
        %4018 = vset.pattern.permute.xlu0 0
        %4019 = vperm.xlu0 %4018, %v2161
        %v4020 = vpop.permute.xlu0 %4019
        %4023 = vset.pattern.permute.xlu0 0
        %4024 = vperm.xlu0 %4023, %v2162
        %v4025 = vpop.permute.xlu0 %4024
        %4028 = vset.pattern.permute.xlu0 0
        %4029 = vperm.xlu0 %4028, %v2163
        %v4030 = vpop.permute.xlu0 %4029
        %4033 = vset.pattern.permute.xlu0 0
        %4034 = vperm.xlu0 %4033, %v2164
        %v4035 = vpop.permute.xlu0 %4034
        %4038 = vset.pattern.permute.xlu0 0
        %4039 = vperm.xlu0 %4038, %v2165
        %v4040 = vpop.permute.xlu0 %4039
        %4043 = vset.pattern.permute.xlu0 0
        %4044 = vperm.xlu0 %4043, %v2166
        %v4045 = vpop.permute.xlu0 %4044
        %4048 = vset.pattern.permute.xlu0 0
        %4049 = vperm.xlu0 %4048, %v2167
        %v4050 = vpop.permute.xlu0 %4049
        %4053 = vset.pattern.permute.xlu0 0
        %4054 = vperm.xlu0 %4053, %v2168
        %v4055 = vpop.permute.xlu0 %4054
        %4058 = vset.pattern.permute.xlu0 0
        %4059 = vperm.xlu0 %4058, %v2169
        %v4060 = vpop.permute.xlu0 %4059
        %4063 = vset.pattern.permute.xlu0 0
        %4064 = vperm.xlu0 %4063, %v2170
        %v4065 = vpop.permute.xlu0 %4064
        %4068 = vset.pattern.permute.xlu0 0
        %4069 = vperm.xlu0 %4068, %v2171
        %v4070 = vpop.permute.xlu0 %4069
        %4073 = vset.pattern.permute.xlu0 0
        %4074 = vperm.xlu0 %4073, %v2172
        %v4075 = vpop.permute.xlu0 %4074
        %4078 = vset.pattern.permute.xlu0 0
        %4079 = vperm.xlu0 %4078, %v2173
        %v4080 = vpop.permute.xlu0 %4079
        %4083 = vset.pattern.permute.xlu0 0
        %4084 = vperm.xlu0 %4083, %v2174
        %v4085 = vpop.permute.xlu0 %4084
        %4088 = vset.pattern.permute.xlu0 0
        %4089 = vperm.xlu0 %4088, %v2175
        %v4090 = vpop.permute.xlu0 %4089
        %4093 = vset.pattern.permute.xlu0 0
        %4094 = vperm.xlu0 %4093, %v2176
        %v4095 = vpop.permute.xlu0 %4094
        %4098 = vset.pattern.permute.xlu0 0
        %4099 = vperm.xlu0 %4098, %v2177
        %v4100 = vpop.permute.xlu0 %4099
        %4103 = vset.pattern.permute.xlu0 0
        %4104 = vperm.xlu0 %4103, %v2178
        %v4105 = vpop.permute.xlu0 %4104
        %4108 = vset.pattern.permute.xlu0 0
        %4109 = vperm.xlu0 %4108, %v2179
        %v4110 = vpop.permute.xlu0 %4109
        %4113 = vset.pattern.permute.xlu0 0
        %4114 = vperm.xlu0 %4113, %v2180
        %v4115 = vpop.permute.xlu0 %4114
        %4118 = vset.pattern.permute.xlu0 0
        %4119 = vperm.xlu0 %4118, %v2181
        %v4120 = vpop.permute.xlu0 %4119
        %4123 = vset.pattern.permute.xlu0 0
        %4124 = vperm.xlu0 %4123, %v2182
        %v4125 = vpop.permute.xlu0 %4124
        %4128 = vset.pattern.permute.xlu0 0
        %4129 = vperm.xlu0 %4128, %v2183
        %v4130 = vpop.permute.xlu0 %4129
        %4133 = vset.pattern.permute.xlu0 0
        %4134 = vperm.xlu0 %4133, %v2184
        %v4135 = vpop.permute.xlu0 %4134
        %4138 = vset.pattern.permute.xlu0 0
        %4139 = vperm.xlu0 %4138, %v2185
        %v4140 = vpop.permute.xlu0 %4139
        %4143 = vset.pattern.permute.xlu0 0
        %4144 = vperm.xlu0 %4143, %v2186
        %v4145 = vpop.permute.xlu0 %4144
        %4148 = vset.pattern.permute.xlu0 0
        %4149 = vperm.xlu0 %4148, %v2187
        %v4150 = vpop.permute.xlu0 %4149
        %4153 = vset.pattern.permute.xlu0 0
        %4154 = vperm.xlu0 %4153, %v2188
        %v4155 = vpop.permute.xlu0 %4154
        %4158 = vset.pattern.permute.xlu0 0
        %4159 = vperm.xlu0 %4158, %v2189
        %v4160 = vpop.permute.xlu0 %4159
        %4163 = vset.pattern.permute.xlu0 0
        %4164 = vperm.xlu0 %4163, %v2190
        %v4165 = vpop.permute.xlu0 %4164
        %4168 = vset.pattern.permute.xlu0 0
        %4169 = vperm.xlu0 %4168, %v2191
        %v4170 = vpop.permute.xlu0 %4169
        %4173 = vset.pattern.permute.xlu0 0
        %4174 = vperm.xlu0 %4173, %v2192
        %v4175 = vpop.permute.xlu0 %4174
        %4178 = vset.pattern.permute.xlu0 0
        %4179 = vperm.xlu0 %4178, %v2193
        %v4180 = vpop.permute.xlu0 %4179
        %4183 = vset.pattern.permute.xlu0 0
        %4184 = vperm.xlu0 %4183, %v2194
        %v4185 = vpop.permute.xlu0 %4184
        %4188 = vset.pattern.permute.xlu0 0
        %4189 = vperm.xlu0 %4188, %v2195
        %v4190 = vpop.permute.xlu0 %4189
        %4193 = vset.pattern.permute.xlu0 0
        %4194 = vperm.xlu0 %4193, %v2196
        %v4195 = vpop.permute.xlu0 %4194
        %4198 = vset.pattern.permute.xlu0 0
        %4199 = vperm.xlu0 %4198, %v2197
        %v4200 = vpop.permute.xlu0 %4199
        %4203 = vset.pattern.permute.xlu0 0
        %4204 = vperm.xlu0 %4203, %v2198
        %v4205 = vpop.permute.xlu0 %4204
        %4208 = vset.pattern.permute.xlu0 0
        %4209 = vperm.xlu0 %4208, %v2199
        %v4210 = vpop.permute.xlu0 %4209
        %4213 = vset.pattern.permute.xlu0 0
        %4214 = vperm.xlu0 %4213, %v2200
        %v4215 = vpop.permute.xlu0 %4214
        %4218 = vset.pattern.permute.xlu0 0
        %4219 = vperm.xlu0 %4218, %v2201
        %v4220 = vpop.permute.xlu0 %4219
        %4223 = vset.pattern.permute.xlu0 0
        %4224 = vperm.xlu0 %4223, %v2202
        %v4225 = vpop.permute.xlu0 %4224
        %4228 = vset.pattern.permute.xlu0 0
        %4229 = vperm.xlu0 %4228, %v2203
        %v4230 = vpop.permute.xlu0 %4229
        %4233 = vset.pattern.permute.xlu0 0
        %4234 = vperm.xlu0 %4233, %v2204
        %v4235 = vpop.permute.xlu0 %4234
        %4238 = vset.pattern.permute.xlu0 0
        %4239 = vperm.xlu0 %4238, %v2205
        %v4240 = vpop.permute.xlu0 %4239
        %4243 = vset.pattern.permute.xlu0 0
        %4244 = vperm.xlu0 %4243, %v2206
        %v4245 = vpop.permute.xlu0 %4244
        %4248 = vset.pattern.permute.xlu0 0
        %4249 = vperm.xlu0 %4248, %v2207
        %v4250 = vpop.permute.xlu0 %4249
        %v4252 = vmul.f32 %v3357, %v3615
        %v4253 = vmul.f32 %v3359, %v3620
        %v4254 = vmul.f32 %v3361, %v3625
        %v4255 = vmul.f32 %v3363, %v3630
        %v4256 = vmul.f32 %v3365, %v3635
        %v4257 = vmul.f32 %v3367, %v3640
        %v4258 = vmul.f32 %v3369, %v3645
        %v4259 = vmul.f32 %v3371, %v3650
        %v4260 = vmul.f32 %v3373, %v3655
        %v4261 = vmul.f32 %v3375, %v3660
        %v4262 = vmul.f32 %v3377, %v3665
        %v4263 = vmul.f32 %v3379, %v3670
        %v4264 = vmul.f32 %v3381, %v3675
        %v4265 = vmul.f32 %v3383, %v3680
        %v4266 = vmul.f32 %v3385, %v3685
        %v4267 = vmul.f32 %v3387, %v3690
        %v4268 = vmul.f32 %v3389, %v3695
        %v4269 = vmul.f32 %v3391, %v3700
        %v4270 = vmul.f32 %v3393, %v3705
        %v4271 = vmul.f32 %v3395, %v3710
        %v4272 = vmul.f32 %v3397, %v3715
        %v4273 = vmul.f32 %v3399, %v3720
        %v4274 = vmul.f32 %v3401, %v3725
        %v4275 = vmul.f32 %v3403, %v3730
        %v4276 = vmul.f32 %v3405, %v3735
        %v4277 = vmul.f32 %v3407, %v3740
        %v4278 = vmul.f32 %v3409, %v3745
        %v4279 = vmul.f32 %v3411, %v3750
        %v4280 = vmul.f32 %v3413, %v3755
        %v4281 = vmul.f32 %v3415, %v3760
        %v4282 = vmul.f32 %v3417, %v3765
        %v4283 = vmul.f32 %v3419, %v3770
        %v4284 = vmul.f32 %v3421, %v3775
        %v4285 = vmul.f32 %v3423, %v3780
        %v4286 = vmul.f32 %v3425, %v3785
        %v4287 = vmul.f32 %v3427, %v3790
        %v4288 = vmul.f32 %v3429, %v3795
        %v4289 = vmul.f32 %v3431, %v3800
        %v4290 = vmul.f32 %v3433, %v3805
        %v4291 = vmul.f32 %v3435, %v3810
        %v4292 = vmul.f32 %v3437, %v3815
        %v4293 = vmul.f32 %v3439, %v3820
        %v4294 = vmul.f32 %v3441, %v3825
        %v4295 = vmul.f32 %v3443, %v3830
        %v4296 = vmul.f32 %v3445, %v3835
        %v4297 = vmul.f32 %v3447, %v3840
        %v4298 = vmul.f32 %v3449, %v3845
        %v4299 = vmul.f32 %v3451, %v3850
        %v4300 = vmul.f32 %v3453, %v3855
        %v4301 = vmul.f32 %v3455, %v3860
        %v4302 = vmul.f32 %v3457, %v3865
        %v4303 = vmul.f32 %v3459, %v3870
        %v4304 = vmul.f32 %v3461, %v3875
        %v4305 = vmul.f32 %v3463, %v3880
        %v4306 = vmul.f32 %v3465, %v3885
        %v4307 = vmul.f32 %v3467, %v3890
        %v4308 = vmul.f32 %v3469, %v3895
        %v4309 = vmul.f32 %v3471, %v3900
        %v4310 = vmul.f32 %v3473, %v3905
        %v4311 = vmul.f32 %v3475, %v3910
        %v4312 = vmul.f32 %v3477, %v3915
        %v4313 = vmul.f32 %v3479, %v3920
        %v4314 = vmul.f32 %v3481, %v3925
        %v4315 = vmul.f32 %v3483, %v3930
        %v4316 = vmul.f32 %v3485, %v3935
        %v4317 = vmul.f32 %v3487, %v3940
        %v4318 = vmul.f32 %v3489, %v3945
        %v4319 = vmul.f32 %v3491, %v3950
        %v4320 = vmul.f32 %v3493, %v3955
        %v4321 = vmul.f32 %v3495, %v3960
        %v4322 = vmul.f32 %v3497, %v3965
        %v4323 = vmul.f32 %v3499, %v3970
        %v4324 = vmul.f32 %v3501, %v3975
        %v4325 = vmul.f32 %v3503, %v3980
        %v4326 = vmul.f32 %v3505, %v3985
        %v4327 = vmul.f32 %v3507, %v3990
        %v4328 = vmul.f32 %v3509, %v3995
        %v4329 = vmul.f32 %v3511, %v4000
        %v4330 = vmul.f32 %v3513, %v4005
        %v4331 = vmul.f32 %v3515, %v4010
        %v4332 = vmul.f32 %v3517, %v4015
        %v4333 = vmul.f32 %v3519, %v4020
        %v4334 = vmul.f32 %v3521, %v4025
        %v4335 = vmul.f32 %v3523, %v4030
        %v4336 = vmul.f32 %v3525, %v4035
        %v4337 = vmul.f32 %v3527, %v4040
        %v4338 = vmul.f32 %v3529, %v4045
        %v4339 = vmul.f32 %v3531, %v4050
        %v4340 = vmul.f32 %v3533, %v4055
        %v4341 = vmul.f32 %v3535, %v4060
        %v4342 = vmul.f32 %v3537, %v4065
        %v4343 = vmul.f32 %v3539, %v4070
        %v4344 = vmul.f32 %v3541, %v4075
        %v4345 = vmul.f32 %v3543, %v4080
        %v4346 = vmul.f32 %v3545, %v4085
        %v4347 = vmul.f32 %v3547, %v4090
        %v4348 = vmul.f32 %v3549, %v4095
        %v4349 = vmul.f32 %v3551, %v4100
        %v4350 = vmul.f32 %v3553, %v4105
        %v4351 = vmul.f32 %v3555, %v4110
        %v4352 = vmul.f32 %v3557, %v4115
        %v4353 = vmul.f32 %v3559, %v4120
        %v4354 = vmul.f32 %v3561, %v4125
        %v4355 = vmul.f32 %v3563, %v4130
        %v4356 = vmul.f32 %v3565, %v4135
        %v4357 = vmul.f32 %v3567, %v4140
        %v4358 = vmul.f32 %v3569, %v4145
        %v4359 = vmul.f32 %v3571, %v4150
        %v4360 = vmul.f32 %v3573, %v4155
        %v4361 = vmul.f32 %v3575, %v4160
        %v4362 = vmul.f32 %v3577, %v4165
        %v4363 = vmul.f32 %v3579, %v4170
        %v4364 = vmul.f32 %v3581, %v4175
        %v4365 = vmul.f32 %v3583, %v4180
        %v4366 = vmul.f32 %v3585, %v4185
        %v4367 = vmul.f32 %v3587, %v4190
        %v4368 = vmul.f32 %v3589, %v4195
        %v4369 = vmul.f32 %v3591, %v4200
        %v4370 = vmul.f32 %v3593, %v4205
        %v4371 = vmul.f32 %v3595, %v4210
        %v4372 = vmul.f32 %v3597, %v4215
        %v4373 = vmul.f32 %v3599, %v4220
        %v4374 = vmul.f32 %v3601, %v4225
        %v4375 = vmul.f32 %v3603, %v4230
        %v4376 = vmul.f32 %v3605, %v4235
        %v4377 = vmul.f32 %v3607, %v4240
        %v4378 = vmul.f32 %v3609, %v4245
        %v4379 = vmul.f32 %v3611, %v4250
        %v4380 = vadd.f32 %v4252, %v4256
        %v4381 = vadd.f32 %v4380, %v4260
        %v4382 = vadd.f32 %v4381, %v4264
        %v4383 = vadd.f32 %v4382, %v4268
        %v4384 = vadd.f32 %v4383, %v4272
        %v4385 = vadd.f32 %v4384, %v4276
        %v4386 = vadd.f32 %v4385, %v4280
        %v4387 = vadd.f32 %v4386, %v4284
        %v4388 = vadd.f32 %v4387, %v4288
        %v4389 = vadd.f32 %v4388, %v4292
        %v4390 = vadd.f32 %v4389, %v4296
        %v4391 = vadd.f32 %v4390, %v4300
        %v4392 = vadd.f32 %v4391, %v4304
        %v4393 = vadd.f32 %v4392, %v4308
        %v4394 = vadd.f32 %v4393, %v4312
        %v4395 = vadd.f32 %v4394, %v4316
        %v4396 = vadd.f32 %v4395, %v4320
        %v4397 = vadd.f32 %v4396, %v4324
        %v4398 = vadd.f32 %v4397, %v4328
        %v4399 = vadd.f32 %v4398, %v4332
        %v4400 = vadd.f32 %v4399, %v4336
        %v4401 = vadd.f32 %v4400, %v4340
        %v4402 = vadd.f32 %v4401, %v4344
        %v4403 = vadd.f32 %v4402, %v4348
        %v4404 = vadd.f32 %v4403, %v4352
        %v4405 = vadd.f32 %v4404, %v4356
        %v4406 = vadd.f32 %v4405, %v4360
        %v4407 = vadd.f32 %v4406, %v4364
        %v4408 = vadd.f32 %v4407, %v4368
        %v4409 = vadd.f32 %v4408, %v4372
        %v4410 = vadd.f32 %v4409, %v4376
        %v4411 = vadd.f32 %v4253, %v4257
        %v4412 = vadd.f32 %v4411, %v4261
        %v4413 = vadd.f32 %v4412, %v4265
        %v4414 = vadd.f32 %v4413, %v4269
        %v4415 = vadd.f32 %v4414, %v4273
        %v4416 = vadd.f32 %v4415, %v4277
        %v4417 = vadd.f32 %v4416, %v4281
        %v4418 = vadd.f32 %v4417, %v4285
        %v4419 = vadd.f32 %v4418, %v4289
        %v4420 = vadd.f32 %v4419, %v4293
        %v4421 = vadd.f32 %v4420, %v4297
        %v4422 = vadd.f32 %v4421, %v4301
        %v4423 = vadd.f32 %v4422, %v4305
        %v4424 = vadd.f32 %v4423, %v4309
        %v4425 = vadd.f32 %v4424, %v4313
        %v4426 = vadd.f32 %v4425, %v4317
        %v4427 = vadd.f32 %v4426, %v4321
        %v4428 = vadd.f32 %v4427, %v4325
        %v4429 = vadd.f32 %v4428, %v4329
        %v4430 = vadd.f32 %v4429, %v4333
        %v4431 = vadd.f32 %v4430, %v4337
        %v4432 = vadd.f32 %v4431, %v4341
        %v4433 = vadd.f32 %v4432, %v4345
        %v4434 = vadd.f32 %v4433, %v4349
        %v4435 = vadd.f32 %v4434, %v4353
        %v4436 = vadd.f32 %v4435, %v4357
        %v4437 = vadd.f32 %v4436, %v4361
        %v4438 = vadd.f32 %v4437, %v4365
        %v4439 = vadd.f32 %v4438, %v4369
        %v4440 = vadd.f32 %v4439, %v4373
        %v4441 = vadd.f32 %v4440, %v4377
        %v4442 = vadd.f32 %v4254, %v4258
        %v4443 = vadd.f32 %v4442, %v4262
        %v4444 = vadd.f32 %v4443, %v4266
        %v4445 = vadd.f32 %v4444, %v4270
        %v4446 = vadd.f32 %v4445, %v4274
        %v4447 = vadd.f32 %v4446, %v4278
        %v4448 = vadd.f32 %v4447, %v4282
        %v4449 = vadd.f32 %v4448, %v4286
        %v4450 = vadd.f32 %v4449, %v4290
        %v4451 = vadd.f32 %v4450, %v4294
        %v4452 = vadd.f32 %v4451, %v4298
        %v4453 = vadd.f32 %v4452, %v4302
        %v4454 = vadd.f32 %v4453, %v4306
        %v4455 = vadd.f32 %v4454, %v4310
        %v4456 = vadd.f32 %v4455, %v4314
        %v4457 = vadd.f32 %v4456, %v4318
        %v4458 = vadd.f32 %v4457, %v4322
        %v4459 = vadd.f32 %v4458, %v4326
        %v4460 = vadd.f32 %v4459, %v4330
        %v4461 = vadd.f32 %v4460, %v4334
        %v4462 = vadd.f32 %v4461, %v4338
        %v4463 = vadd.f32 %v4462, %v4342
        %v4464 = vadd.f32 %v4463, %v4346
        %v4465 = vadd.f32 %v4464, %v4350
        %v4466 = vadd.f32 %v4465, %v4354
        %v4467 = vadd.f32 %v4466, %v4358
        %v4468 = vadd.f32 %v4467, %v4362
        %v4469 = vadd.f32 %v4468, %v4366
        %v4470 = vadd.f32 %v4469, %v4370
        %v4471 = vadd.f32 %v4470, %v4374
        %v4472 = vadd.f32 %v4471, %v4378
        %v4473 = vadd.f32 %v4255, %v4259
        %v4474 = vadd.f32 %v4473, %v4263
        %v4475 = vadd.f32 %v4474, %v4267
        %v4476 = vadd.f32 %v4475, %v4271
        %v4477 = vadd.f32 %v4476, %v4275
        %v4478 = vadd.f32 %v4477, %v4279
        %v4479 = vadd.f32 %v4478, %v4283
        %v4480 = vadd.f32 %v4479, %v4287
        %v4481 = vadd.f32 %v4480, %v4291
        %v4482 = vadd.f32 %v4481, %v4295
        %v4483 = vadd.f32 %v4482, %v4299
        %v4484 = vadd.f32 %v4483, %v4303
        %v4485 = vadd.f32 %v4484, %v4307
        %v4486 = vadd.f32 %v4485, %v4311
        %v4487 = vadd.f32 %v4486, %v4315
        %v4488 = vadd.f32 %v4487, %v4319
        %v4489 = vadd.f32 %v4488, %v4323
        %v4490 = vadd.f32 %v4489, %v4327
        %v4491 = vadd.f32 %v4490, %v4331
        %v4492 = vadd.f32 %v4491, %v4335
        %v4493 = vadd.f32 %v4492, %v4339
        %v4494 = vadd.f32 %v4493, %v4343
        %v4495 = vadd.f32 %v4494, %v4347
        %v4496 = vadd.f32 %v4495, %v4351
        %v4497 = vadd.f32 %v4496, %v4355
        %v4498 = vadd.f32 %v4497, %v4359
        %v4499 = vadd.f32 %v4498, %v4363
        %v4500 = vadd.f32 %v4499, %v4367
        %v4501 = vadd.f32 %v4500, %v4371
        %v4502 = vadd.f32 %v4501, %v4375
        %v4503 = vadd.f32 %v4502, %v4379
        %v4504 = vrcp.pop %v4410
        %v4505 = vrcp.pop %v4441
        %v4506 = vrcp.pop %v4472
        %v4507 = vrcp.pop %v4503
        %v4508 = vmul.f32 %v4252, %v4504
        %v4509 = vmul.f32 %v4253, %v4505
        %v4510 = vmul.f32 %v4254, %v4506
        %v4511 = vmul.f32 %v4255, %v4507
        %v4512 = vmul.f32 %v4256, %v4504
        %v4513 = vmul.f32 %v4257, %v4505
        %v4514 = vmul.f32 %v4258, %v4506
        %v4515 = vmul.f32 %v4259, %v4507
        %v4516 = vmul.f32 %v4260, %v4504
        %v4517 = vmul.f32 %v4261, %v4505
        %v4518 = vmul.f32 %v4262, %v4506
        %v4519 = vmul.f32 %v4263, %v4507
        %v4520 = vmul.f32 %v4264, %v4504
        %v4521 = vmul.f32 %v4265, %v4505
        %v4522 = vmul.f32 %v4266, %v4506
        %v4523 = vmul.f32 %v4267, %v4507
        %v4524 = vmul.f32 %v4268, %v4504
        %v4525 = vmul.f32 %v4269, %v4505
        %v4526 = vmul.f32 %v4270, %v4506
        %v4527 = vmul.f32 %v4271, %v4507
        %v4528 = vmul.f32 %v4272, %v4504
        %v4529 = vmul.f32 %v4273, %v4505
        %v4530 = vmul.f32 %v4274, %v4506
        %v4531 = vmul.f32 %v4275, %v4507
        %v4532 = vmul.f32 %v4276, %v4504
        %v4533 = vmul.f32 %v4277, %v4505
        %v4534 = vmul.f32 %v4278, %v4506
        %v4535 = vmul.f32 %v4279, %v4507
        %v4536 = vmul.f32 %v4280, %v4504
        %v4537 = vmul.f32 %v4281, %v4505
        %v4538 = vmul.f32 %v4282, %v4506
        %v4539 = vmul.f32 %v4283, %v4507
        %v4540 = vmul.f32 %v4284, %v4504
        %v4541 = vmul.f32 %v4285, %v4505
        %v4542 = vmul.f32 %v4286, %v4506
        %v4543 = vmul.f32 %v4287, %v4507
        %v4544 = vmul.f32 %v4288, %v4504
        %v4545 = vmul.f32 %v4289, %v4505
        %v4546 = vmul.f32 %v4290, %v4506
        %v4547 = vmul.f32 %v4291, %v4507
        %v4548 = vmul.f32 %v4292, %v4504
        %v4549 = vmul.f32 %v4293, %v4505
        %v4550 = vmul.f32 %v4294, %v4506
        %v4551 = vmul.f32 %v4295, %v4507
        %v4552 = vmul.f32 %v4296, %v4504
        %v4553 = vmul.f32 %v4297, %v4505
        %v4554 = vmul.f32 %v4298, %v4506
        %v4555 = vmul.f32 %v4299, %v4507
        %v4556 = vmul.f32 %v4300, %v4504
        %v4557 = vmul.f32 %v4301, %v4505
        %v4558 = vmul.f32 %v4302, %v4506
        %v4559 = vmul.f32 %v4303, %v4507
        %v4560 = vmul.f32 %v4304, %v4504
        %v4561 = vmul.f32 %v4305, %v4505
        %v4562 = vmul.f32 %v4306, %v4506
        %v4563 = vmul.f32 %v4307, %v4507
        %v4564 = vmul.f32 %v4308, %v4504
        %v4565 = vmul.f32 %v4309, %v4505
        %v4566 = vmul.f32 %v4310, %v4506
        %v4567 = vmul.f32 %v4311, %v4507
        %v4568 = vmul.f32 %v4312, %v4504
        %v4569 = vmul.f32 %v4313, %v4505
        %v4570 = vmul.f32 %v4314, %v4506
        %v4571 = vmul.f32 %v4315, %v4507
        %v4572 = vmul.f32 %v4316, %v4504
        %v4573 = vmul.f32 %v4317, %v4505
        %v4574 = vmul.f32 %v4318, %v4506
        %v4575 = vmul.f32 %v4319, %v4507
        %v4576 = vmul.f32 %v4320, %v4504
        %v4577 = vmul.f32 %v4321, %v4505
        %v4578 = vmul.f32 %v4322, %v4506
        %v4579 = vmul.f32 %v4323, %v4507
        %v4580 = vmul.f32 %v4324, %v4504
        %v4581 = vmul.f32 %v4325, %v4505
        %v4582 = vmul.f32 %v4326, %v4506
        %v4583 = vmul.f32 %v4327, %v4507
        %v4584 = vmul.f32 %v4328, %v4504
        %v4585 = vmul.f32 %v4329, %v4505
        %v4586 = vmul.f32 %v4330, %v4506
        %v4587 = vmul.f32 %v4331, %v4507
        %v4588 = vmul.f32 %v4332, %v4504
        %v4589 = vmul.f32 %v4333, %v4505
        %v4590 = vmul.f32 %v4334, %v4506
        %v4591 = vmul.f32 %v4335, %v4507
        %v4592 = vmul.f32 %v4336, %v4504
        %v4593 = vmul.f32 %v4337, %v4505
        %v4594 = vmul.f32 %v4338, %v4506
        %v4595 = vmul.f32 %v4339, %v4507
        %v4596 = vmul.f32 %v4340, %v4504
        %v4597 = vmul.f32 %v4341, %v4505
        %v4598 = vmul.f32 %v4342, %v4506
        %v4599 = vmul.f32 %v4343, %v4507
        %v4600 = vmul.f32 %v4344, %v4504
        %v4601 = vmul.f32 %v4345, %v4505
        %v4602 = vmul.f32 %v4346, %v4506
        %v4603 = vmul.f32 %v4347, %v4507
        %v4604 = vmul.f32 %v4348, %v4504
        %v4605 = vmul.f32 %v4349, %v4505
        %v4606 = vmul.f32 %v4350, %v4506
        %v4607 = vmul.f32 %v4351, %v4507
        %v4608 = vmul.f32 %v4352, %v4504
        %v4609 = vmul.f32 %v4353, %v4505
        %v4610 = vmul.f32 %v4354, %v4506
        %v4611 = vmul.f32 %v4355, %v4507
        %v4612 = vmul.f32 %v4356, %v4504
        %v4613 = vmul.f32 %v4357, %v4505
        %v4614 = vmul.f32 %v4358, %v4506
        %v4615 = vmul.f32 %v4359, %v4507
        %v4616 = vmul.f32 %v4360, %v4504
        %v4617 = vmul.f32 %v4361, %v4505
        %v4618 = vmul.f32 %v4362, %v4506
        %v4619 = vmul.f32 %v4363, %v4507
        %v4620 = vmul.f32 %v4364, %v4504
        %v4621 = vmul.f32 %v4365, %v4505
        %v4622 = vmul.f32 %v4366, %v4506
        %v4623 = vmul.f32 %v4367, %v4507
        %v4624 = vmul.f32 %v4368, %v4504
        %v4625 = vmul.f32 %v4369, %v4505
        %v4626 = vmul.f32 %v4370, %v4506
        %v4627 = vmul.f32 %v4371, %v4507
        %v4628 = vmul.f32 %v4372, %v4504
        %v4629 = vmul.f32 %v4373, %v4505
        %v4630 = vmul.f32 %v4374, %v4506
        %v4631 = vmul.f32 %v4375, %v4507
        %v4632 = vmul.f32 %v4376, %v4504
        %v4633 = vmul.f32 %v4377, %v4505
        %v4634 = vmul.f32 %v4378, %v4506
        %v4635 = vmul.f32 %v4379, %v4507
        %v4636 = vmul.f32 %v4508, %v706
        %v4637 = vmul.f32 %v4509, %v706
        %v4638 = vmul.f32 %v4510, %v706
        %v4639 = vmul.f32 %v4511, %v706
        %v4640 = vmul.f32 %v4512, %v710
        %v4641 = vmul.f32 %v4513, %v710
        %v4642 = vmul.f32 %v4514, %v710
        %v4643 = vmul.f32 %v4515, %v710
        %v4644 = vmul.f32 %v4516, %v714
        %v4645 = vmul.f32 %v4517, %v714
        %v4646 = vmul.f32 %v4518, %v714
        %v4647 = vmul.f32 %v4519, %v714
        %v4648 = vmul.f32 %v4520, %v718
        %v4649 = vmul.f32 %v4521, %v718
        %v4650 = vmul.f32 %v4522, %v718
        %v4651 = vmul.f32 %v4523, %v718
        %v4652 = vmul.f32 %v4524, %v722
        %v4653 = vmul.f32 %v4525, %v722
        %v4654 = vmul.f32 %v4526, %v722
        %v4655 = vmul.f32 %v4527, %v722
        %v4656 = vmul.f32 %v4528, %v726
        %v4657 = vmul.f32 %v4529, %v726
        %v4658 = vmul.f32 %v4530, %v726
        %v4659 = vmul.f32 %v4531, %v726
        %v4660 = vmul.f32 %v4532, %v730
        %v4661 = vmul.f32 %v4533, %v730
        %v4662 = vmul.f32 %v4534, %v730
        %v4663 = vmul.f32 %v4535, %v730
        %v4664 = vmul.f32 %v4536, %v734
        %v4665 = vmul.f32 %v4537, %v734
        %v4666 = vmul.f32 %v4538, %v734
        %v4667 = vmul.f32 %v4539, %v734
        %v4668 = vmul.f32 %v4540, %v738
        %v4669 = vmul.f32 %v4541, %v738
        %v4670 = vmul.f32 %v4542, %v738
        %v4671 = vmul.f32 %v4543, %v738
        %v4672 = vmul.f32 %v4544, %v742
        %v4673 = vmul.f32 %v4545, %v742
        %v4674 = vmul.f32 %v4546, %v742
        %v4675 = vmul.f32 %v4547, %v742
        %v4676 = vmul.f32 %v4548, %v746
        %v4677 = vmul.f32 %v4549, %v746
        %v4678 = vmul.f32 %v4550, %v746
        %v4679 = vmul.f32 %v4551, %v746
        %v4680 = vmul.f32 %v4552, %v750
        %v4681 = vmul.f32 %v4553, %v750
        %v4682 = vmul.f32 %v4554, %v750
        %v4683 = vmul.f32 %v4555, %v750
        %v4684 = vmul.f32 %v4556, %v754
        %v4685 = vmul.f32 %v4557, %v754
        %v4686 = vmul.f32 %v4558, %v754
        %v4687 = vmul.f32 %v4559, %v754
        %v4688 = vmul.f32 %v4560, %v758
        %v4689 = vmul.f32 %v4561, %v758
        %v4690 = vmul.f32 %v4562, %v758
        %v4691 = vmul.f32 %v4563, %v758
        %v4692 = vmul.f32 %v4564, %v762
        %v4693 = vmul.f32 %v4565, %v762
        %v4694 = vmul.f32 %v4566, %v762
        %v4695 = vmul.f32 %v4567, %v762
        %v4696 = vmul.f32 %v4568, %v766
        %v4697 = vmul.f32 %v4569, %v766
        %v4698 = vmul.f32 %v4570, %v766
        %v4699 = vmul.f32 %v4571, %v766
        %v4700 = vmul.f32 %v4572, %v770
        %v4701 = vmul.f32 %v4573, %v770
        %v4702 = vmul.f32 %v4574, %v770
        %v4703 = vmul.f32 %v4575, %v770
        %v4704 = vmul.f32 %v4576, %v774
        %v4705 = vmul.f32 %v4577, %v774
        %v4706 = vmul.f32 %v4578, %v774
        %v4707 = vmul.f32 %v4579, %v774
        %v4708 = vmul.f32 %v4580, %v778
        %v4709 = vmul.f32 %v4581, %v778
        %v4710 = vmul.f32 %v4582, %v778
        %v4711 = vmul.f32 %v4583, %v778
        %v4712 = vmul.f32 %v4584, %v782
        %v4713 = vmul.f32 %v4585, %v782
        %v4714 = vmul.f32 %v4586, %v782
        %v4715 = vmul.f32 %v4587, %v782
        %v4716 = vmul.f32 %v4588, %v786
        %v4717 = vmul.f32 %v4589, %v786
        %v4718 = vmul.f32 %v4590, %v786
        %v4719 = vmul.f32 %v4591, %v786
        %v4720 = vmul.f32 %v4592, %v790
        %v4721 = vmul.f32 %v4593, %v790
        %v4722 = vmul.f32 %v4594, %v790
        %v4723 = vmul.f32 %v4595, %v790
        %v4724 = vmul.f32 %v4596, %v794
        %v4725 = vmul.f32 %v4597, %v794
        %v4726 = vmul.f32 %v4598, %v794
        %v4727 = vmul.f32 %v4599, %v794
        %v4728 = vmul.f32 %v4600, %v798
        %v4729 = vmul.f32 %v4601, %v798
        %v4730 = vmul.f32 %v4602, %v798
        %v4731 = vmul.f32 %v4603, %v798
        %v4732 = vmul.f32 %v4604, %v802
        %v4733 = vmul.f32 %v4605, %v802
        %v4734 = vmul.f32 %v4606, %v802
        %v4735 = vmul.f32 %v4607, %v802
        %v4736 = vmul.f32 %v4608, %v806
        %v4737 = vmul.f32 %v4609, %v806
        %v4738 = vmul.f32 %v4610, %v806
        %v4739 = vmul.f32 %v4611, %v806
        %v4740 = vmul.f32 %v4612, %v810
        %v4741 = vmul.f32 %v4613, %v810
        %v4742 = vmul.f32 %v4614, %v810
        %v4743 = vmul.f32 %v4615, %v810
        %v4744 = vmul.f32 %v4616, %v814
        %v4745 = vmul.f32 %v4617, %v814
        %v4746 = vmul.f32 %v4618, %v814
        %v4747 = vmul.f32 %v4619, %v814
        %v4748 = vmul.f32 %v4620, %v818
        %v4749 = vmul.f32 %v4621, %v818
        %v4750 = vmul.f32 %v4622, %v818
        %v4751 = vmul.f32 %v4623, %v818
        %v4752 = vmul.f32 %v4624, %v822
        %v4753 = vmul.f32 %v4625, %v822
        %v4754 = vmul.f32 %v4626, %v822
        %v4755 = vmul.f32 %v4627, %v822
        %v4756 = vmul.f32 %v4628, %v826
        %v4757 = vmul.f32 %v4629, %v826
        %v4758 = vmul.f32 %v4630, %v826
        %v4759 = vmul.f32 %v4631, %v826
        %v4760 = vmul.f32 %v4632, %v830
        %v4761 = vmul.f32 %v4633, %v830
        %v4762 = vmul.f32 %v4634, %v830
        %v4763 = vmul.f32 %v4635, %v830
        %v4764 = vadd.f32 %v4636, %v4640
        %v4765 = vadd.f32 %v4764, %v4644
        %v4766 = vadd.f32 %v4765, %v4648
        %v4767 = vadd.f32 %v4766, %v4652
        %v4768 = vadd.f32 %v4767, %v4656
        %v4769 = vadd.f32 %v4768, %v4660
        %v4770 = vadd.f32 %v4769, %v4664
        %v4771 = vadd.f32 %v4770, %v4668
        %v4772 = vadd.f32 %v4771, %v4672
        %v4773 = vadd.f32 %v4772, %v4676
        %v4774 = vadd.f32 %v4773, %v4680
        %v4775 = vadd.f32 %v4774, %v4684
        %v4776 = vadd.f32 %v4775, %v4688
        %v4777 = vadd.f32 %v4776, %v4692
        %v4778 = vadd.f32 %v4777, %v4696
        %v4779 = vadd.f32 %v4778, %v4700
        %v4780 = vadd.f32 %v4779, %v4704
        %v4781 = vadd.f32 %v4780, %v4708
        %v4782 = vadd.f32 %v4781, %v4712
        %v4783 = vadd.f32 %v4782, %v4716
        %v4784 = vadd.f32 %v4783, %v4720
        %v4785 = vadd.f32 %v4784, %v4724
        %v4786 = vadd.f32 %v4785, %v4728
        %v4787 = vadd.f32 %v4786, %v4732
        %v4788 = vadd.f32 %v4787, %v4736
        %v4789 = vadd.f32 %v4788, %v4740
        %v4790 = vadd.f32 %v4789, %v4744
        %v4791 = vadd.f32 %v4790, %v4748
        %v4792 = vadd.f32 %v4791, %v4752
        %v4793 = vadd.f32 %v4792, %v4756
        %v4794 = vadd.f32 %v4793, %v4760
        %v4795 = vadd.f32 %v4637, %v4641
        %v4796 = vadd.f32 %v4795, %v4645
        %v4797 = vadd.f32 %v4796, %v4649
        %v4798 = vadd.f32 %v4797, %v4653
        %v4799 = vadd.f32 %v4798, %v4657
        %v4800 = vadd.f32 %v4799, %v4661
        %v4801 = vadd.f32 %v4800, %v4665
        %v4802 = vadd.f32 %v4801, %v4669
        %v4803 = vadd.f32 %v4802, %v4673
        %v4804 = vadd.f32 %v4803, %v4677
        %v4805 = vadd.f32 %v4804, %v4681
        %v4806 = vadd.f32 %v4805, %v4685
        %v4807 = vadd.f32 %v4806, %v4689
        %v4808 = vadd.f32 %v4807, %v4693
        %v4809 = vadd.f32 %v4808, %v4697
        %v4810 = vadd.f32 %v4809, %v4701
        %v4811 = vadd.f32 %v4810, %v4705
        %v4812 = vadd.f32 %v4811, %v4709
        %v4813 = vadd.f32 %v4812, %v4713
        %v4814 = vadd.f32 %v4813, %v4717
        %v4815 = vadd.f32 %v4814, %v4721
        %v4816 = vadd.f32 %v4815, %v4725
        %v4817 = vadd.f32 %v4816, %v4729
        %v4818 = vadd.f32 %v4817, %v4733
        %v4819 = vadd.f32 %v4818, %v4737
        %v4820 = vadd.f32 %v4819, %v4741
        %v4821 = vadd.f32 %v4820, %v4745
        %v4822 = vadd.f32 %v4821, %v4749
        %v4823 = vadd.f32 %v4822, %v4753
        %v4824 = vadd.f32 %v4823, %v4757
        %v4825 = vadd.f32 %v4824, %v4761
        %v4826 = vadd.f32 %v4638, %v4642
        %v4827 = vadd.f32 %v4826, %v4646
        %v4828 = vadd.f32 %v4827, %v4650
        %v4829 = vadd.f32 %v4828, %v4654
        %v4830 = vadd.f32 %v4829, %v4658
        %v4831 = vadd.f32 %v4830, %v4662
        %v4832 = vadd.f32 %v4831, %v4666
        %v4833 = vadd.f32 %v4832, %v4670
        %v4834 = vadd.f32 %v4833, %v4674
        %v4835 = vadd.f32 %v4834, %v4678
        %v4836 = vadd.f32 %v4835, %v4682
        %v4837 = vadd.f32 %v4836, %v4686
        %v4838 = vadd.f32 %v4837, %v4690
        %v4839 = vadd.f32 %v4838, %v4694
        %v4840 = vadd.f32 %v4839, %v4698
        %v4841 = vadd.f32 %v4840, %v4702
        %v4842 = vadd.f32 %v4841, %v4706
        %v4843 = vadd.f32 %v4842, %v4710
        %v4844 = vadd.f32 %v4843, %v4714
        %v4845 = vadd.f32 %v4844, %v4718
        %v4846 = vadd.f32 %v4845, %v4722
        %v4847 = vadd.f32 %v4846, %v4726
        %v4848 = vadd.f32 %v4847, %v4730
        %v4849 = vadd.f32 %v4848, %v4734
        %v4850 = vadd.f32 %v4849, %v4738
        %v4851 = vadd.f32 %v4850, %v4742
        %v4852 = vadd.f32 %v4851, %v4746
        %v4853 = vadd.f32 %v4852, %v4750
        %v4854 = vadd.f32 %v4853, %v4754
        %v4855 = vadd.f32 %v4854, %v4758
        %v4856 = vadd.f32 %v4855, %v4762
        %v4857 = vadd.f32 %v4639, %v4643
        %v4858 = vadd.f32 %v4857, %v4647
        %v4859 = vadd.f32 %v4858, %v4651
        %v4860 = vadd.f32 %v4859, %v4655
        %v4861 = vadd.f32 %v4860, %v4659
        %v4862 = vadd.f32 %v4861, %v4663
        %v4863 = vadd.f32 %v4862, %v4667
        %v4864 = vadd.f32 %v4863, %v4671
        %v4865 = vadd.f32 %v4864, %v4675
        %v4866 = vadd.f32 %v4865, %v4679
        %v4867 = vadd.f32 %v4866, %v4683
        %v4868 = vadd.f32 %v4867, %v4687
        %v4869 = vadd.f32 %v4868, %v4691
        %v4870 = vadd.f32 %v4869, %v4695
        %v4871 = vadd.f32 %v4870, %v4699
        %v4872 = vadd.f32 %v4871, %v4703
        %v4873 = vadd.f32 %v4872, %v4707
        %v4874 = vadd.f32 %v4873, %v4711
        %v4875 = vadd.f32 %v4874, %v4715
        %v4876 = vadd.f32 %v4875, %v4719
        %v4877 = vadd.f32 %v4876, %v4723
        %v4878 = vadd.f32 %v4877, %v4727
        %v4879 = vadd.f32 %v4878, %v4731
        %v4880 = vadd.f32 %v4879, %v4735
        %v4881 = vadd.f32 %v4880, %v4739
        %v4882 = vadd.f32 %v4881, %v4743
        %v4883 = vadd.f32 %v4882, %v4747
        %v4884 = vadd.f32 %v4883, %v4751
        %v4885 = vadd.f32 %v4884, %v4755
        %v4886 = vadd.f32 %v4885, %v4759
        %v4887 = vadd.f32 %v4886, %v4763
        %4888 = vrot.lane.b32.xlu0 %v4794, 32
        %v4889 = vpop.permute.xlu0 %4888
        %4890 = vrot.lane.b32.xlu0 %v4825, 32
        %v4891 = vpop.permute.xlu0 %4890
        %4892 = vrot.lane.b32.xlu0 %v4856, 32
        %v4893 = vpop.permute.xlu0 %4892
        %4894 = vrot.lane.b32.xlu0 %v4887, 32
        %v4895 = vpop.permute.xlu0 %4894
        %v4896 = vadd.f32 %v4794, %v4889
        %v4897 = vadd.f32 %v4825, %v4891
        %v4898 = vadd.f32 %v4856, %v4893
        %v4899 = vadd.f32 %v4887, %v4895
        %4900 = vrot.lane.b32.xlu0 %v4794, 64
        %v4901 = vpop.permute.xlu0 %4900
        %4902 = vrot.lane.b32.xlu0 %v4825, 64
        %v4903 = vpop.permute.xlu0 %4902
        %4904 = vrot.lane.b32.xlu0 %v4856, 64
        %v4905 = vpop.permute.xlu0 %4904
        %4906 = vrot.lane.b32.xlu0 %v4887, 64
        %v4907 = vpop.permute.xlu0 %4906
        %v4908 = vadd.f32 %v4896, %v4901
        %v4909 = vadd.f32 %v4897, %v4903
        %v4910 = vadd.f32 %v4898, %v4905
        %v4911 = vadd.f32 %v4899, %v4907
        %4912 = vrot.lane.b32.xlu0 %v4794, 96
        %v4913 = vpop.permute.xlu0 %4912
        %4914 = vrot.lane.b32.xlu0 %v4825, 96
        %v4915 = vpop.permute.xlu0 %4914
        %4916 = vrot.lane.b32.xlu0 %v4856, 96
        %v4917 = vpop.permute.xlu0 %4916
        %4918 = vrot.lane.b32.xlu0 %v4887, 96
        %v4919 = vpop.permute.xlu0 %4918
        %v4920 = vadd.f32 %v4908, %v4913
        %v4921 = vadd.f32 %v4909, %v4915
        %v4922 = vadd.f32 %v4910, %v4917
        %v4923 = vadd.f32 %v4911, %v4919
        %v4924 = vlaneseq
        %v4925 = vand.u32 %v4924, 127
        %vm4926 = vcmp.lt.s32.totalorder %v4925, 32
        %v4927 = vsel %vm4926, 1, 0
        %v4928 = vcvt.s32.f32 %v4927
        %v4929 = vmul.f32 %v4928, 0.25
        %v4930 = vmul.f32 %v4920, %v4929
        %v4931 = vmul.f32 %v4921, %v4929
        %v4932 = vmul.f32 %v4922, %v4929
        %v4933 = vmul.f32 %v4923, %v4929
        %v4934 = vlaneseq
        %v4935 = vshrl.u32 %v4934, 7
        %v4936 = vsub.s32 1, %v4935
        %v4937 = vrot.slane %v394, %v4936
        %v4938 = vadd.f32 %v4930, %v4937
        %v4939 = vadd.f32 %v4931, %v4937
        %v4940 = vadd.f32 %v4932, %v4937
        %v4941 = vadd.f32 %v4933, %v4937
        %4942 = vadd.xlane.f32.xlu0 %v4938
        %v4943 = vpop.xlane.xlu0 %4942
        %4944 = vadd.xlane.f32.xlu0 %v4939
        %v4945 = vpop.xlane.xlu0 %4944
        %4946 = vadd.xlane.f32.xlu0 %v4940
        %v4947 = vpop.xlane.xlu0 %4946
        %4948 = vadd.xlane.f32.xlu0 %v4941
        %v4949 = vpop.xlane.xlu0 %4948
        %v4950 = vmul.f32 %v4943, 0.03125
        %v4951 = vmul.f32 %v4945, 0.03125
        %v4952 = vmul.f32 %v4947, 0.03125
        %v4953 = vmul.f32 %v4949, 0.03125
        %v4954 = vsub.f32 %v4938, %v4950
        %v4955 = vsub.f32 %v4939, %v4951
        %v4956 = vsub.f32 %v4940, %v4952
        %v4957 = vsub.f32 %v4941, %v4953
        %v4958 = vmul.f32 %v4954, %v4928
        %v4959 = vmul.f32 %v4955, %v4928
        %v4960 = vmul.f32 %v4956, %v4928
        %v4961 = vmul.f32 %v4957, %v4928
        %v4962 = vmul.f32 %v4958, %v4958
        %v4963 = vmul.f32 %v4959, %v4959
        %v4964 = vmul.f32 %v4960, %v4960
        %v4965 = vmul.f32 %v4961, %v4961
        %4966 = vadd.xlane.f32.xlu0 %v4962
        %v4967 = vpop.xlane.xlu0 %4966
        %4968 = vadd.xlane.f32.xlu0 %v4963
        %v4969 = vpop.xlane.xlu0 %4968
        %4970 = vadd.xlane.f32.xlu0 %v4964
        %v4971 = vpop.xlane.xlu0 %4970
        %4972 = vadd.xlane.f32.xlu0 %v4965
        %v4973 = vpop.xlane.xlu0 %4972
        %v4974 = vmul.f32 %v4967, 0.03125
        %v4975 = vmul.f32 %v4969, 0.03125
        %v4976 = vmul.f32 %v4971, 0.03125
        %v4977 = vmul.f32 %v4973, 0.03125
        %v4978 = vadd.f32 %v4974, 1e-05
        %v4979 = vadd.f32 %v4975, 1e-05
        %v4980 = vadd.f32 %v4976, 1e-05
        %v4981 = vadd.f32 %v4977, 1e-05
        %v4982 = vrsqrt.pop %v4978
        %v4983 = vrsqrt.pop %v4979
        %v4984 = vrsqrt.pop %v4980
        %v4985 = vrsqrt.pop %v4981
        %v4986 = vmul.f32 %v4958, %v4982
        %v4987 = vmul.f32 %v4959, %v4983
        %v4988 = vmul.f32 %v4960, %v4984
        %v4989 = vmul.f32 %v4961, %v4985
        %v4990 = vlaneseq
        %v4991 = vshrl.u32 %v4990, 7
        %v4992 = vsub.s32 2, %v4991
        %v4993 = vrot.slane %v394, %v4992
        %v4994 = vmul.f32 %v4986, %v4993
        %v4995 = vmul.f32 %v4987, %v4993
        %v4996 = vmul.f32 %v4988, %v4993
        %v4997 = vmul.f32 %v4989, %v4993
        %v4998 = vlaneseq
        %v4999 = vshrl.u32 %v4998, 7
        %v5000 = vsub.s32 3, %v4999
        %v5001 = vrot.slane %v394, %v5000
        %v5002 = vadd.f32 %v4994, %v5001
        %v5003 = vadd.f32 %v4995, %v5001
        %v5004 = vadd.f32 %v4996, %v5001
        %v5005 = vadd.f32 %v4997, %v5001
        %vm5006 = vcmp.ge.f32.partialorder %v5002, 0.0
        %vm5007 = vcmp.ge.f32.partialorder %v5003, 0.0
        %vm5008 = vcmp.ge.f32.partialorder %v5004, 0.0
        %vm5009 = vcmp.ge.f32.partialorder %v5005, 0.0
        %v5010 = vmul.f32 %v5002, 0.2
        %v5011 = vmul.f32 %v5003, 0.2
        %v5012 = vmul.f32 %v5004, 0.2
        %v5013 = vmul.f32 %v5005, 0.2
        %v5014 = vsel %vm5006, %v5002, %v5010
        %v5015 = vsel %vm5007, %v5003, %v5011
        %v5016 = vsel %vm5008, %v5004, %v5012
        %v5017 = vsel %vm5009, %v5005, %v5013
        %5018 = vst [vmem:[#allocation10] sm:$0xff] %v5014
        %5019 = vst [vmem:[#allocation10 + $0x8] sm:$0xff] %v5015
        %5020 = vst [vmem:[#allocation10 + $0x10] sm:$0xff] %v5016
        %5021 = vst [vmem:[#allocation10 + $0x18] sm:$0xff] %v5017
        // Predicated region
        $region65: #{tpu_custom_call.1} parent=39 // pred_check
          %p5022 = pneg %p152
        $region66: #{tpu_custom_call.1} parent=39 // pred_check_branch
          %5024 = sbr.rel (%p5022) target = $region68
        $region67: #{tpu_custom_call.1} parent=39 // pred_region
          %s5026 = ssub.s32 512, 512
          %5027 = vsyncadd [#allocation4], %s5026
          %s5028 = sshll.u32 [#allocation10], 4
          %s5029 = int_to_ptr.vmem [resolvable:$true] %s5028
          %5034 = dma.vmem_to_hbm [thread:$0]  %s5029, 512, %s5, [#allocation4], 128, 128, 8
        $region68: #{tpu_custom_call.1} parent=39 // pred_fallthru
          _
        // Predicated region
        $region69: #{tpu_custom_call.1} parent=39 // pred_check
          %p5035 = pneg %p152
        $region70: #{tpu_custom_call.1} parent=39 // pred_check_branch
          %5037 = sbr.rel (%p5035) target = $region72
        $region71: #{tpu_custom_call.1} parent=39 // pred_region
          %5038 = dma.done [#allocation4], 512
        $region72: #{tpu_custom_call.1} parent=39 // pred_fallthru
          _
      $region40: #{tpu_custom_call.1} parent=5 // pred_fallthru
        _
      %p5039 = scmp.le.s32.totalorder 2, %s14
      // Predicated region
      $region73: #{tpu_custom_call.1} parent=5 // pred_check
        %p5040 = pneg %p5039
      $region74: #{tpu_custom_call.1} parent=5 // pred_check_branch
        %5042 = sbr.rel (%p5040) target = $region76
      $region75: #{tpu_custom_call.1} parent=5 // pred_region
        %s5043 = ssub.s32 %s14, 2
      $region76: #{tpu_custom_call.1} parent=5 // pred_fallthru
        _
    $region6: #{tpu_custom_call.1} parent=1 // loop_footer
      %s18 = sadd.s32 1, %s14
    $region7: #{tpu_custom_call.1} parent=1 // loop_footer_branch
      %13 = sbr.rel target = $region3
    $region8: #{tpu_custom_call.1} parent=1 // loop_exit
      _
    %5044 = vsyncpa [#allocation3], 1
    %s5045 = scalar_lea.sflag [#allocation3], 1
    %5046 = vsyncpa %s5045, 1
    %5047 = vsyncpa [#allocation6], 1
    %5048 = vsyncpa [#allocation4], 1
    %s5049 = scalar_lea.sflag [#allocation4], 1
    %5050 = vsyncpa %s5049, 1

</llo_original>
